<compile_context>
chip_gen: v5e
topology: v5e:2x2
jax: 0.10.0
libtpu: 0.0.40
codegen_flags: <defaults>
</compile_context>

<pallas_src>
import functools

import jax
import jax.numpy as jnp
from jax.experimental import pallas as pl
from jax.experimental.pallas import tpu as pltpu

# ----------------------- toy config (hubert-xlarge structure) -----------------
CONV_DIMS = (32, 32, 32)
CONV_KERNELS = (10, 3, 2)
CONV_STRIDES = (5, 2, 2)
HIDDEN = 64
NUM_HEADS = 4
NUM_LAYERS = 2
INTERMEDIATE = 128
POS_K = 8       # num_conv_pos_embeddings
POS_G = 4       # num_conv_pos_embedding_groups
LN_EPS = 1e-5
BLOCK_M = 256   # row tile for token-parallel kernels


# ------------------------------- small helpers --------------------------------
def _round_up(x, m):
    return ((x + m - 1) // m) * m


def _pad_rows(x, tm):
    m = x.shape[0]
    mp = _round_up(m, tm)
    if mp != m:
        x = jnp.pad(x, ((0, mp - m), (0, 0)))
    return x, m, mp


def _ln(x, g, b, eps):
    mu = jnp.mean(x, axis=-1, keepdims=True)
    var = jnp.mean(jnp.square(x - mu), axis=-1, keepdims=True)
    return (x - mu) * jax.lax.rsqrt(var + eps) * g + b


def _bf16_dot(a, b):
    # MXU path: bf16 operands, f32 accumulation.
    return jnp.dot(a.astype(jnp.bfloat16), b.astype(jnp.bfloat16),
                   preferred_element_type=jnp.float32)


# ------------------------------- Pallas kernels --------------------------------
def _linear_kernel(x_ref, w_ref, b_ref, o_ref, *, act):
    y = _bf16_dot(x_ref[...], w_ref[...]) + b_ref[...]
    if act == "gelu":
        # TODO(synk): HF Hubert uses erf-based GELU; tanh approximation used here
        # for guaranteed Mosaic lowering.
        y = jax.nn.gelu(y, approximate=True)
    o_ref[...] = y.astype(o_ref.dtype)


def _conv_ln_gelu_kernel(x_ref, w_ref, b_ref, g_ref, beta_ref, o_ref, *, eps):
    # im2col conv matmul + channel LayerNorm + GELU, fully fused in VMEM.
    y = _bf16_dot(x_ref[...], w_ref[...]) + b_ref[...]
    y = _ln(y, g_ref[...], beta_ref[...], eps)
    o_ref[...] = jax.nn.gelu(y, approximate=True).astype(o_ref.dtype)


def _ln_linear_kernel(x_ref, g_ref, beta_ref, w_ref, b_ref, o_ref, *, eps):
    xn = _ln(x_ref[...].astype(jnp.float32), g_ref[...], beta_ref[...], eps)
    o_ref[...] = (_bf16_dot(xn, w_ref[...]) + b_ref[...]).astype(o_ref.dtype)


def _layernorm_kernel(x_ref, g_ref, b_ref, o_ref, *, eps):
    o_ref[...] = _ln(x_ref[...].astype(jnp.float32),
                     g_ref[...], b_ref[...], eps).astype(o_ref.dtype)


def _encoder_layer_kernel(x_ref, ln1g_ref, ln1b_ref, wqkv_ref, bqkv_ref,
                          wo_ref, bo_ref, ln2g_ref, ln2b_ref,
                          w1_ref, b1_ref, w2_ref, b2_ref, o_ref,
                          *, num_heads, eps):
    """One full stable-layer-norm Hubert encoder block, fused; block = one batch item."""
    x = x_ref[0].astype(jnp.float32)                       # (T, H)
    T, H = x.shape
    dh = H // num_heads
    scale = 1.0 / float(dh) ** 0.5

    # --- self attention (pre-LN, fused QKV projection) ---
    hn = _ln(x, ln1g_ref[...], ln1b_ref[...], eps)
    qkv = _bf16_dot(hn, wqkv_ref[...]) + bqkv_ref[...]     # (T, 3H), lane-dense
    q = (qkv[:, :H] * scale).astype(jnp.bfloat16)
    k = qkv[:, H:2 * H].astype(jnp.bfloat16)
    v = qkv[:, 2 * H:].astype(jnp.bfloat16)

    # TODO(synk): at real hubert-xlarge sequence lengths (T~1500) this should be a
    # KV-blocked online-softmax (flash) loop; full (T, T) scores are fine at toy T.
    heads = []
    for h in range(num_heads):
        sl = slice(h * dh, (h + 1) * dh)
        s = jax.lax.dot_general(q[:, sl], k[:, sl], (((1,), (1,)), ((), ())),
                                preferred_element_type=jnp.float32)     # (T, T)
        s = s - jnp.max(s, axis=-1, keepdims=True)
        p = jnp.exp(s)
        p = p * pl.reciprocal(jnp.sum(p, axis=-1, keepdims=True), approx=True)
        heads.append(jnp.dot(p.astype(jnp.bfloat16), v[:, sl],
                             preferred_element_type=jnp.float32))
    attn = jnp.concatenate(heads, axis=-1)                              # (T, H)

    x = x + _bf16_dot(attn, wo_ref[...]) + bo_ref[...]

    # --- feed forward (pre-LN) ---
    hn2 = _ln(x, ln2g_ref[...], ln2b_ref[...], eps)
    f = jax.nn.gelu(_bf16_dot(hn2, w1_ref[...]) + b1_ref[...], approximate=True)
    x = x + _bf16_dot(f, w2_ref[...]) + b2_ref[...]

    o_ref[0] = x.astype(o_ref.dtype)


# --------------------------- row-tiled kernel launcher -------------------------
def _rowwise_call(kernel, x, side_inputs, n_out, block_m=BLOCK_M):
    """Run `kernel` over row tiles of x (grid axis marked 'parallel'); side
    inputs (weights / per-feature params, all 2D) are single untiled blocks."""
    m, k = x.shape
    tm = min(block_m, _round_up(m, 8))
    xp, m0, mp = _pad_rows(x, tm)
    in_specs = [pl.BlockSpec((tm, k), lambda i: (i, 0))]
    in_specs += [pl.BlockSpec(s.shape, lambda i: (0, 0)) for s in side_inputs]
    out = pl.pallas_call(
        kernel,
        out_shape=jax.ShapeDtypeStruct((mp, n_out), jnp.float32),
        grid=(mp // tm,),
        in_specs=in_specs,
        out_specs=pl.BlockSpec((tm, n_out), lambda i: (i, 0)),
        compiler_params=pltpu.CompilerParams(dimension_semantics=("parallel",)),
    )(xp, *side_inputs)
    return out[:m0] if mp != m0 else out


def pallas_linear(x, w, b, act="none"):
    return _rowwise_call(functools.partial(_linear_kernel, act=act),
                         x, [w, b.reshape(1, -1)], w.shape[1])


def pallas_conv_ln_gelu(patches, w, b, g, beta):
    return _rowwise_call(
        functools.partial(_conv_ln_gelu_kernel, eps=LN_EPS),
        patches,
        [w, b.reshape(1, -1), g.reshape(1, -1), beta.reshape(1, -1)],
        w.shape[1])


def pallas_ln_linear(x, g, beta, w, b):
    return _rowwise_call(
        functools.partial(_ln_linear_kernel, eps=LN_EPS),
        x, [g.reshape(1, -1), beta.reshape(1, -1), w, b.reshape(1, -1)],
        w.shape[1])


def pallas_layernorm(x, g, b):
    return _rowwise_call(functools.partial(_layernorm_kernel, eps=LN_EPS),
                         x, [g.reshape(1, -1), b.reshape(1, -1)], x.shape[1])


# ------------------------------ composed modules -------------------------------
def conv_layer(x, w, b, gamma, beta, stride):
    """Valid Conv1d -> LayerNorm(ch) -> GELU, via im2col + one fused kernel.
    x:(B,Cin,T) NCW, w:(Cout,Cin,K) -> (B,L,Cout)."""
    B, Cin, T = x.shape
    Cout, _, K = w.shape
    L = (T - K) // stride + 1
    idx = jnp.arange(L)[:, None] * stride + jnp.arange(K)[None, :]    # (L, K)
    patches = x[:, :, idx]                                            # (B, Cin, L, K)
    patches = patches.transpose(0, 2, 1, 3).reshape(B * L, Cin * K)   # torch weight order
    wf = w.reshape(Cout, Cin * K).T                                   # (Cin*K, Cout)
    y = pallas_conv_ln_gelu(patches, wf, b, gamma, beta)              # (B*L, Cout)
    return y.reshape(B, L, Cout)


def pos_conv_embed(h, w, b):
    """Grouped same-padded Conv1d positional embedding + trim + GELU, as ONE
    lane-dense block-diagonal matmul.  h:(B,T,H), w:(H, H//POS_G, K)."""
    # TODO(synk): weight-norm parametrization of the pos conv is folded into `w`.
    B, T, H = h.shape
    cg = H // POS_G
    pad = POS_K // 2
    hp = jnp.pad(h, ((0, 0), (pad, pad), (0, 0)))                     # (B, T+2p, H)
    L = T + 2 * pad - POS_K + 1                                       # = T + 1 (even kernel)
    idx = jnp.arange(L)[:, None] + jnp.arange(POS_K)[None, :]         # (L, K)
    patches = hp[:, idx, :]                                           # (B, L, K, H)
    patches = patches.transpose(0, 1, 3, 2).reshape(B * L, H * POS_K)  # channel-major, tap-minor

    # Block-diagonal weight so all groups write one contiguous (B*L, H) output.
    wfull = jnp.zeros((H * POS_K, H), jnp.float32)
    for g in range(POS_G):
        wg = w[g * cg:(g + 1) * cg].reshape(cg, cg * POS_K).T         # (cg*K, cg)
        wfull = wfull.at[g * cg * POS_K:(g + 1) * cg * POS_K,
                         g * cg:(g + 1) * cg].set(wg)

    y = pallas_linear(patches, wfull, b, act="gelu").reshape(B, L, H)
    return y[:, :T, :]                                                # HubertSamePadLayer


def encoder_layer(hs, p):
    """One fused pallas_call per stable-layer-norm encoder block; grid over batch."""
    B, T, H = hs.shape
    weights = [
        p["ln1_g"].reshape(1, H), p["ln1_b"].reshape(1, H),
        p["wqkv"], p["bqkv"].reshape(1, 3 * H),
        p["wo"], p["bo"].reshape(1, H),
        p["ln2_g"].reshape(1, H), p["ln2_b"].reshape(1, H),
        p["w1"], p["b1"].reshape(1, INTERMEDIATE),
        p["w2"], p["b2"].reshape(1, H),
    ]
    in_specs = [pl.BlockSpec((1, T, H), lambda i: (i, 0, 0))]
    in_specs += [pl.BlockSpec(w.shape, lambda i: (0, 0)) for w in weights]
    return pl.pallas_call(
        functools.partial(_encoder_layer_kernel, num_heads=NUM_HEADS, eps=LN_EPS),
        out_shape=jax.ShapeDtypeStruct((B, T, H), jnp.float32),
        grid=(B,),
        in_specs=in_specs,
        out_specs=pl.BlockSpec((1, T, H), lambda i: (i, 0, 0)),
        compiler_params=pltpu.CompilerParams(dimension_semantics=("parallel",)),
    )(hs, *weights)


def hubert_forward(x, params):
    """x: (B, T_samples) float32  ->  last_hidden_state (B, T', HIDDEN)."""
    h = x[:, None, :]                                                 # (B, 1, T) NCW

    # feature extractor: fused Conv1d+LayerNorm(ch)+GELU per layer
    for (w, b, g, beta), stride in zip(params["conv_layers"], CONV_STRIDES):
        y = conv_layer(h, w, b, g, beta, stride)                      # (B, L, C)
        h = y.transpose(0, 2, 1)                                      # back to NCW

    feat = h.transpose(0, 2, 1)                                       # (B, T', C)
    Bf, Tf, C = feat.shape

    # feature projection: fused LayerNorm -> Linear
    hs = pallas_ln_linear(feat.reshape(Bf * Tf, C),
                          params["fp_ln_g"], params["fp_ln_b"],
                          params["fp_w"], params["fp_b"]).reshape(Bf, Tf, HIDDEN)

    # positional conv embedding + residual
    hs = hs + pos_conv_embed(hs, params["pos_w"], params["pos_b"])

    # transformer encoder (stable layer norm variant) + final LayerNorm
    for lp in params["layers"]:
        hs = encoder_layer(hs, lp)
    hs = pallas_layernorm(hs.reshape(Bf * Tf, HIDDEN),
                          params["enc_ln_g"], params["enc_ln_b"]).reshape(Bf, Tf, HIDDEN)
    return hs


# ------------------------------- parameter init --------------------------------
def init_params(key):
    # TODO(synk): synthetic weights instead of the hubert-xlarge-ll60k checkpoint.
    keys = iter(jax.random.split(key, 256))

    def rnd(shape, scale=0.02):
        return scale * jax.random.normal(next(keys), shape, dtype=jnp.float32)

    params = {}
    conv_layers = []
    in_ch = 1
    for dim, k in zip(CONV_DIMS, CONV_KERNELS):
        conv_layers.append((
            rnd((dim, in_ch, k)),            # conv weight (Cout, Cin, K)
            rnd((dim,)),                     # conv bias
            jnp.ones((dim,), jnp.float32),   # LN gamma
            jnp.zeros((dim,), jnp.float32),  # LN beta
        ))
        in_ch = dim
    params["conv_layers"] = conv_layers

    params["fp_ln_g"] = jnp.ones((CONV_DIMS[-1],), jnp.float32)
    params["fp_ln_b"] = jnp.zeros((CONV_DIMS[-1],), jnp.float32)
    params["fp_w"] = rnd((CONV_DIMS[-1], HIDDEN))
    params["fp_b"] = rnd((HIDDEN,))

    params["pos_w"] = rnd((HIDDEN, HIDDEN // POS_G, POS_K))
    params["pos_b"] = rnd((HIDDEN,))

    layers = []
    for _ in range(NUM_LAYERS):
        wq, wk, wv = rnd((HIDDEN, HIDDEN)), rnd((HIDDEN, HIDDEN)), rnd((HIDDEN, HIDDEN))
        bq, bk, bv = rnd((HIDDEN,)), rnd((HIDDEN,)), rnd((HIDDEN,))
        layers.append(dict(
            ln1_g=jnp.ones((HIDDEN,), jnp.float32), ln1_b=jnp.zeros((HIDDEN,), jnp.float32),
            wqkv=jnp.concatenate([wq, wk, wv], axis=1),     # fused (H, 3H)
            bqkv=jnp.concatenate([bq, bk, bv]),
            wo=rnd((HIDDEN, HIDDEN)), bo=rnd((HIDDEN,)),
            ln2_g=jnp.ones((HIDDEN,), jnp.float32), ln2_b=jnp.zeros((HIDDEN,), jnp.float32),
            w1=rnd((HIDDEN, INTERMEDIATE)), b1=rnd((INTERMEDIATE,)),
            w2=rnd((INTERMEDIATE, HIDDEN)), b2=rnd((HIDDEN,)),
        ))
    params["layers"] = layers

    params["enc_ln_g"] = jnp.ones((HIDDEN,), jnp.float32)
    params["enc_ln_b"] = jnp.zeros((HIDDEN,), jnp.float32)
    return params


# ------------------------------------ main --------------------------------------
if __name__ == "__main__":
    key = jax.random.PRNGKey(0)
    pkey, xkey = jax.random.split(key)
    params = init_params(pkey)

    B, T_SAMPLES = 2, 330        # 330 raw samples -> 65 -> 32 -> 16 frames
    x = jax.random.normal(xkey, (B, T_SAMPLES), dtype=jnp.float32)

    fwd = jax.jit(hubert_forward)
    last_hidden_state = jax.block_until_ready(fwd(x, params))

    assert last_hidden_state.shape == (B, 16, HIDDEN), last_hidden_state.shape
    assert bool(jnp.all(jnp.isfinite(last_hidden_state)))
    print("KERNEL_OK")
</pallas_src>

<mosaic_0001>
module attributes {stable_mosaic.version = 11 : i64} {
  func.func @_conv_ln_gelu_kernel(%arg0: i32, %arg1: memref<136x10xf32, #tpu.memory_space<vmem>>, %arg2: memref<10x32xf32, #tpu.memory_space<vmem>>, %arg3: memref<1x32xf32, #tpu.memory_space<vmem>>, %arg4: memref<1x32xf32, #tpu.memory_space<vmem>>, %arg5: memref<1x32xf32, #tpu.memory_space<vmem>>, %arg6: memref<136x32xf32, #tpu.memory_space<vmem>>) attributes {dimension_semantics = [#tpu.dimension_semantics<parallel>], iteration_bounds = array<i64: 1>, scalar_prefetch = 0 : i64, scratch_operands = 0 : i64, tpu.core_type = #tpu.core_type<tc>, window_params = [{transform_indices = @transform_0, window_bounds = array<i64: 136, 10>}, {pipeline_mode = #tpu.pipeline_mode<synchronous>, transform_indices = @transform_1, window_bounds = array<i64: 10, 32>}, {pipeline_mode = #tpu.pipeline_mode<synchronous>, transform_indices = @transform_2, window_bounds = array<i64: 1, 32>}, {pipeline_mode = #tpu.pipeline_mode<synchronous>, transform_indices = @transform_3, window_bounds = array<i64: 1, 32>}, {pipeline_mode = #tpu.pipeline_mode<synchronous>, transform_indices = @transform_4, window_bounds = array<i64: 1, 32>}, {transform_indices = @transform_5, window_bounds = array<i64: 136, 32>}]} {
    %c0 = arith.constant 0 : index
    %c0_0 = arith.constant 0 : index
    %0 = vector.load %arg1[%c0, %c0_0] : memref<136x10xf32, #tpu.memory_space<vmem>>, vector<136x10xf32>
    %c0_1 = arith.constant 0 : index
    %c0_2 = arith.constant 0 : index
    %1 = vector.load %arg2[%c0_1, %c0_2] : memref<10x32xf32, #tpu.memory_space<vmem>>, vector<10x32xf32>
    %2 = arith.truncf %0 : vector<136x10xf32> to vector<136x10xbf16>
    %3 = arith.truncf %1 : vector<10x32xf32> to vector<10x32xbf16>
    %cst = arith.constant dense<0.000000e+00> : vector<136x32xf32>
    %4 = tpu.matmul %2, %3, %cst {dimension_numbers = #tpu.dot_dimension_numbers<[1], [0], [0], [1], [0, 0, 1, 1], [], []>} : vector<136x10xbf16>, vector<10x32xbf16>, vector<136x32xf32> -> vector<136x32xf32>
    %c0_3 = arith.constant 0 : index
    %c0_4 = arith.constant 0 : index
    %5 = vector.load %arg3[%c0_3, %c0_4] : memref<1x32xf32, #tpu.memory_space<vmem>>, vector<1x32xf32>
    %6 = vector.broadcast %5 : vector<1x32xf32> to vector<136x32xf32>
    %7 = arith.addf %4, %6 : vector<136x32xf32>
    %c0_5 = arith.constant 0 : index
    %c0_6 = arith.constant 0 : index
    %8 = vector.load %arg4[%c0_5, %c0_6] : memref<1x32xf32, #tpu.memory_space<vmem>>, vector<1x32xf32>
    %c0_7 = arith.constant 0 : index
    %c0_8 = arith.constant 0 : index
    %9 = vector.load %arg5[%c0_7, %c0_8] : memref<1x32xf32, #tpu.memory_space<vmem>>, vector<1x32xf32>
    %cst_9 = arith.constant dense<0.000000e+00> : vector<136xf32>
    %10 = vector.multi_reduction <add>, %7, %cst_9 [1] : vector<136x32xf32> to vector<136xf32>
    %11 = vector.shape_cast %10 : vector<136xf32> to vector<136x1xf32>
    %cst_10 = arith.constant 3.200000e+01 : f32
    %12 = vector.broadcast %cst_10 : f32 to vector<136x1xf32>
    %13 = arith.divf %11, %12 : vector<136x1xf32>
    %14 = vector.broadcast %13 : vector<136x1xf32> to vector<136x32xf32>
    %15 = arith.subf %7, %14 : vector<136x32xf32>
    %16 = arith.mulf %15, %15 : vector<136x32xf32>
    %cst_11 = arith.constant dense<0.000000e+00> : vector<136xf32>
    %17 = vector.multi_reduction <add>, %16, %cst_11 [1] : vector<136x32xf32> to vector<136xf32>
    %18 = vector.shape_cast %17 : vector<136xf32> to vector<136x1xf32>
    %cst_12 = arith.constant 3.200000e+01 : f32
    %19 = vector.broadcast %cst_12 : f32 to vector<136x1xf32>
    %20 = arith.divf %18, %19 : vector<136x1xf32>
    %21 = vector.broadcast %13 : vector<136x1xf32> to vector<136x32xf32>
    %22 = arith.subf %7, %21 : vector<136x32xf32>
    %cst_13 = arith.constant 9.99999974E-6 : f32
    %23 = vector.broadcast %cst_13 : f32 to vector<136x1xf32>
    %24 = arith.addf %20, %23 : vector<136x1xf32>
    %25 = math.rsqrt %24 : vector<136x1xf32>
    %26 = vector.broadcast %25 : vector<136x1xf32> to vector<136x32xf32>
    %27 = arith.mulf %22, %26 : vector<136x32xf32>
    %28 = vector.broadcast %8 : vector<1x32xf32> to vector<136x32xf32>
    %29 = arith.mulf %27, %28 : vector<136x32xf32>
    %30 = vector.broadcast %9 : vector<1x32xf32> to vector<136x32xf32>
    %31 = arith.addf %29, %30 : vector<136x32xf32>
    %32 = arith.mulf %31, %31 : vector<136x32xf32>
    %33 = arith.mulf %31, %32 : vector<136x32xf32>
    %cst_14 = arith.constant 4.471500e-02 : f32
    %34 = vector.broadcast %cst_14 : f32 to vector<136x32xf32>
    %35 = arith.mulf %34, %33 : vector<136x32xf32>
    %36 = arith.addf %31, %35 : vector<136x32xf32>
    %cst_15 = arith.constant 0.797884583 : f32
    %37 = vector.broadcast %cst_15 : f32 to vector<136x32xf32>
    %38 = arith.mulf %37, %36 : vector<136x32xf32>
    %39 = math.tanh %38 : vector<136x32xf32>
    %cst_16 = arith.constant 1.000000e+00 : f32
    %40 = vector.broadcast %cst_16 : f32 to vector<136x32xf32>
    %41 = arith.addf %40, %39 : vector<136x32xf32>
    %cst_17 = arith.constant 5.000000e-01 : f32
    %42 = vector.broadcast %cst_17 : f32 to vector<136x32xf32>
    %43 = arith.mulf %42, %41 : vector<136x32xf32>
    %44 = arith.mulf %31, %43 : vector<136x32xf32>
    %c0_18 = arith.constant 0 : index
    %c0_19 = arith.constant 0 : index
    %45 = vector.load %arg6[%c0_18, %c0_19] : memref<136x32xf32, #tpu.memory_space<vmem>>, vector<136x32xf32>
    tpu.vector_store %arg6[%c0_18, %c0_19], %44 {strides = array<i32>} : memref<136x32xf32, #tpu.memory_space<vmem>>, vector<136x32xf32>,
    return
  }
  func.func @transform_0(%arg0: i32) -> (i32, i32) {
    %c0_i32 = arith.constant 0 : i32
    %c0_i32_0 = arith.constant 0 : i32
    return %arg0, %c0_i32 : i32, i32
  }
  func.func @transform_1(%arg0: i32) -> (i32, i32) {
    %c0_i32 = arith.constant 0 : i32
    %c0_i32_0 = arith.constant 0 : i32
    %c0_i32_1 = arith.constant 0 : i32
    return %c0_i32, %c0_i32_0 : i32, i32
  }
  func.func @transform_2(%arg0: i32) -> (i32, i32) {
    %c0_i32 = arith.constant 0 : i32
    %c0_i32_0 = arith.constant 0 : i32
    %c0_i32_1 = arith.constant 0 : i32
    return %c0_i32, %c0_i32_0 : i32, i32
  }
  func.func @transform_3(%arg0: i32) -> (i32, i32) {
    %c0_i32 = arith.constant 0 : i32
    %c0_i32_0 = arith.constant 0 : i32
    %c0_i32_1 = arith.constant 0 : i32
    return %c0_i32, %c0_i32_0 : i32, i32
  }
  func.func @transform_4(%arg0: i32) -> (i32, i32) {
    %c0_i32 = arith.constant 0 : i32
    %c0_i32_0 = arith.constant 0 : i32
    %c0_i32_1 = arith.constant 0 : i32
    return %c0_i32, %c0_i32_0 : i32, i32
  }
  func.func @transform_5(%arg0: i32) -> (i32, i32) {
    %c0_i32 = arith.constant 0 : i32
    %c0_i32_0 = arith.constant 0 : i32
    return %arg0, %c0_i32 : i32, i32
  }
}

module attributes {stable_mosaic.version = 11 : i64} {
  func.func @_conv_ln_gelu_kernel(%arg0: i32, %arg1: memref<64x96xf32, #tpu.memory_space<vmem>>, %arg2: memref<96x32xf32, #tpu.memory_space<vmem>>, %arg3: memref<1x32xf32, #tpu.memory_space<vmem>>, %arg4: memref<1x32xf32, #tpu.memory_space<vmem>>, %arg5: memref<1x32xf32, #tpu.memory_space<vmem>>, %arg6: memref<64x32xf32, #tpu.memory_space<vmem>>) attributes {dimension_semantics = [#tpu.dimension_semantics<parallel>], iteration_bounds = array<i64: 1>, scalar_prefetch = 0 : i64, scratch_operands = 0 : i64, tpu.core_type = #tpu.core_type<tc>, window_params = [{transform_indices = @transform_0, window_bounds = array<i64: 64, 96>}, {pipeline_mode = #tpu.pipeline_mode<synchronous>, transform_indices = @transform_1, window_bounds = array<i64: 96, 32>}, {pipeline_mode = #tpu.pipeline_mode<synchronous>, transform_indices = @transform_2, window_bounds = array<i64: 1, 32>}, {pipeline_mode = #tpu.pipeline_mode<synchronous>, transform_indices = @transform_3, window_bounds = array<i64: 1, 32>}, {pipeline_mode = #tpu.pipeline_mode<synchronous>, transform_indices = @transform_4, window_bounds = array<i64: 1, 32>}, {transform_indices = @transform_5, window_bounds = array<i64: 64, 32>}]} {
    %c0 = arith.constant 0 : index
    %c0_0 = arith.constant 0 : index
    %0 = vector.load %arg1[%c0, %c0_0] : memref<64x96xf32, #tpu.memory_space<vmem>>, vector<64x96xf32>
    %c0_1 = arith.constant 0 : index
    %c0_2 = arith.constant 0 : index
    %1 = vector.load %arg2[%c0_1, %c0_2] : memref<96x32xf32, #tpu.memory_space<vmem>>, vector<96x32xf32>
    %2 = arith.truncf %0 : vector<64x96xf32> to vector<64x96xbf16>
    %3 = arith.truncf %1 : vector<96x32xf32> to vector<96x32xbf16>
    %cst = arith.constant dense<0.000000e+00> : vector<64x32xf32>
    %4 = tpu.matmul %2, %3, %cst {dimension_numbers = #tpu.dot_dimension_numbers<[1], [0], [0], [1], [0, 0, 1, 1], [], []>} : vector<64x96xbf16>, vector<96x32xbf16>, vector<64x32xf32> -> vector<64x32xf32>
    %c0_3 = arith.constant 0 : index
    %c0_4 = arith.constant 0 : index
    %5 = vector.load %arg3[%c0_3, %c0_4] : memref<1x32xf32, #tpu.memory_space<vmem>>, vector<1x32xf32>
    %6 = vector.broadcast %5 : vector<1x32xf32> to vector<64x32xf32>
    %7 = arith.addf %4, %6 : vector<64x32xf32>
    %c0_5 = arith.constant 0 : index
    %c0_6 = arith.constant 0 : index
    %8 = vector.load %arg4[%c0_5, %c0_6] : memref<1x32xf32, #tpu.memory_space<vmem>>, vector<1x32xf32>
    %c0_7 = arith.constant 0 : index
    %c0_8 = arith.constant 0 : index
    %9 = vector.load %arg5[%c0_7, %c0_8] : memref<1x32xf32, #tpu.memory_space<vmem>>, vector<1x32xf32>
    %cst_9 = arith.constant dense<0.000000e+00> : vector<64xf32>
    %10 = vector.multi_reduction <add>, %7, %cst_9 [1] : vector<64x32xf32> to vector<64xf32>
    %11 = vector.shape_cast %10 : vector<64xf32> to vector<64x1xf32>
    %cst_10 = arith.constant 3.200000e+01 : f32
    %12 = vector.broadcast %cst_10 : f32 to vector<64x1xf32>
    %13 = arith.divf %11, %12 : vector<64x1xf32>
    %14 = vector.broadcast %13 : vector<64x1xf32> to vector<64x32xf32>
    %15 = arith.subf %7, %14 : vector<64x32xf32>
    %16 = arith.mulf %15, %15 : vector<64x32xf32>
    %cst_11 = arith.constant dense<0.000000e+00> : vector<64xf32>
    %17 = vector.multi_reduction <add>, %16, %cst_11 [1] : vector<64x32xf32> to vector<64xf32>
    %18 = vector.shape_cast %17 : vector<64xf32> to vector<64x1xf32>
    %cst_12 = arith.constant 3.200000e+01 : f32
    %19 = vector.broadcast %cst_12 : f32 to vector<64x1xf32>
    %20 = arith.divf %18, %19 : vector<64x1xf32>
    %21 = vector.broadcast %13 : vector<64x1xf32> to vector<64x32xf32>
    %22 = arith.subf %7, %21 : vector<64x32xf32>
    %cst_13 = arith.constant 9.99999974E-6 : f32
    %23 = vector.broadcast %cst_13 : f32 to vector<64x1xf32>
    %24 = arith.addf %20, %23 : vector<64x1xf32>
    %25 = math.rsqrt %24 : vector<64x1xf32>
    %26 = vector.broadcast %25 : vector<64x1xf32> to vector<64x32xf32>
    %27 = arith.mulf %22, %26 : vector<64x32xf32>
    %28 = vector.broadcast %8 : vector<1x32xf32> to vector<64x32xf32>
    %29 = arith.mulf %27, %28 : vector<64x32xf32>
    %30 = vector.broadcast %9 : vector<1x32xf32> to vector<64x32xf32>
    %31 = arith.addf %29, %30 : vector<64x32xf32>
    %32 = arith.mulf %31, %31 : vector<64x32xf32>
    %33 = arith.mulf %31, %32 : vector<64x32xf32>
    %cst_14 = arith.constant 4.471500e-02 : f32
    %34 = vector.broadcast %cst_14 : f32 to vector<64x32xf32>
    %35 = arith.mulf %34, %33 : vector<64x32xf32>
    %36 = arith.addf %31, %35 : vector<64x32xf32>
    %cst_15 = arith.constant 0.797884583 : f32
    %37 = vector.broadcast %cst_15 : f32 to vector<64x32xf32>
    %38 = arith.mulf %37, %36 : vector<64x32xf32>
    %39 = math.tanh %38 : vector<64x32xf32>
    %cst_16 = arith.constant 1.000000e+00 : f32
    %40 = vector.broadcast %cst_16 : f32 to vector<64x32xf32>
    %41 = arith.addf %40, %39 : vector<64x32xf32>
    %cst_17 = arith.constant 5.000000e-01 : f32
    %42 = vector.broadcast %cst_17 : f32 to vector<64x32xf32>
    %43 = arith.mulf %42, %41 : vector<64x32xf32>
    %44 = arith.mulf %31, %43 : vector<64x32xf32>
    %c0_18 = arith.constant 0 : index
    %c0_19 = arith.constant 0 : index
    %45 = vector.load %arg6[%c0_18, %c0_19] : memref<64x32xf32, #tpu.memory_space<vmem>>, vector<64x32xf32>
    tpu.vector_store %arg6[%c0_18, %c0_19], %44 {strides = array<i32>} : memref<64x32xf32, #tpu.memory_space<vmem>>, vector<64x32xf32>,
    return
  }
  func.func @transform_0(%arg0: i32) -> (i32, i32) {
    %c0_i32 = arith.constant 0 : i32
    %c0_i32_0 = arith.constant 0 : i32
    return %arg0, %c0_i32 : i32, i32
  }
  func.func @transform_1(%arg0: i32) -> (i32, i32) {
    %c0_i32 = arith.constant 0 : i32
    %c0_i32_0 = arith.constant 0 : i32
    %c0_i32_1 = arith.constant 0 : i32
    return %c0_i32, %c0_i32_0 : i32, i32
  }
  func.func @transform_2(%arg0: i32) -> (i32, i32) {
    %c0_i32 = arith.constant 0 : i32
    %c0_i32_0 = arith.constant 0 : i32
    %c0_i32_1 = arith.constant 0 : i32
    return %c0_i32, %c0_i32_0 : i32, i32
  }
  func.func @transform_3(%arg0: i32) -> (i32, i32) {
    %c0_i32 = arith.constant 0 : i32
    %c0_i32_0 = arith.constant 0 : i32
    %c0_i32_1 = arith.constant 0 : i32
    return %c0_i32, %c0_i32_0 : i32, i32
  }
  func.func @transform_4(%arg0: i32) -> (i32, i32) {
    %c0_i32 = arith.constant 0 : i32
    %c0_i32_0 = arith.constant 0 : i32
    %c0_i32_1 = arith.constant 0 : i32
    return %c0_i32, %c0_i32_0 : i32, i32
  }
  func.func @transform_5(%arg0: i32) -> (i32, i32) {
    %c0_i32 = arith.constant 0 : i32
    %c0_i32_0 = arith.constant 0 : i32
    return %arg0, %c0_i32 : i32, i32
  }
}

module attributes {stable_mosaic.version = 11 : i64} {
  func.func @_conv_ln_gelu_kernel(%arg0: i32, %arg1: memref<32x64xf32, #tpu.memory_space<vmem>>, %arg2: memref<64x32xf32, #tpu.memory_space<vmem>>, %arg3: memref<1x32xf32, #tpu.memory_space<vmem>>, %arg4: memref<1x32xf32, #tpu.memory_space<vmem>>, %arg5: memref<1x32xf32, #tpu.memory_space<vmem>>, %arg6: memref<32x32xf32, #tpu.memory_space<vmem>>) attributes {dimension_semantics = [#tpu.dimension_semantics<parallel>], iteration_bounds = array<i64: 1>, scalar_prefetch = 0 : i64, scratch_operands = 0 : i64, tpu.core_type = #tpu.core_type<tc>, window_params = [{transform_indices = @transform_0, window_bounds = array<i64: 32, 64>}, {pipeline_mode = #tpu.pipeline_mode<synchronous>, transform_indices = @transform_1, window_bounds = array<i64: 64, 32>}, {pipeline_mode = #tpu.pipeline_mode<synchronous>, transform_indices = @transform_2, window_bounds = array<i64: 1, 32>}, {pipeline_mode = #tpu.pipeline_mode<synchronous>, transform_indices = @transform_3, window_bounds = array<i64: 1, 32>}, {pipeline_mode = #tpu.pipeline_mode<synchronous>, transform_indices = @transform_4, window_bounds = array<i64: 1, 32>}, {transform_indices = @transform_5, window_bounds = array<i64: 32, 32>}]} {
    %c0 = arith.constant 0 : index
    %c0_0 = arith.constant 0 : index
    %0 = vector.load %arg1[%c0, %c0_0] : memref<32x64xf32, #tpu.memory_space<vmem>>, vector<32x64xf32>
    %c0_1 = arith.constant 0 : index
    %c0_2 = arith.constant 0 : index
    %1 = vector.load %arg2[%c0_1, %c0_2] : memref<64x32xf32, #tpu.memory_space<vmem>>, vector<64x32xf32>
    %2 = arith.truncf %0 : vector<32x64xf32> to vector<32x64xbf16>
    %3 = arith.truncf %1 : vector<64x32xf32> to vector<64x32xbf16>
    %cst = arith.constant dense<0.000000e+00> : vector<32x32xf32>
    %4 = tpu.matmul %2, %3, %cst {dimension_numbers = #tpu.dot_dimension_numbers<[1], [0], [0], [1], [0, 0, 1, 1], [], []>} : vector<32x64xbf16>, vector<64x32xbf16>, vector<32x32xf32> -> vector<32x32xf32>
    %c0_3 = arith.constant 0 : index
    %c0_4 = arith.constant 0 : index
    %5 = vector.load %arg3[%c0_3, %c0_4] : memref<1x32xf32, #tpu.memory_space<vmem>>, vector<1x32xf32>
    %6 = vector.broadcast %5 : vector<1x32xf32> to vector<32x32xf32>
    %7 = arith.addf %4, %6 : vector<32x32xf32>
    %c0_5 = arith.constant 0 : index
    %c0_6 = arith.constant 0 : index
    %8 = vector.load %arg4[%c0_5, %c0_6] : memref<1x32xf32, #tpu.memory_space<vmem>>, vector<1x32xf32>
    %c0_7 = arith.constant 0 : index
    %c0_8 = arith.constant 0 : index
    %9 = vector.load %arg5[%c0_7, %c0_8] : memref<1x32xf32, #tpu.memory_space<vmem>>, vector<1x32xf32>
    %cst_9 = arith.constant dense<0.000000e+00> : vector<32xf32>
    %10 = vector.multi_reduction <add>, %7, %cst_9 [1] : vector<32x32xf32> to vector<32xf32>
    %11 = vector.shape_cast %10 : vector<32xf32> to vector<32x1xf32>
    %cst_10 = arith.constant 3.200000e+01 : f32
    %12 = vector.broadcast %cst_10 : f32 to vector<32x1xf32>
    %13 = arith.divf %11, %12 : vector<32x1xf32>
    %14 = vector.broadcast %13 : vector<32x1xf32> to vector<32x32xf32>
    %15 = arith.subf %7, %14 : vector<32x32xf32>
    %16 = arith.mulf %15, %15 : vector<32x32xf32>
    %cst_11 = arith.constant dense<0.000000e+00> : vector<32xf32>
    %17 = vector.multi_reduction <add>, %16, %cst_11 [1] : vector<32x32xf32> to vector<32xf32>
    %18 = vector.shape_cast %17 : vector<32xf32> to vector<32x1xf32>
    %cst_12 = arith.constant 3.200000e+01 : f32
    %19 = vector.broadcast %cst_12 : f32 to vector<32x1xf32>
    %20 = arith.divf %18, %19 : vector<32x1xf32>
    %21 = vector.broadcast %13 : vector<32x1xf32> to vector<32x32xf32>
    %22 = arith.subf %7, %21 : vector<32x32xf32>
    %cst_13 = arith.constant 9.99999974E-6 : f32
    %23 = vector.broadcast %cst_13 : f32 to vector<32x1xf32>
    %24 = arith.addf %20, %23 : vector<32x1xf32>
    %25 = math.rsqrt %24 : vector<32x1xf32>
    %26 = vector.broadcast %25 : vector<32x1xf32> to vector<32x32xf32>
    %27 = arith.mulf %22, %26 : vector<32x32xf32>
    %28 = vector.broadcast %8 : vector<1x32xf32> to vector<32x32xf32>
    %29 = arith.mulf %27, %28 : vector<32x32xf32>
    %30 = vector.broadcast %9 : vector<1x32xf32> to vector<32x32xf32>
    %31 = arith.addf %29, %30 : vector<32x32xf32>
    %32 = arith.mulf %31, %31 : vector<32x32xf32>
    %33 = arith.mulf %31, %32 : vector<32x32xf32>
    %cst_14 = arith.constant 4.471500e-02 : f32
    %34 = vector.broadcast %cst_14 : f32 to vector<32x32xf32>
    %35 = arith.mulf %34, %33 : vector<32x32xf32>
    %36 = arith.addf %31, %35 : vector<32x32xf32>
    %cst_15 = arith.constant 0.797884583 : f32
    %37 = vector.broadcast %cst_15 : f32 to vector<32x32xf32>
    %38 = arith.mulf %37, %36 : vector<32x32xf32>
    %39 = math.tanh %38 : vector<32x32xf32>
    %cst_16 = arith.constant 1.000000e+00 : f32
    %40 = vector.broadcast %cst_16 : f32 to vector<32x32xf32>
    %41 = arith.addf %40, %39 : vector<32x32xf32>
    %cst_17 = arith.constant 5.000000e-01 : f32
    %42 = vector.broadcast %cst_17 : f32 to vector<32x32xf32>
    %43 = arith.mulf %42, %41 : vector<32x32xf32>
    %44 = arith.mulf %31, %43 : vector<32x32xf32>
    %c0_18 = arith.constant 0 : index
    %c0_19 = arith.constant 0 : index
    %45 = vector.load %arg6[%c0_18, %c0_19] : memref<32x32xf32, #tpu.memory_space<vmem>>, vector<32x32xf32>
    tpu.vector_store %arg6[%c0_18, %c0_19], %44 {strides = array<i32>} : memref<32x32xf32, #tpu.memory_space<vmem>>, vector<32x32xf32>,
    return
  }
  func.func @transform_0(%arg0: i32) -> (i32, i32) {
    %c0_i32 = arith.constant 0 : i32
    %c0_i32_0 = arith.constant 0 : i32
    return %arg0, %c0_i32 : i32, i32
  }
  func.func @transform_1(%arg0: i32) -> (i32, i32) {
    %c0_i32 = arith.constant 0 : i32
    %c0_i32_0 = arith.constant 0 : i32
    %c0_i32_1 = arith.constant 0 : i32
    return %c0_i32, %c0_i32_0 : i32, i32
  }
  func.func @transform_2(%arg0: i32) -> (i32, i32) {
    %c0_i32 = arith.constant 0 : i32
    %c0_i32_0 = arith.constant 0 : i32
    %c0_i32_1 = arith.constant 0 : i32
    return %c0_i32, %c0_i32_0 : i32, i32
  }
  func.func @transform_3(%arg0: i32) -> (i32, i32) {
    %c0_i32 = arith.constant 0 : i32
    %c0_i32_0 = arith.constant 0 : i32
    %c0_i32_1 = arith.constant 0 : i32
    return %c0_i32, %c0_i32_0 : i32, i32
  }
  func.func @transform_4(%arg0: i32) -> (i32, i32) {
    %c0_i32 = arith.constant 0 : i32
    %c0_i32_0 = arith.constant 0 : i32
    %c0_i32_1 = arith.constant 0 : i32
    return %c0_i32, %c0_i32_0 : i32, i32
  }
  func.func @transform_5(%arg0: i32) -> (i32, i32) {
    %c0_i32 = arith.constant 0 : i32
    %c0_i32_0 = arith.constant 0 : i32
    return %arg0, %c0_i32 : i32, i32
  }
}

module attributes {stable_mosaic.version = 11 : i64} {
  func.func @_ln_linear_kernel(%arg0: i32, %arg1: memref<32x32xf32, #tpu.memory_space<vmem>>, %arg2: memref<1x32xf32, #tpu.memory_space<vmem>>, %arg3: memref<1x32xf32, #tpu.memory_space<vmem>>, %arg4: memref<32x64xf32, #tpu.memory_space<vmem>>, %arg5: memref<1x64xf32, #tpu.memory_space<vmem>>, %arg6: memref<32x64xf32, #tpu.memory_space<vmem>>) attributes {dimension_semantics = [#tpu.dimension_semantics<parallel>], iteration_bounds = array<i64: 1>, scalar_prefetch = 0 : i64, scratch_operands = 0 : i64, tpu.core_type = #tpu.core_type<tc>, window_params = [{transform_indices = @transform_0, window_bounds = array<i64: 32, 32>}, {pipeline_mode = #tpu.pipeline_mode<synchronous>, transform_indices = @transform_1, window_bounds = array<i64: 1, 32>}, {pipeline_mode = #tpu.pipeline_mode<synchronous>, transform_indices = @transform_2, window_bounds = array<i64: 1, 32>}, {pipeline_mode = #tpu.pipeline_mode<synchronous>, transform_indices = @transform_3, window_bounds = array<i64: 32, 64>}, {pipeline_mode = #tpu.pipeline_mode<synchronous>, transform_indices = @transform_4, window_bounds = array<i64: 1, 64>}, {transform_indices = @transform_5, window_bounds = array<i64: 32, 64>}]} {
    %c0 = arith.constant 0 : index
    %c0_0 = arith.constant 0 : index
    %0 = vector.load %arg1[%c0, %c0_0] : memref<32x32xf32, #tpu.memory_space<vmem>>, vector<32x32xf32>
    %c0_1 = arith.constant 0 : index
    %c0_2 = arith.constant 0 : index
    %1 = vector.load %arg2[%c0_1, %c0_2] : memref<1x32xf32, #tpu.memory_space<vmem>>, vector<1x32xf32>
    %c0_3 = arith.constant 0 : index
    %c0_4 = arith.constant 0 : index
    %2 = vector.load %arg3[%c0_3, %c0_4] : memref<1x32xf32, #tpu.memory_space<vmem>>, vector<1x32xf32>
    %cst = arith.constant dense<0.000000e+00> : vector<32xf32>
    %3 = vector.multi_reduction <add>, %0, %cst [1] : vector<32x32xf32> to vector<32xf32>
    %4 = vector.shape_cast %3 : vector<32xf32> to vector<32x1xf32>
    %cst_5 = arith.constant 3.200000e+01 : f32
    %5 = vector.broadcast %cst_5 : f32 to vector<32x1xf32>
    %6 = arith.divf %4, %5 : vector<32x1xf32>
    %7 = vector.broadcast %6 : vector<32x1xf32> to vector<32x32xf32>
    %8 = arith.subf %0, %7 : vector<32x32xf32>
    %9 = arith.mulf %8, %8 : vector<32x32xf32>
    %cst_6 = arith.constant dense<0.000000e+00> : vector<32xf32>
    %10 = vector.multi_reduction <add>, %9, %cst_6 [1] : vector<32x32xf32> to vector<32xf32>
    %11 = vector.shape_cast %10 : vector<32xf32> to vector<32x1xf32>
    %cst_7 = arith.constant 3.200000e+01 : f32
    %12 = vector.broadcast %cst_7 : f32 to vector<32x1xf32>
    %13 = arith.divf %11, %12 : vector<32x1xf32>
    %14 = vector.broadcast %6 : vector<32x1xf32> to vector<32x32xf32>
    %15 = arith.subf %0, %14 : vector<32x32xf32>
    %cst_8 = arith.constant 9.99999974E-6 : f32
    %16 = vector.broadcast %cst_8 : f32 to vector<32x1xf32>
    %17 = arith.addf %13, %16 : vector<32x1xf32>
    %18 = math.rsqrt %17 : vector<32x1xf32>
    %19 = vector.broadcast %18 : vector<32x1xf32> to vector<32x32xf32>
    %20 = arith.mulf %15, %19 : vector<32x32xf32>
    %21 = vector.broadcast %1 : vector<1x32xf32> to vector<32x32xf32>
    %22 = arith.mulf %20, %21 : vector<32x32xf32>
    %23 = vector.broadcast %2 : vector<1x32xf32> to vector<32x32xf32>
    %24 = arith.addf %22, %23 : vector<32x32xf32>
    %c0_9 = arith.constant 0 : index
    %c0_10 = arith.constant 0 : index
    %25 = vector.load %arg4[%c0_9, %c0_10] : memref<32x64xf32, #tpu.memory_space<vmem>>, vector<32x64xf32>
    %26 = arith.truncf %24 : vector<32x32xf32> to vector<32x32xbf16>
    %27 = arith.truncf %25 : vector<32x64xf32> to vector<32x64xbf16>
    %cst_11 = arith.constant dense<0.000000e+00> : vector<32x64xf32>
    %28 = tpu.matmul %26, %27, %cst_11 {dimension_numbers = #tpu.dot_dimension_numbers<[1], [0], [0], [1], [0, 0, 1, 1], [], []>} : vector<32x32xbf16>, vector<32x64xbf16>, vector<32x64xf32> -> vector<32x64xf32>
    %c0_12 = arith.constant 0 : index
    %c0_13 = arith.constant 0 : index
    %29 = vector.load %arg5[%c0_12, %c0_13] : memref<1x64xf32, #tpu.memory_space<vmem>>, vector<1x64xf32>
    %30 = vector.broadcast %29 : vector<1x64xf32> to vector<32x64xf32>
    %31 = arith.addf %28, %30 : vector<32x64xf32>
    %c0_14 = arith.constant 0 : index
    %c0_15 = arith.constant 0 : index
    %32 = vector.load %arg6[%c0_14, %c0_15] : memref<32x64xf32, #tpu.memory_space<vmem>>, vector<32x64xf32>
    tpu.vector_store %arg6[%c0_14, %c0_15], %31 {strides = array<i32>} : memref<32x64xf32, #tpu.memory_space<vmem>>, vector<32x64xf32>,
    return
  }
  func.func @transform_0(%arg0: i32) -> (i32, i32) {
    %c0_i32 = arith.constant 0 : i32
    %c0_i32_0 = arith.constant 0 : i32
    return %arg0, %c0_i32 : i32, i32
  }
  func.func @transform_1(%arg0: i32) -> (i32, i32) {
    %c0_i32 = arith.constant 0 : i32
    %c0_i32_0 = arith.constant 0 : i32
    %c0_i32_1 = arith.constant 0 : i32
    return %c0_i32, %c0_i32_0 : i32, i32
  }
  func.func @transform_2(%arg0: i32) -> (i32, i32) {
    %c0_i32 = arith.constant 0 : i32
    %c0_i32_0 = arith.constant 0 : i32
    %c0_i32_1 = arith.constant 0 : i32
    return %c0_i32, %c0_i32_0 : i32, i32
  }
  func.func @transform_3(%arg0: i32) -> (i32, i32) {
    %c0_i32 = arith.constant 0 : i32
    %c0_i32_0 = arith.constant 0 : i32
    %c0_i32_1 = arith.constant 0 : i32
    return %c0_i32, %c0_i32_0 : i32, i32
  }
  func.func @transform_4(%arg0: i32) -> (i32, i32) {
    %c0_i32 = arith.constant 0 : i32
    %c0_i32_0 = arith.constant 0 : i32
    %c0_i32_1 = arith.constant 0 : i32
    return %c0_i32, %c0_i32_0 : i32, i32
  }
  func.func @transform_5(%arg0: i32) -> (i32, i32) {
    %c0_i32 = arith.constant 0 : i32
    %c0_i32_0 = arith.constant 0 : i32
    return %arg0, %c0_i32 : i32, i32
  }
}

module attributes {stable_mosaic.version = 11 : i64} {
  func.func @_linear_kernel(%arg0: i32, %arg1: memref<40x512xf32, #tpu.memory_space<vmem>>, %arg2: memref<512x64xf32, #tpu.memory_space<vmem>>, %arg3: memref<1x64xf32, #tpu.memory_space<vmem>>, %arg4: memref<40x64xf32, #tpu.memory_space<vmem>>) attributes {dimension_semantics = [#tpu.dimension_semantics<parallel>], iteration_bounds = array<i64: 1>, scalar_prefetch = 0 : i64, scratch_operands = 0 : i64, tpu.core_type = #tpu.core_type<tc>, window_params = [{transform_indices = @transform_0, window_bounds = array<i64: 40, 512>}, {pipeline_mode = #tpu.pipeline_mode<synchronous>, transform_indices = @transform_1, window_bounds = array<i64: 512, 64>}, {pipeline_mode = #tpu.pipeline_mode<synchronous>, transform_indices = @transform_2, window_bounds = array<i64: 1, 64>}, {transform_indices = @transform_3, window_bounds = array<i64: 40, 64>}]} {
    %c0 = arith.constant 0 : index
    %c0_0 = arith.constant 0 : index
    %0 = vector.load %arg1[%c0, %c0_0] : memref<40x512xf32, #tpu.memory_space<vmem>>, vector<40x512xf32>
    %c0_1 = arith.constant 0 : index
    %c0_2 = arith.constant 0 : index
    %1 = vector.load %arg2[%c0_1, %c0_2] : memref<512x64xf32, #tpu.memory_space<vmem>>, vector<512x64xf32>
    %2 = arith.truncf %0 : vector<40x512xf32> to vector<40x512xbf16>
    %3 = arith.truncf %1 : vector<512x64xf32> to vector<512x64xbf16>
    %cst = arith.constant dense<0.000000e+00> : vector<40x64xf32>
    %4 = tpu.matmul %2, %3, %cst {dimension_numbers = #tpu.dot_dimension_numbers<[1], [0], [0], [1], [0, 0, 1, 1], [], []>} : vector<40x512xbf16>, vector<512x64xbf16>, vector<40x64xf32> -> vector<40x64xf32>
    %c0_3 = arith.constant 0 : index
    %c0_4 = arith.constant 0 : index
    %5 = vector.load %arg3[%c0_3, %c0_4] : memref<1x64xf32, #tpu.memory_space<vmem>>, vector<1x64xf32>
    %6 = vector.broadcast %5 : vector<1x64xf32> to vector<40x64xf32>
    %7 = arith.addf %4, %6 : vector<40x64xf32>
    %8 = arith.mulf %7, %7 : vector<40x64xf32>
    %9 = arith.mulf %7, %8 : vector<40x64xf32>
    %cst_5 = arith.constant 4.471500e-02 : f32
    %10 = vector.broadcast %cst_5 : f32 to vector<40x64xf32>
    %11 = arith.mulf %10, %9 : vector<40x64xf32>
    %12 = arith.addf %7, %11 : vector<40x64xf32>
    %cst_6 = arith.constant 0.797884583 : f32
    %13 = vector.broadcast %cst_6 : f32 to vector<40x64xf32>
    %14 = arith.mulf %13, %12 : vector<40x64xf32>
    %15 = math.tanh %14 : vector<40x64xf32>
    %cst_7 = arith.constant 1.000000e+00 : f32
    %16 = vector.broadcast %cst_7 : f32 to vector<40x64xf32>
    %17 = arith.addf %16, %15 : vector<40x64xf32>
    %cst_8 = arith.constant 5.000000e-01 : f32
    %18 = vector.broadcast %cst_8 : f32 to vector<40x64xf32>
    %19 = arith.mulf %18, %17 : vector<40x64xf32>
    %20 = arith.mulf %7, %19 : vector<40x64xf32>
    %c0_9 = arith.constant 0 : index
    %c0_10 = arith.constant 0 : index
    %21 = vector.load %arg4[%c0_9, %c0_10] : memref<40x64xf32, #tpu.memory_space<vmem>>, vector<40x64xf32>
    tpu.vector_store %arg4[%c0_9, %c0_10], %20 {strides = array<i32>} : memref<40x64xf32, #tpu.memory_space<vmem>>, vector<40x64xf32>,
    return
  }
  func.func @transform_0(%arg0: i32) -> (i32, i32) {
    %c0_i32 = arith.constant 0 : i32
    %c0_i32_0 = arith.constant 0 : i32
    return %arg0, %c0_i32 : i32, i32
  }
  func.func @transform_1(%arg0: i32) -> (i32, i32) {
    %c0_i32 = arith.constant 0 : i32
    %c0_i32_0 = arith.constant 0 : i32
    %c0_i32_1 = arith.constant 0 : i32
    return %c0_i32, %c0_i32_0 : i32, i32
  }
  func.func @transform_2(%arg0: i32) -> (i32, i32) {
    %c0_i32 = arith.constant 0 : i32
    %c0_i32_0 = arith.constant 0 : i32
    %c0_i32_1 = arith.constant 0 : i32
    return %c0_i32, %c0_i32_0 : i32, i32
  }
  func.func @transform_3(%arg0: i32) -> (i32, i32) {
    %c0_i32 = arith.constant 0 : i32
    %c0_i32_0 = arith.constant 0 : i32
    return %arg0, %c0_i32 : i32, i32
  }
}

module attributes {stable_mosaic.version = 11 : i64} {
  func.func @_encoder_layer_kernel(%arg0: i32, %arg1: memref<1x16x64xf32, #tpu.memory_space<vmem>>, %arg2: memref<1x64xf32, #tpu.memory_space<vmem>>, %arg3: memref<1x64xf32, #tpu.memory_space<vmem>>, %arg4: memref<64x192xf32, #tpu.memory_space<vmem>>, %arg5: memref<1x192xf32, #tpu.memory_space<vmem>>, %arg6: memref<64x64xf32, #tpu.memory_space<vmem>>, %arg7: memref<1x64xf32, #tpu.memory_space<vmem>>, %arg8: memref<1x64xf32, #tpu.memory_space<vmem>>, %arg9: memref<1x64xf32, #tpu.memory_space<vmem>>, %arg10: memref<64x128xf32, #tpu.memory_space<vmem>>, %arg11: memref<1x128xf32, #tpu.memory_space<vmem>>, %arg12: memref<128x64xf32, #tpu.memory_space<vmem>>, %arg13: memref<1x64xf32, #tpu.memory_space<vmem>>, %arg14: memref<1x16x64xf32, #tpu.memory_space<vmem>>) attributes {dimension_semantics = [#tpu.dimension_semantics<parallel>], iteration_bounds = array<i64: 2>, scalar_prefetch = 0 : i64, scratch_operands = 0 : i64, tpu.core_type = #tpu.core_type<tc>, window_params = [{transform_indices = @transform_0, window_bounds = array<i64: 1, 16, 64>}, {pipeline_mode = #tpu.pipeline_mode<synchronous>, transform_indices = @transform_1, window_bounds = array<i64: 1, 64>}, {pipeline_mode = #tpu.pipeline_mode<synchronous>, transform_indices = @transform_2, window_bounds = array<i64: 1, 64>}, {pipeline_mode = #tpu.pipeline_mode<synchronous>, transform_indices = @transform_3, window_bounds = array<i64: 64, 192>}, {pipeline_mode = #tpu.pipeline_mode<synchronous>, transform_indices = @transform_4, window_bounds = array<i64: 1, 192>}, {pipeline_mode = #tpu.pipeline_mode<synchronous>, transform_indices = @transform_5, window_bounds = array<i64: 64, 64>}, {pipeline_mode = #tpu.pipeline_mode<synchronous>, transform_indices = @transform_6, window_bounds = array<i64: 1, 64>}, {pipeline_mode = #tpu.pipeline_mode<synchronous>, transform_indices = @transform_7, window_bounds = array<i64: 1, 64>}, {pipeline_mode = #tpu.pipeline_mode<synchronous>, transform_indices = @transform_8, window_bounds = array<i64: 1, 64>}, {pipeline_mode = #tpu.pipeline_mode<synchronous>, transform_indices = @transform_9, window_bounds = array<i64: 64, 128>}, {pipeline_mode = #tpu.pipeline_mode<synchronous>, transform_indices = @transform_10, window_bounds = array<i64: 1, 128>}, {pipeline_mode = #tpu.pipeline_mode<synchronous>, transform_indices = @transform_11, window_bounds = array<i64: 128, 64>}, {pipeline_mode = #tpu.pipeline_mode<synchronous>, transform_indices = @transform_12, window_bounds = array<i64: 1, 64>}, {transform_indices = @transform_13, window_bounds = array<i64: 1, 16, 64>}]} {
    %c0 = arith.constant 0 : index
    %c0_0 = arith.constant 0 : index
    %c0_1 = arith.constant 0 : index
    %0 = vector.load %arg1[%c0, %c0_0, %c0_1] : memref<1x16x64xf32, #tpu.memory_space<vmem>>, vector<1x16x64xf32>
    %1 = vector.shape_cast %0 : vector<1x16x64xf32> to vector<16x64xf32>
    %c0_2 = arith.constant 0 : index
    %c0_3 = arith.constant 0 : index
    %2 = vector.load %arg2[%c0_2, %c0_3] : memref<1x64xf32, #tpu.memory_space<vmem>>, vector<1x64xf32>
    %c0_4 = arith.constant 0 : index
    %c0_5 = arith.constant 0 : index
    %3 = vector.load %arg3[%c0_4, %c0_5] : memref<1x64xf32, #tpu.memory_space<vmem>>, vector<1x64xf32>
    %cst = arith.constant dense<0.000000e+00> : vector<16xf32>
    %4 = vector.multi_reduction <add>, %1, %cst [1] : vector<16x64xf32> to vector<16xf32>
    %5 = vector.shape_cast %4 : vector<16xf32> to vector<16x1xf32>
    %cst_6 = arith.constant 6.400000e+01 : f32
    %6 = vector.broadcast %cst_6 : f32 to vector<16x1xf32>
    %7 = arith.divf %5, %6 : vector<16x1xf32>
    %8 = vector.broadcast %7 : vector<16x1xf32> to vector<16x64xf32>
    %9 = arith.subf %1, %8 : vector<16x64xf32>
    %10 = arith.mulf %9, %9 : vector<16x64xf32>
    %cst_7 = arith.constant dense<0.000000e+00> : vector<16xf32>
    %11 = vector.multi_reduction <add>, %10, %cst_7 [1] : vector<16x64xf32> to vector<16xf32>
    %12 = vector.shape_cast %11 : vector<16xf32> to vector<16x1xf32>
    %cst_8 = arith.constant 6.400000e+01 : f32
    %13 = vector.broadcast %cst_8 : f32 to vector<16x1xf32>
    %14 = arith.divf %12, %13 : vector<16x1xf32>
    %15 = vector.broadcast %7 : vector<16x1xf32> to vector<16x64xf32>
    %16 = arith.subf %1, %15 : vector<16x64xf32>
    %cst_9 = arith.constant 9.99999974E-6 : f32
    %17 = vector.broadcast %cst_9 : f32 to vector<16x1xf32>
    %18 = arith.addf %14, %17 : vector<16x1xf32>
    %19 = math.rsqrt %18 : vector<16x1xf32>
    %20 = vector.broadcast %19 : vector<16x1xf32> to vector<16x64xf32>
    %21 = arith.mulf %16, %20 : vector<16x64xf32>
    %22 = vector.broadcast %2 : vector<1x64xf32> to vector<16x64xf32>
    %23 = arith.mulf %21, %22 : vector<16x64xf32>
    %24 = vector.broadcast %3 : vector<1x64xf32> to vector<16x64xf32>
    %25 = arith.addf %23, %24 : vector<16x64xf32>
    %c0_10 = arith.constant 0 : index
    %c0_11 = arith.constant 0 : index
    %26 = vector.load %arg4[%c0_10, %c0_11] : memref<64x192xf32, #tpu.memory_space<vmem>>, vector<64x192xf32>
    %27 = arith.truncf %25 : vector<16x64xf32> to vector<16x64xbf16>
    %28 = arith.truncf %26 : vector<64x192xf32> to vector<64x192xbf16>
    %cst_12 = arith.constant dense<0.000000e+00> : vector<16x192xf32>
    %29 = tpu.matmul %27, %28, %cst_12 {dimension_numbers = #tpu.dot_dimension_numbers<[1], [0], [0], [1], [0, 0, 1, 1], [], []>} : vector<16x64xbf16>, vector<64x192xbf16>, vector<16x192xf32> -> vector<16x192xf32>
    %c0_13 = arith.constant 0 : index
    %c0_14 = arith.constant 0 : index
    %30 = vector.load %arg5[%c0_13, %c0_14] : memref<1x192xf32, #tpu.memory_space<vmem>>, vector<1x192xf32>
    %31 = vector.broadcast %30 : vector<1x192xf32> to vector<16x192xf32>
    %32 = arith.addf %29, %31 : vector<16x192xf32>
    %33 = vector.extract_strided_slice %32 {offsets = [0, 0], sizes = [16, 64], strides = [1, 1]} : vector<16x192xf32> to vector<16x64xf32>
    %cst_15 = arith.constant 2.500000e-01 : f32
    %34 = vector.broadcast %cst_15 : f32 to vector<16x64xf32>
    %35 = arith.mulf %33, %34 : vector<16x64xf32>
    %36 = arith.truncf %35 : vector<16x64xf32> to vector<16x64xbf16>
    %37 = vector.extract_strided_slice %32 {offsets = [0, 64], sizes = [16, 64], strides = [1, 1]} : vector<16x192xf32> to vector<16x64xf32>
    %38 = arith.truncf %37 : vector<16x64xf32> to vector<16x64xbf16>
    %39 = vector.extract_strided_slice %32 {offsets = [0, 128], sizes = [16, 64], strides = [1, 1]} : vector<16x192xf32> to vector<16x64xf32>
    %40 = arith.truncf %39 : vector<16x64xf32> to vector<16x64xbf16>
    %41 = vector.extract_strided_slice %36 {offsets = [0, 0], sizes = [16, 16], strides = [1, 1]} : vector<16x64xbf16> to vector<16x16xbf16>
    %42 = vector.extract_strided_slice %38 {offsets = [0, 0], sizes = [16, 16], strides = [1, 1]} : vector<16x64xbf16> to vector<16x16xbf16>
    %cst_16 = arith.constant dense<0.000000e+00> : vector<16x16xf32>
    %43 = tpu.matmul %41, %42, %cst_16 {dimension_numbers = #tpu.dot_dimension_numbers<[1], [1], [0], [0], [0, 0, 1, 0], [], []>} : vector<16x16xbf16>, vector<16x16xbf16>, vector<16x16xf32> -> vector<16x16xf32>
    %cst_17 = arith.constant dense<0xFF800000> : vector<16xf32>
    %44 = vector.multi_reduction <maximumf>, %43, %cst_17 [1] : vector<16x16xf32> to vector<16xf32>
    %45 = vector.shape_cast %44 : vector<16xf32> to vector<16x1xf32>
    %46 = vector.broadcast %45 : vector<16x1xf32> to vector<16x16xf32>
    %47 = arith.subf %43, %46 : vector<16x16xf32>
    %48 = math.exp %47 : vector<16x16xf32>
    %cst_18 = arith.constant dense<0.000000e+00> : vector<16xf32>
    %49 = vector.multi_reduction <add>, %48, %cst_18 [1] : vector<16x16xf32> to vector<16xf32>
    %50 = vector.shape_cast %49 : vector<16xf32> to vector<16x1xf32>
    %51 = tpu.reciprocal %50 {approx = true} : vector<16x1xf32> -> vector<16x1xf32>
    %52 = vector.broadcast %51 : vector<16x1xf32> to vector<16x16xf32>
    %53 = arith.mulf %48, %52 : vector<16x16xf32>
    %54 = arith.truncf %53 : vector<16x16xf32> to vector<16x16xbf16>
    %55 = vector.extract_strided_slice %40 {offsets = [0, 0], sizes = [16, 16], strides = [1, 1]} : vector<16x64xbf16> to vector<16x16xbf16>
    %cst_19 = arith.constant dense<0.000000e+00> : vector<16x16xf32>
    %56 = tpu.matmul %54, %55, %cst_19 {dimension_numbers = #tpu.dot_dimension_numbers<[1], [0], [0], [1], [0, 0, 1, 1], [], []>} : vector<16x16xbf16>, vector<16x16xbf16>, vector<16x16xf32> -> vector<16x16xf32>
    %57 = vector.extract_strided_slice %36 {offsets = [0, 16], sizes = [16, 16], strides = [1, 1]} : vector<16x64xbf16> to vector<16x16xbf16>
    %58 = vector.extract_strided_slice %38 {offsets = [0, 16], sizes = [16, 16], strides = [1, 1]} : vector<16x64xbf16> to vector<16x16xbf16>
    %cst_20 = arith.constant dense<0.000000e+00> : vector<16x16xf32>
    %59 = tpu.matmul %57, %58, %cst_20 {dimension_numbers = #tpu.dot_dimension_numbers<[1], [1], [0], [0], [0, 0, 1, 0], [], []>} : vector<16x16xbf16>, vector<16x16xbf16>, vector<16x16xf32> -> vector<16x16xf32>
    %cst_21 = arith.constant dense<0xFF800000> : vector<16xf32>
    %60 = vector.multi_reduction <maximumf>, %59, %cst_21 [1] : vector<16x16xf32> to vector<16xf32>
    %61 = vector.shape_cast %60 : vector<16xf32> to vector<16x1xf32>
    %62 = vector.broadcast %61 : vector<16x1xf32> to vector<16x16xf32>
    %63 = arith.subf %59, %62 : vector<16x16xf32>
    %64 = math.exp %63 : vector<16x16xf32>
    %cst_22 = arith.constant dense<0.000000e+00> : vector<16xf32>
    %65 = vector.multi_reduction <add>, %64, %cst_22 [1] : vector<16x16xf32> to vector<16xf32>
    %66 = vector.shape_cast %65 : vector<16xf32> to vector<16x1xf32>
    %67 = tpu.reciprocal %66 {approx = true} : vector<16x1xf32> -> vector<16x1xf32>
    %68 = vector.broadcast %67 : vector<16x1xf32> to vector<16x16xf32>
    %69 = arith.mulf %64, %68 : vector<16x16xf32>
    %70 = arith.truncf %69 : vector<16x16xf32> to vector<16x16xbf16>
    %71 = vector.extract_strided_slice %40 {offsets = [0, 16], sizes = [16, 16], strides = [1, 1]} : vector<16x64xbf16> to vector<16x16xbf16>
    %cst_23 = arith.constant dense<0.000000e+00> : vector<16x16xf32>
    %72 = tpu.matmul %70, %71, %cst_23 {dimension_numbers = #tpu.dot_dimension_numbers<[1], [0], [0], [1], [0, 0, 1, 1], [], []>} : vector<16x16xbf16>, vector<16x16xbf16>, vector<16x16xf32> -> vector<16x16xf32>
    %73 = vector.extract_strided_slice %36 {offsets = [0, 32], sizes = [16, 16], strides = [1, 1]} : vector<16x64xbf16> to vector<16x16xbf16>
    %74 = vector.extract_strided_slice %38 {offsets = [0, 32], sizes = [16, 16], strides = [1, 1]} : vector<16x64xbf16> to vector<16x16xbf16>
    %cst_24 = arith.constant dense<0.000000e+00> : vector<16x16xf32>
    %75 = tpu.matmul %73, %74, %cst_24 {dimension_numbers = #tpu.dot_dimension_numbers<[1], [1], [0], [0], [0, 0, 1, 0], [], []>} : vector<16x16xbf16>, vector<16x16xbf16>, vector<16x16xf32> -> vector<16x16xf32>
    %cst_25 = arith.constant dense<0xFF800000> : vector<16xf32>
    %76 = vector.multi_reduction <maximumf>, %75, %cst_25 [1] : vector<16x16xf32> to vector<16xf32>
    %77 = vector.shape_cast %76 : vector<16xf32> to vector<16x1xf32>
    %78 = vector.broadcast %77 : vector<16x1xf32> to vector<16x16xf32>
    %79 = arith.subf %75, %78 : vector<16x16xf32>
    %80 = math.exp %79 : vector<16x16xf32>
    %cst_26 = arith.constant dense<0.000000e+00> : vector<16xf32>
    %81 = vector.multi_reduction <add>, %80, %cst_26 [1] : vector<16x16xf32> to vector<16xf32>
    %82 = vector.shape_cast %81 : vector<16xf32> to vector<16x1xf32>
    %83 = tpu.reciprocal %82 {approx = true} : vector<16x1xf32> -> vector<16x1xf32>
    %84 = vector.broadcast %83 : vector<16x1xf32> to vector<16x16xf32>
    %85 = arith.mulf %80, %84 : vector<16x16xf32>
    %86 = arith.truncf %85 : vector<16x16xf32> to vector<16x16xbf16>
    %87 = vector.extract_strided_slice %40 {offsets = [0, 32], sizes = [16, 16], strides = [1, 1]} : vector<16x64xbf16> to vector<16x16xbf16>
    %cst_27 = arith.constant dense<0.000000e+00> : vector<16x16xf32>
    %88 = tpu.matmul %86, %87, %cst_27 {dimension_numbers = #tpu.dot_dimension_numbers<[1], [0], [0], [1], [0, 0, 1, 1], [], []>} : vector<16x16xbf16>, vector<16x16xbf16>, vector<16x16xf32> -> vector<16x16xf32>
    %89 = vector.extract_strided_slice %36 {offsets = [0, 48], sizes = [16, 16], strides = [1, 1]} : vector<16x64xbf16> to vector<16x16xbf16>
    %90 = vector.extract_strided_slice %38 {offsets = [0, 48], sizes = [16, 16], strides = [1, 1]} : vector<16x64xbf16> to vector<16x16xbf16>
    %cst_28 = arith.constant dense<0.000000e+00> : vector<16x16xf32>
    %91 = tpu.matmul %89, %90, %cst_28 {dimension_numbers = #tpu.dot_dimension_numbers<[1], [1], [0], [0], [0, 0, 1, 0], [], []>} : vector<16x16xbf16>, vector<16x16xbf16>, vector<16x16xf32> -> vector<16x16xf32>
    %cst_29 = arith.constant dense<0xFF800000> : vector<16xf32>
    %92 = vector.multi_reduction <maximumf>, %91, %cst_29 [1] : vector<16x16xf32> to vector<16xf32>
    %93 = vector.shape_cast %92 : vector<16xf32> to vector<16x1xf32>
    %94 = vector.broadcast %93 : vector<16x1xf32> to vector<16x16xf32>
    %95 = arith.subf %91, %94 : vector<16x16xf32>
    %96 = math.exp %95 : vector<16x16xf32>
    %cst_30 = arith.constant dense<0.000000e+00> : vector<16xf32>
    %97 = vector.multi_reduction <add>, %96, %cst_30 [1] : vector<16x16xf32> to vector<16xf32>
    %98 = vector.shape_cast %97 : vector<16xf32> to vector<16x1xf32>
    %99 = tpu.reciprocal %98 {approx = true} : vector<16x1xf32> -> vector<16x1xf32>
    %100 = vector.broadcast %99 : vector<16x1xf32> to vector<16x16xf32>
    %101 = arith.mulf %96, %100 : vector<16x16xf32>
    %102 = arith.truncf %101 : vector<16x16xf32> to vector<16x16xbf16>
    %103 = vector.extract_strided_slice %40 {offsets = [0, 48], sizes = [16, 16], strides = [1, 1]} : vector<16x64xbf16> to vector<16x16xbf16>
    %cst_31 = arith.constant dense<0.000000e+00> : vector<16x16xf32>
    %104 = tpu.matmul %102, %103, %cst_31 {dimension_numbers = #tpu.dot_dimension_numbers<[1], [0], [0], [1], [0, 0, 1, 1], [], []>} : vector<16x16xbf16>, vector<16x16xbf16>, vector<16x16xf32> -> vector<16x16xf32>
    %105 = tpu.concatenate %56, %72, %88, %104 in 1 : vector<16x16xf32>, vector<16x16xf32>, vector<16x16xf32>, vector<16x16xf32> -> vector<16x64xf32>
    %c0_32 = arith.constant 0 : index
    %c0_33 = arith.constant 0 : index
    %106 = vector.load %arg6[%c0_32, %c0_33] : memref<64x64xf32, #tpu.memory_space<vmem>>, vector<64x64xf32>
    %107 = arith.truncf %105 : vector<16x64xf32> to vector<16x64xbf16>
    %108 = arith.truncf %106 : vector<64x64xf32> to vector<64x64xbf16>
    %cst_34 = arith.constant dense<0.000000e+00> : vector<16x64xf32>
    %109 = tpu.matmul %107, %108, %cst_34 {dimension_numbers = #tpu.dot_dimension_numbers<[1], [0], [0], [1], [0, 0, 1, 1], [], []>} : vector<16x64xbf16>, vector<64x64xbf16>, vector<16x64xf32> -> vector<16x64xf32>
    %110 = arith.addf %1, %109 : vector<16x64xf32>
    %c0_35 = arith.constant 0 : index
    %c0_36 = arith.constant 0 : index
    %111 = vector.load %arg7[%c0_35, %c0_36] : memref<1x64xf32, #tpu.memory_space<vmem>>, vector<1x64xf32>
    %112 = vector.broadcast %111 : vector<1x64xf32> to vector<16x64xf32>
    %113 = arith.addf %110, %112 : vector<16x64xf32>
    %c0_37 = arith.constant 0 : index
    %c0_38 = arith.constant 0 : index
    %114 = vector.load %arg8[%c0_37, %c0_38] : memref<1x64xf32, #tpu.memory_space<vmem>>, vector<1x64xf32>
    %c0_39 = arith.constant 0 : index
    %c0_40 = arith.constant 0 : index
    %115 = vector.load %arg9[%c0_39, %c0_40] : memref<1x64xf32, #tpu.memory_space<vmem>>, vector<1x64xf32>
    %cst_41 = arith.constant dense<0.000000e+00> : vector<16xf32>
    %116 = vector.multi_reduction <add>, %113, %cst_41 [1] : vector<16x64xf32> to vector<16xf32>
    %117 = vector.shape_cast %116 : vector<16xf32> to vector<16x1xf32>
    %cst_42 = arith.constant 6.400000e+01 : f32
    %118 = vector.broadcast %cst_42 : f32 to vector<16x1xf32>
    %119 = arith.divf %117, %118 : vector<16x1xf32>
    %120 = vector.broadcast %119 : vector<16x1xf32> to vector<16x64xf32>
    %121 = arith.subf %113, %120 : vector<16x64xf32>
    %122 = arith.mulf %121, %121 : vector<16x64xf32>
    %cst_43 = arith.constant dense<0.000000e+00> : vector<16xf32>
    %123 = vector.multi_reduction <add>, %122, %cst_43 [1] : vector<16x64xf32> to vector<16xf32>
    %124 = vector.shape_cast %123 : vector<16xf32> to vector<16x1xf32>
    %cst_44 = arith.constant 6.400000e+01 : f32
    %125 = vector.broadcast %cst_44 : f32 to vector<16x1xf32>
    %126 = arith.divf %124, %125 : vector<16x1xf32>
    %127 = vector.broadcast %119 : vector<16x1xf32> to vector<16x64xf32>
    %128 = arith.subf %113, %127 : vector<16x64xf32>
    %cst_45 = arith.constant 9.99999974E-6 : f32
    %129 = vector.broadcast %cst_45 : f32 to vector<16x1xf32>
    %130 = arith.addf %126, %129 : vector<16x1xf32>
    %131 = math.rsqrt %130 : vector<16x1xf32>
    %132 = vector.broadcast %131 : vector<16x1xf32> to vector<16x64xf32>
    %133 = arith.mulf %128, %132 : vector<16x64xf32>
    %134 = vector.broadcast %114 : vector<1x64xf32> to vector<16x64xf32>
    %135 = arith.mulf %133, %134 : vector<16x64xf32>
    %136 = vector.broadcast %115 : vector<1x64xf32> to vector<16x64xf32>
    %137 = arith.addf %135, %136 : vector<16x64xf32>
    %c0_46 = arith.constant 0 : index
    %c0_47 = arith.constant 0 : index
    %138 = vector.load %arg10[%c0_46, %c0_47] : memref<64x128xf32, #tpu.memory_space<vmem>>, vector<64x128xf32>
    %139 = arith.truncf %137 : vector<16x64xf32> to vector<16x64xbf16>
    %140 = arith.truncf %138 : vector<64x128xf32> to vector<64x128xbf16>
    %cst_48 = arith.constant dense<0.000000e+00> : vector<16x128xf32>
    %141 = tpu.matmul %139, %140, %cst_48 {dimension_numbers = #tpu.dot_dimension_numbers<[1], [0], [0], [1], [0, 0, 1, 1], [], []>} : vector<16x64xbf16>, vector<64x128xbf16>, vector<16x128xf32> -> vector<16x128xf32>
    %c0_49 = arith.constant 0 : index
    %c0_50 = arith.constant 0 : index
    %142 = vector.load %arg11[%c0_49, %c0_50] : memref<1x128xf32, #tpu.memory_space<vmem>>, vector<1x128xf32>
    %143 = vector.broadcast %142 : vector<1x128xf32> to vector<16x128xf32>
    %144 = arith.addf %141, %143 : vector<16x128xf32>
    %145 = arith.mulf %144, %144 : vector<16x128xf32>
    %146 = arith.mulf %144, %145 : vector<16x128xf32>
    %cst_51 = arith.constant 4.471500e-02 : f32
    %147 = vector.broadcast %cst_51 : f32 to vector<16x128xf32>
    %148 = arith.mulf %147, %146 : vector<16x128xf32>
    %149 = arith.addf %144, %148 : vector<16x128xf32>
    %cst_52 = arith.constant 0.797884583 : f32
    %150 = vector.broadcast %cst_52 : f32 to vector<16x128xf32>
    %151 = arith.mulf %150, %149 : vector<16x128xf32>
    %152 = math.tanh %151 : vector<16x128xf32>
    %cst_53 = arith.constant 1.000000e+00 : f32
    %153 = vector.broadcast %cst_53 : f32 to vector<16x128xf32>
    %154 = arith.addf %153, %152 : vector<16x128xf32>
    %cst_54 = arith.constant 5.000000e-01 : f32
    %155 = vector.broadcast %cst_54 : f32 to vector<16x128xf32>
    %156 = arith.mulf %155, %154 : vector<16x128xf32>
    %157 = arith.mulf %144, %156 : vector<16x128xf32>
    %c0_55 = arith.constant 0 : index
    %c0_56 = arith.constant 0 : index
    %158 = vector.load %arg12[%c0_55, %c0_56] : memref<128x64xf32, #tpu.memory_space<vmem>>, vector<128x64xf32>
    %159 = arith.truncf %157 : vector<16x128xf32> to vector<16x128xbf16>
    %160 = arith.truncf %158 : vector<128x64xf32> to vector<128x64xbf16>
    %cst_57 = arith.constant dense<0.000000e+00> : vector<16x64xf32>
    %161 = tpu.matmul %159, %160, %cst_57 {dimension_numbers = #tpu.dot_dimension_numbers<[1], [0], [0], [1], [0, 0, 1, 1], [], []>} : vector<16x128xbf16>, vector<128x64xbf16>, vector<16x64xf32> -> vector<16x64xf32>
    %162 = arith.addf %113, %161 : vector<16x64xf32>
    %c0_58 = arith.constant 0 : index
    %c0_59 = arith.constant 0 : index
    %163 = vector.load %arg13[%c0_58, %c0_59] : memref<1x64xf32, #tpu.memory_space<vmem>>, vector<1x64xf32>
    %164 = vector.broadcast %163 : vector<1x64xf32> to vector<16x64xf32>
    %165 = arith.addf %162, %164 : vector<16x64xf32>
    %c0_60 = arith.constant 0 : index
    %c0_61 = arith.constant 0 : index
    %c0_62 = arith.constant 0 : index
    %166 = vector.load %arg14[%c0_60, %c0_61, %c0_62] : memref<1x16x64xf32, #tpu.memory_space<vmem>>, vector<1x16x64xf32>
    %167 = vector.shape_cast %166 : vector<1x16x64xf32> to vector<16x64xf32>
    %168 = vector.shape_cast %165 : vector<16x64xf32> to vector<1x16x64xf32>
    tpu.vector_store %arg14[%c0_60, %c0_61, %c0_62], %168 {strides = array<i32>} : memref<1x16x64xf32, #tpu.memory_space<vmem>>, vector<1x16x64xf32>,
    return
  }
  func.func @transform_0(%arg0: i32) -> (i32, i32, i32) {
    %c0_i32 = arith.constant 0 : i32
    %c0_i32_0 = arith.constant 0 : i32
    %c0_i32_1 = arith.constant 0 : i32
    return %arg0, %c0_i32, %c0_i32_0 : i32, i32, i32
  }
  func.func @transform_1(%arg0: i32) -> (i32, i32) {
    %c0_i32 = arith.constant 0 : i32
    %c0_i32_0 = arith.constant 0 : i32
    %c0_i32_1 = arith.constant 0 : i32
    return %c0_i32, %c0_i32_0 : i32, i32
  }
  func.func @transform_2(%arg0: i32) -> (i32, i32) {
    %c0_i32 = arith.constant 0 : i32
    %c0_i32_0 = arith.constant 0 : i32
    %c0_i32_1 = arith.constant 0 : i32
    return %c0_i32, %c0_i32_0 : i32, i32
  }
  func.func @transform_3(%arg0: i32) -> (i32, i32) {
    %c0_i32 = arith.constant 0 : i32
    %c0_i32_0 = arith.constant 0 : i32
    %c0_i32_1 = arith.constant 0 : i32
    return %c0_i32, %c0_i32_0 : i32, i32
  }
  func.func @transform_4(%arg0: i32) -> (i32, i32) {
    %c0_i32 = arith.constant 0 : i32
    %c0_i32_0 = arith.constant 0 : i32
    %c0_i32_1 = arith.constant 0 : i32
    return %c0_i32, %c0_i32_0 : i32, i32
  }
  func.func @transform_5(%arg0: i32) -> (i32, i32) {
    %c0_i32 = arith.constant 0 : i32
    %c0_i32_0 = arith.constant 0 : i32
    %c0_i32_1 = arith.constant 0 : i32
    return %c0_i32, %c0_i32_0 : i32, i32
  }
  func.func @transform_6(%arg0: i32) -> (i32, i32) {
    %c0_i32 = arith.constant 0 : i32
    %c0_i32_0 = arith.constant 0 : i32
    %c0_i32_1 = arith.constant 0 : i32
    return %c0_i32, %c0_i32_0 : i32, i32
  }
  func.func @transform_7(%arg0: i32) -> (i32, i32) {
    %c0_i32 = arith.constant 0 : i32
    %c0_i32_0 = arith.constant 0 : i32
    %c0_i32_1 = arith.constant 0 : i32
    return %c0_i32, %c0_i32_0 : i32, i32
  }
  func.func @transform_8(%arg0: i32) -> (i32, i32) {
    %c0_i32 = arith.constant 0 : i32
    %c0_i32_0 = arith.constant 0 : i32
    %c0_i32_1 = arith.constant 0 : i32
    return %c0_i32, %c0_i32_0 : i32, i32
  }
  func.func @transform_9(%arg0: i32) -> (i32, i32) {
    %c0_i32 = arith.constant 0 : i32
    %c0_i32_0 = arith.constant 0 : i32
    %c0_i32_1 = arith.constant 0 : i32
    return %c0_i32, %c0_i32_0 : i32, i32
  }
  func.func @transform_10(%arg0: i32) -> (i32, i32) {
    %c0_i32 = arith.constant 0 : i32
    %c0_i32_0 = arith.constant 0 : i32
    %c0_i32_1 = arith.constant 0 : i32
    return %c0_i32, %c0_i32_0 : i32, i32
  }
  func.func @transform_11(%arg0: i32) -> (i32, i32) {
    %c0_i32 = arith.constant 0 : i32
    %c0_i32_0 = arith.constant 0 : i32
    %c0_i32_1 = arith.constant 0 : i32
    return %c0_i32, %c0_i32_0 : i32, i32
  }
  func.func @transform_12(%arg0: i32) -> (i32, i32) {
    %c0_i32 = arith.constant 0 : i32
    %c0_i32_0 = arith.constant 0 : i32
    %c0_i32_1 = arith.constant 0 : i32
    return %c0_i32, %c0_i32_0 : i32, i32
  }
  func.func @transform_13(%arg0: i32) -> (i32, i32, i32) {
    %c0_i32 = arith.constant 0 : i32
    %c0_i32_0 = arith.constant 0 : i32
    %c0_i32_1 = arith.constant 0 : i32
    return %arg0, %c0_i32, %c0_i32_0 : i32, i32, i32
  }
}

module attributes {stable_mosaic.version = 11 : i64} {
  func.func @_layernorm_kernel(%arg0: i32, %arg1: memref<32x64xf32, #tpu.memory_space<vmem>>, %arg2: memref<1x64xf32, #tpu.memory_space<vmem>>, %arg3: memref<1x64xf32, #tpu.memory_space<vmem>>, %arg4: memref<32x64xf32, #tpu.memory_space<vmem>>) attributes {dimension_semantics = [#tpu.dimension_semantics<parallel>], iteration_bounds = array<i64: 1>, scalar_prefetch = 0 : i64, scratch_operands = 0 : i64, tpu.core_type = #tpu.core_type<tc>, window_params = [{transform_indices = @transform_0, window_bounds = array<i64: 32, 64>}, {pipeline_mode = #tpu.pipeline_mode<synchronous>, transform_indices = @transform_1, window_bounds = array<i64: 1, 64>}, {pipeline_mode = #tpu.pipeline_mode<synchronous>, transform_indices = @transform_2, window_bounds = array<i64: 1, 64>}, {transform_indices = @transform_3, window_bounds = array<i64: 32, 64>}]} {
    %c0 = arith.constant 0 : index
    %c0_0 = arith.constant 0 : index
    %0 = vector.load %arg1[%c0, %c0_0] : memref<32x64xf32, #tpu.memory_space<vmem>>, vector<32x64xf32>
    %c0_1 = arith.constant 0 : index
    %c0_2 = arith.constant 0 : index
    %1 = vector.load %arg2[%c0_1, %c0_2] : memref<1x64xf32, #tpu.memory_space<vmem>>, vector<1x64xf32>
    %c0_3 = arith.constant 0 : index
    %c0_4 = arith.constant 0 : index
    %2 = vector.load %arg3[%c0_3, %c0_4] : memref<1x64xf32, #tpu.memory_space<vmem>>, vector<1x64xf32>
    %cst = arith.constant dense<0.000000e+00> : vector<32xf32>
    %3 = vector.multi_reduction <add>, %0, %cst [1] : vector<32x64xf32> to vector<32xf32>
    %4 = vector.shape_cast %3 : vector<32xf32> to vector<32x1xf32>
    %cst_5 = arith.constant 6.400000e+01 : f32
    %5 = vector.broadcast %cst_5 : f32 to vector<32x1xf32>
    %6 = arith.divf %4, %5 : vector<32x1xf32>
    %7 = vector.broadcast %6 : vector<32x1xf32> to vector<32x64xf32>
    %8 = arith.subf %0, %7 : vector<32x64xf32>
    %9 = arith.mulf %8, %8 : vector<32x64xf32>
    %cst_6 = arith.constant dense<0.000000e+00> : vector<32xf32>
    %10 = vector.multi_reduction <add>, %9, %cst_6 [1] : vector<32x64xf32> to vector<32xf32>
    %11 = vector.shape_cast %10 : vector<32xf32> to vector<32x1xf32>
    %cst_7 = arith.constant 6.400000e+01 : f32
    %12 = vector.broadcast %cst_7 : f32 to vector<32x1xf32>
    %13 = arith.divf %11, %12 : vector<32x1xf32>
    %14 = vector.broadcast %6 : vector<32x1xf32> to vector<32x64xf32>
    %15 = arith.subf %0, %14 : vector<32x64xf32>
    %cst_8 = arith.constant 9.99999974E-6 : f32
    %16 = vector.broadcast %cst_8 : f32 to vector<32x1xf32>
    %17 = arith.addf %13, %16 : vector<32x1xf32>
    %18 = math.rsqrt %17 : vector<32x1xf32>
    %19 = vector.broadcast %18 : vector<32x1xf32> to vector<32x64xf32>
    %20 = arith.mulf %15, %19 : vector<32x64xf32>
    %21 = vector.broadcast %1 : vector<1x64xf32> to vector<32x64xf32>
    %22 = arith.mulf %20, %21 : vector<32x64xf32>
    %23 = vector.broadcast %2 : vector<1x64xf32> to vector<32x64xf32>
    %24 = arith.addf %22, %23 : vector<32x64xf32>
    %c0_9 = arith.constant 0 : index
    %c0_10 = arith.constant 0 : index
    %25 = vector.load %arg4[%c0_9, %c0_10] : memref<32x64xf32, #tpu.memory_space<vmem>>, vector<32x64xf32>
    tpu.vector_store %arg4[%c0_9, %c0_10], %24 {strides = array<i32>} : memref<32x64xf32, #tpu.memory_space<vmem>>, vector<32x64xf32>,
    return
  }
  func.func @transform_0(%arg0: i32) -> (i32, i32) {
    %c0_i32 = arith.constant 0 : i32
    %c0_i32_0 = arith.constant 0 : i32
    return %arg0, %c0_i32 : i32, i32
  }
  func.func @transform_1(%arg0: i32) -> (i32, i32) {
    %c0_i32 = arith.constant 0 : i32
    %c0_i32_0 = arith.constant 0 : i32
    %c0_i32_1 = arith.constant 0 : i32
    return %c0_i32, %c0_i32_0 : i32, i32
  }
  func.func @transform_2(%arg0: i32) -> (i32, i32) {
    %c0_i32 = arith.constant 0 : i32
    %c0_i32_0 = arith.constant 0 : i32
    %c0_i32_1 = arith.constant 0 : i32
    return %c0_i32, %c0_i32_0 : i32, i32
  }
  func.func @transform_3(%arg0: i32) -> (i32, i32) {
    %c0_i32 = arith.constant 0 : i32
    %c0_i32_0 = arith.constant 0 : i32
    return %arg0, %c0_i32 : i32, i32
  }
}

</mosaic_0001>

<llo_original>
// kernel: hubert_forward.8
$region0: #{hubert_forward.8}
  #allocation0 [shape = 'u32[]', space=smem, size = 0x4, offset = 0x4, fixed_abs, tag = 'smem constant byte address 0x4 - core index']
  #allocation1 [shape = 'u32[72,128]{1,0:T(1,128)}', space=vmem, size = 0x9000, scoped, tag = 'internal scratch']
  %s0 = inlined_call_operand.vmem [shape: f32[136,10], index: 0, kind: input, shape index: {}]
  %s1 = inlined_call_operand.vmem [shape: f32[10,32], index: 1, kind: input, shape index: {}]
  %s2 = inlined_call_operand.vmem [shape: f32[1,32], index: 2, kind: input, shape index: {}]
  %s3 = inlined_call_operand.vmem [shape: f32[1,32], index: 3, kind: input, shape index: {}]
  %s4 = inlined_call_operand.vmem [shape: f32[1,32], index: 4, kind: input, shape index: {}]
  %s5 = inlined_call_operand.vmem [shape: f32[136,32], index: 5, kind: output, shape index: {}]
  %s6 = sld [smem:[#allocation0]]
  $region30: #{hubert_forward.8} parent=0
    _
  %s8 = ssub.s32 1, %s6
  %s9 = scalar_select 0, %s8, %s6
  // Predicated region
  $region2: #{hubert_forward.8} parent=0 // pred_check
    _
  $region3: #{hubert_forward.8} parent=0 // pred_check_branch
    %11 = sbr.rel (0) target = $region5
  $region4: #{hubert_forward.8} parent=0 // pred_region
    _
  $region5: #{hubert_forward.8} parent=0 // pred_fallthru
    _
  // Predicated region
  $region6: #{hubert_forward.8} parent=0 // pred_check
    _
  $region7: #{hubert_forward.8} parent=0 // pred_check_branch
    %13 = sbr.rel (0) target = $region9
  $region8: #{hubert_forward.8} parent=0 // pred_region
    _
  $region9: #{hubert_forward.8} parent=0 // pred_fallthru
    _
  // Predicated region
  $region10: #{hubert_forward.8} parent=0 // pred_check
    _
  $region11: #{hubert_forward.8} parent=0 // pred_check_branch
    %15 = sbr.rel (0) target = $region13
  $region12: #{hubert_forward.8} parent=0 // pred_region
    _
  $region13: #{hubert_forward.8} parent=0 // pred_fallthru
    _
  // Predicated region
  $region14: #{hubert_forward.8} parent=0 // pred_check
    _
  $region15: #{hubert_forward.8} parent=0 // pred_check_branch
    %17 = sbr.rel (0) target = $region17
  $region16: #{hubert_forward.8} parent=0 // pred_region
    _
  $region17: #{hubert_forward.8} parent=0 // pred_fallthru
    _
  // Predicated region
  $region18: #{hubert_forward.8} parent=0 // pred_check
    _
  $region19: #{hubert_forward.8} parent=0 // pred_check_branch
    %19 = sbr.rel (0) target = $region21
  $region20: #{hubert_forward.8} parent=0 // pred_region
    _
  $region21: #{hubert_forward.8} parent=0 // pred_fallthru
    _
  %v21 = vld [vmem:[%s0] sm:$0xff]
  %v22 = vld [vmem:[%s0 + $0x8] sm:$0xff]
  %v23 = vld [vmem:[%s0 + $0x10] sm:$0xff]
  %v24 = vld [vmem:[%s0 + $0x18] sm:$0xff]
  %v25 = vld [vmem:[%s0 + $0x20] sm:$0xff]
  %v26 = vld [vmem:[%s0 + $0x28] sm:$0xff]
  %v27 = vld [vmem:[%s0 + $0x30] sm:$0xff]
  %v28 = vld [vmem:[%s0 + $0x38] sm:$0xff]
  %v29 = vld [vmem:[%s0 + $0x40] sm:$0xff]
  %v30 = vld [vmem:[%s0 + $0x48] sm:$0xff]
  %v31 = vld [vmem:[%s0 + $0x50] sm:$0xff]
  %v32 = vld [vmem:[%s0 + $0x58] sm:$0xff]
  %v33 = vld [vmem:[%s0 + $0x60] sm:$0xff]
  %v34 = vld [vmem:[%s0 + $0x68] sm:$0xff]
  %v35 = vld [vmem:[%s0 + $0x70] sm:$0xff]
  %v36 = vld [vmem:[%s0 + $0x78] sm:$0xff]
  %v37 = vld [vmem:[%s0 + $0x80] sm:$0xff]
  %v38 = vld [vmem:[%s1] sm:$0xff]
  %v39 = vld [vmem:[%s1 + $0x8] sm:$0x3]
  %v40 = vpack.c.bf16 %v22, %v21
  %v41 = vpack.c.bf16 %v24, %v23
  %v42 = vpack.c.bf16 %v26, %v25
  %v43 = vpack.c.bf16 %v28, %v27
  %v44 = vpack.c.bf16 %v30, %v29
  %v45 = vpack.c.bf16 %v32, %v31
  %v46 = vpack.c.bf16 %v34, %v33
  %v47 = vpack.c.bf16 %v36, %v35
  %v48 = vpack.c.bf16 %v37, %v37
  %v49 = vpack.c.bf16 %v39, %v38
  %v50 = vld [vmem:[%s2] sm:$0x1]
  %v52 = vperm.slane %v50, 0
  %vm54 = vcmask 80896
  %v56 = vsel %vm54, %v40, 0
  %v59 = vsel %vm54, %v41, 0
  %v62 = vsel %vm54, %v42, 0
  %v65 = vsel %vm54, %v43, 0
  %v68 = vsel %vm54, %v44, 0
  %v71 = vsel %vm54, %v45, 0
  %v74 = vsel %vm54, %v46, 0
  %v77 = vsel %vm54, %v47, 0
  %v80 = vsel %vm54, %v48, 0
  %vm82 = vcmask 1044480
  %v84 = vsel %vm82, %v49, 0
  %86 = vmatpush.bf16.msra.mxu0 0
  %87 = vmatpush.bf16.msra.mxu0 0
  %88 = vmatpush.bf16.msra.mxu0 0
  %89 = vmatpush.bf16.msra.mxu0 0
  %90 = vmatpush.bf16.msra.mxu0 0
  %91 = vmatpush.bf16.msra.mxu0 0
  %92 = vmatpush.bf16.msra.mxu0 0
  %93 = vmatpush.bf16.msra.mxu0 %v84
  %94 = vmatmul.bf16.gmra.mxu0 %v56
  %v95 = vpop.f32.mrf.mxu0
  %v96 = vadd.f32 %v52, %v95
  %v97 = vpop.f32.mrf.mxu0
  %v98 = vadd.f32 %v52, %v97
  %99 = vmatmul.bf16.gmra.mxu0 %v59
  %v100 = vpop.f32.mrf.mxu0
  %v101 = vadd.f32 %v52, %v100
  %v102 = vpop.f32.mrf.mxu0
  %v103 = vadd.f32 %v52, %v102
  %104 = vmatmul.bf16.gmra.mxu0 %v62
  %v105 = vpop.f32.mrf.mxu0
  %v106 = vadd.f32 %v52, %v105
  %v107 = vpop.f32.mrf.mxu0
  %v108 = vadd.f32 %v52, %v107
  %109 = vmatmul.bf16.gmra.mxu0 %v65
  %v110 = vpop.f32.mrf.mxu0
  %v111 = vadd.f32 %v52, %v110
  %v112 = vpop.f32.mrf.mxu0
  %v113 = vadd.f32 %v52, %v112
  %114 = vmatmul.bf16.gmra.mxu0 %v68
  %v115 = vpop.f32.mrf.mxu0
  %v116 = vadd.f32 %v52, %v115
  %v117 = vpop.f32.mrf.mxu0
  %v118 = vadd.f32 %v52, %v117
  %119 = vmatmul.bf16.gmra.mxu0 %v71
  %v120 = vpop.f32.mrf.mxu0
  %v121 = vadd.f32 %v52, %v120
  %v122 = vpop.f32.mrf.mxu0
  %v123 = vadd.f32 %v52, %v122
  %124 = vmatmul.bf16.gmra.mxu0 %v74
  %v125 = vpop.f32.mrf.mxu0
  %v126 = vadd.f32 %v52, %v125
  %v127 = vpop.f32.mrf.mxu0
  %v128 = vadd.f32 %v52, %v127
  %129 = vmatmul.bf16.gmra.mxu0 %v77
  %v130 = vpop.f32.mrf.mxu0
  %v131 = vadd.f32 %v52, %v130
  %v132 = vpop.f32.mrf.mxu0
  %v133 = vadd.f32 %v52, %v132
  %134 = vmatmul.bf16.gmra.mxu0 %v80
  %v135 = vpop.f32.mrf.mxu0
  %v136 = vadd.f32 %v52, %v135
  %v137 = vpop.f32.mrf.mxu0
  %138 = vdwg.mxu0
  %v139 = vld [vmem:[%s3] sm:$0x1]
  %v140 = vld [vmem:[%s4] sm:$0x1]
  %vm141 = vcmask 261120
  %v142 = vsel %vm141, %v96, 0.0
  %143 = vadd.xlane.f32.xlu0 %v142
  %v144 = vpop.xlane.xlu0 %143
  %v145 = vsel %vm141, %v98, 0.0
  %146 = vadd.xlane.f32.xlu0 %v145
  %v147 = vpop.xlane.xlu0 %146
  %v148 = vsel %vm141, %v101, 0.0
  %149 = vadd.xlane.f32.xlu0 %v148
  %v150 = vpop.xlane.xlu0 %149
  %v151 = vsel %vm141, %v103, 0.0
  %152 = vadd.xlane.f32.xlu0 %v151
  %v153 = vpop.xlane.xlu0 %152
  %v154 = vsel %vm141, %v106, 0.0
  %155 = vadd.xlane.f32.xlu0 %v154
  %v156 = vpop.xlane.xlu0 %155
  %v157 = vsel %vm141, %v108, 0.0
  %158 = vadd.xlane.f32.xlu0 %v157
  %v159 = vpop.xlane.xlu0 %158
  %v160 = vsel %vm141, %v111, 0.0
  %161 = vadd.xlane.f32.xlu0 %v160
  %v162 = vpop.xlane.xlu0 %161
  %v163 = vsel %vm141, %v113, 0.0
  %164 = vadd.xlane.f32.xlu0 %v163
  %v165 = vpop.xlane.xlu0 %164
  %v166 = vsel %vm141, %v116, 0.0
  %167 = vadd.xlane.f32.xlu0 %v166
  %v168 = vpop.xlane.xlu0 %167
  %v169 = vsel %vm141, %v118, 0.0
  %170 = vadd.xlane.f32.xlu0 %v169
  %v171 = vpop.xlane.xlu0 %170
  %v172 = vsel %vm141, %v121, 0.0
  %173 = vadd.xlane.f32.xlu0 %v172
  %v174 = vpop.xlane.xlu0 %173
  %v175 = vsel %vm141, %v123, 0.0
  %176 = vadd.xlane.f32.xlu0 %v175
  %v177 = vpop.xlane.xlu0 %176
  %v178 = vsel %vm141, %v126, 0.0
  %179 = vadd.xlane.f32.xlu0 %v178
  %v180 = vpop.xlane.xlu0 %179
  %v181 = vsel %vm141, %v128, 0.0
  %182 = vadd.xlane.f32.xlu0 %v181
  %v183 = vpop.xlane.xlu0 %182
  %v184 = vsel %vm141, %v131, 0.0
  %185 = vadd.xlane.f32.xlu0 %v184
  %v186 = vpop.xlane.xlu0 %185
  %v187 = vsel %vm141, %v133, 0.0
  %188 = vadd.xlane.f32.xlu0 %v187
  %v189 = vpop.xlane.xlu0 %188
  %v190 = vsel %vm141, %v136, 0.0
  %191 = vadd.xlane.f32.xlu0 %v190
  %v192 = vpop.xlane.xlu0 %191
  %v193 = vrcp.pop 32.0
  %v194 = vmul.f32 32.0, %v193
  %v195 = vsub.f32 1.0, %v194
  %v196 = vmul.f32 %v193, %v195
  %v197 = vadd.f32 %v193, %v196
  %vm198 = vweird.f32 %v193
  %v199 = vsel %vm198, %v193, %v197
  %v200 = vmul.f32 %v144, %v199
  %v201 = vmul.f32 %v147, %v199
  %v202 = vmul.f32 %v150, %v199
  %v203 = vmul.f32 %v153, %v199
  %v204 = vmul.f32 %v156, %v199
  %v205 = vmul.f32 %v159, %v199
  %v206 = vmul.f32 %v162, %v199
  %v207 = vmul.f32 %v165, %v199
  %v208 = vmul.f32 %v168, %v199
  %v209 = vmul.f32 %v171, %v199
  %v210 = vmul.f32 %v174, %v199
  %v211 = vmul.f32 %v177, %v199
  %v212 = vmul.f32 %v180, %v199
  %v213 = vmul.f32 %v183, %v199
  %v214 = vmul.f32 %v186, %v199
  %v215 = vmul.f32 %v189, %v199
  %v216 = vmul.f32 %v192, %v199
  %v217 = vsub.f32 %v96, %v200
  %v218 = vsub.f32 %v98, %v201
  %v219 = vsub.f32 %v101, %v202
  %v220 = vsub.f32 %v103, %v203
  %v221 = vsub.f32 %v106, %v204
  %v222 = vsub.f32 %v108, %v205
  %v223 = vsub.f32 %v111, %v206
  %v224 = vsub.f32 %v113, %v207
  %v225 = vsub.f32 %v116, %v208
  %v226 = vsub.f32 %v118, %v209
  %v227 = vsub.f32 %v121, %v210
  %v228 = vsub.f32 %v123, %v211
  %v229 = vsub.f32 %v126, %v212
  %v230 = vsub.f32 %v128, %v213
  %v231 = vsub.f32 %v131, %v214
  %v232 = vsub.f32 %v133, %v215
  %v233 = vsub.f32 %v136, %v216
  %v234 = vmul.f32 %v217, %v217
  %v235 = vmul.f32 %v218, %v218
  %v236 = vmul.f32 %v219, %v219
  %v237 = vmul.f32 %v220, %v220
  %v238 = vmul.f32 %v221, %v221
  %v239 = vmul.f32 %v222, %v222
  %v240 = vmul.f32 %v223, %v223
  %v241 = vmul.f32 %v224, %v224
  %v242 = vmul.f32 %v225, %v225
  %v243 = vmul.f32 %v226, %v226
  %v244 = vmul.f32 %v227, %v227
  %v245 = vmul.f32 %v228, %v228
  %v246 = vmul.f32 %v229, %v229
  %v247 = vmul.f32 %v230, %v230
  %v248 = vmul.f32 %v231, %v231
  %v249 = vmul.f32 %v232, %v232
  %v250 = vmul.f32 %v233, %v233
  %v251 = vsel %vm141, %v234, 0.0
  %252 = vadd.xlane.f32.xlu0 %v251
  %v253 = vpop.xlane.xlu0 %252
  %v254 = vsel %vm141, %v235, 0.0
  %255 = vadd.xlane.f32.xlu0 %v254
  %v256 = vpop.xlane.xlu0 %255
  %v257 = vsel %vm141, %v236, 0.0
  %258 = vadd.xlane.f32.xlu0 %v257
  %v259 = vpop.xlane.xlu0 %258
  %v260 = vsel %vm141, %v237, 0.0
  %261 = vadd.xlane.f32.xlu0 %v260
  %v262 = vpop.xlane.xlu0 %261
  %v263 = vsel %vm141, %v238, 0.0
  %264 = vadd.xlane.f32.xlu0 %v263
  %v265 = vpop.xlane.xlu0 %264
  %v266 = vsel %vm141, %v239, 0.0
  %267 = vadd.xlane.f32.xlu0 %v266
  %v268 = vpop.xlane.xlu0 %267
  %v269 = vsel %vm141, %v240, 0.0
  %270 = vadd.xlane.f32.xlu0 %v269
  %v271 = vpop.xlane.xlu0 %270
  %v272 = vsel %vm141, %v241, 0.0
  %273 = vadd.xlane.f32.xlu0 %v272
  %v274 = vpop.xlane.xlu0 %273
  %v275 = vsel %vm141, %v242, 0.0
  %276 = vadd.xlane.f32.xlu0 %v275
  %v277 = vpop.xlane.xlu0 %276
  %v278 = vsel %vm141, %v243, 0.0
  %279 = vadd.xlane.f32.xlu0 %v278
  %v280 = vpop.xlane.xlu0 %279
  %v281 = vsel %vm141, %v244, 0.0
  %282 = vadd.xlane.f32.xlu0 %v281
  %v283 = vpop.xlane.xlu0 %282
  %v284 = vsel %vm141, %v245, 0.0
  %285 = vadd.xlane.f32.xlu0 %v284
  %v286 = vpop.xlane.xlu0 %285
  %v287 = vsel %vm141, %v246, 0.0
  %288 = vadd.xlane.f32.xlu0 %v287
  %v289 = vpop.xlane.xlu0 %288
  %v290 = vsel %vm141, %v247, 0.0
  %291 = vadd.xlane.f32.xlu0 %v290
  %v292 = vpop.xlane.xlu0 %291
  %v293 = vsel %vm141, %v248, 0.0
  %294 = vadd.xlane.f32.xlu0 %v293
  %v295 = vpop.xlane.xlu0 %294
  %v296 = vsel %vm141, %v249, 0.0
  %297 = vadd.xlane.f32.xlu0 %v296
  %v298 = vpop.xlane.xlu0 %297
  %v299 = vsel %vm141, %v250, 0.0
  %300 = vadd.xlane.f32.xlu0 %v299
  %v301 = vpop.xlane.xlu0 %300
  %v302 = vmul.f32 %v253, %v199
  %v303 = vmul.f32 %v256, %v199
  %v304 = vmul.f32 %v259, %v199
  %v305 = vmul.f32 %v262, %v199
  %v306 = vmul.f32 %v265, %v199
  %v307 = vmul.f32 %v268, %v199
  %v308 = vmul.f32 %v271, %v199
  %v309 = vmul.f32 %v274, %v199
  %v310 = vmul.f32 %v277, %v199
  %v311 = vmul.f32 %v280, %v199
  %v312 = vmul.f32 %v283, %v199
  %v313 = vmul.f32 %v286, %v199
  %v314 = vmul.f32 %v289, %v199
  %v315 = vmul.f32 %v292, %v199
  %v316 = vmul.f32 %v295, %v199
  %v317 = vmul.f32 %v298, %v199
  %v318 = vmul.f32 %v301, %v199
  %v319 = vadd.f32 %v302, 1e-05
  %v320 = vadd.f32 %v303, 1e-05
  %v321 = vadd.f32 %v304, 1e-05
  %v322 = vadd.f32 %v305, 1e-05
  %v323 = vadd.f32 %v306, 1e-05
  %v324 = vadd.f32 %v307, 1e-05
  %v325 = vadd.f32 %v308, 1e-05
  %v326 = vadd.f32 %v309, 1e-05
  %v327 = vadd.f32 %v310, 1e-05
  %v328 = vadd.f32 %v311, 1e-05
  %v329 = vadd.f32 %v312, 1e-05
  %v330 = vadd.f32 %v313, 1e-05
  %v331 = vadd.f32 %v314, 1e-05
  %v332 = vadd.f32 %v315, 1e-05
  %v333 = vadd.f32 %v316, 1e-05
  %v334 = vadd.f32 %v317, 1e-05
  %v335 = vadd.f32 %v318, 1e-05
  %v336 = vrsqrt.pop %v319
  %v337 = vmul.f32 %v336, %v319
  %v338 = vmul.f32 %v337, %v336
  %v339 = vmul.f32 0.5, %v338
  %v340 = vsub.f32 1.5, %v339
  %v341 = vmul.f32 %v336, %v340
  %vm342 = vweird.f32 %v319
  %vm343 = vweird.f32 %v336
  %vm344 = vmor %vm342, %vm343
  %v345 = vsel %vm344, %v336, %v341
  %v346 = vrsqrt.pop %v320
  %v347 = vmul.f32 %v346, %v320
  %v348 = vmul.f32 %v347, %v346
  %v349 = vmul.f32 0.5, %v348
  %v350 = vsub.f32 1.5, %v349
  %v351 = vmul.f32 %v346, %v350
  %vm352 = vweird.f32 %v320
  %vm353 = vweird.f32 %v346
  %vm354 = vmor %vm352, %vm353
  %v355 = vsel %vm354, %v346, %v351
  %v356 = vrsqrt.pop %v321
  %v357 = vmul.f32 %v356, %v321
  %v358 = vmul.f32 %v357, %v356
  %v359 = vmul.f32 0.5, %v358
  %v360 = vsub.f32 1.5, %v359
  %v361 = vmul.f32 %v356, %v360
  %vm362 = vweird.f32 %v321
  %vm363 = vweird.f32 %v356
  %vm364 = vmor %vm362, %vm363
  %v365 = vsel %vm364, %v356, %v361
  %v366 = vrsqrt.pop %v322
  %v367 = vmul.f32 %v366, %v322
  %v368 = vmul.f32 %v367, %v366
  %v369 = vmul.f32 0.5, %v368
  %v370 = vsub.f32 1.5, %v369
  %v371 = vmul.f32 %v366, %v370
  %vm372 = vweird.f32 %v322
  %vm373 = vweird.f32 %v366
  %vm374 = vmor %vm372, %vm373
  %v375 = vsel %vm374, %v366, %v371
  %v376 = vrsqrt.pop %v323
  %v377 = vmul.f32 %v376, %v323
  %v378 = vmul.f32 %v377, %v376
  %v379 = vmul.f32 0.5, %v378
  %v380 = vsub.f32 1.5, %v379
  %v381 = vmul.f32 %v376, %v380
  %vm382 = vweird.f32 %v323
  %vm383 = vweird.f32 %v376
  %vm384 = vmor %vm382, %vm383
  %v385 = vsel %vm384, %v376, %v381
  %v386 = vrsqrt.pop %v324
  %v387 = vmul.f32 %v386, %v324
  %v388 = vmul.f32 %v387, %v386
  %v389 = vmul.f32 0.5, %v388
  %v390 = vsub.f32 1.5, %v389
  %v391 = vmul.f32 %v386, %v390
  %vm392 = vweird.f32 %v324
  %vm393 = vweird.f32 %v386
  %vm394 = vmor %vm392, %vm393
  %v395 = vsel %vm394, %v386, %v391
  %v396 = vrsqrt.pop %v325
  %v397 = vmul.f32 %v396, %v325
  %v398 = vmul.f32 %v397, %v396
  %v399 = vmul.f32 0.5, %v398
  %v400 = vsub.f32 1.5, %v399
  %v401 = vmul.f32 %v396, %v400
  %vm402 = vweird.f32 %v325
  %vm403 = vweird.f32 %v396
  %vm404 = vmor %vm402, %vm403
  %v405 = vsel %vm404, %v396, %v401
  %v406 = vrsqrt.pop %v326
  %v407 = vmul.f32 %v406, %v326
  %v408 = vmul.f32 %v407, %v406
  %v409 = vmul.f32 0.5, %v408
  %v410 = vsub.f32 1.5, %v409
  %v411 = vmul.f32 %v406, %v410
  %vm412 = vweird.f32 %v326
  %vm413 = vweird.f32 %v406
  %vm414 = vmor %vm412, %vm413
  %v415 = vsel %vm414, %v406, %v411
  %v416 = vrsqrt.pop %v327
  %v417 = vmul.f32 %v416, %v327
  %v418 = vmul.f32 %v417, %v416
  %v419 = vmul.f32 0.5, %v418
  %v420 = vsub.f32 1.5, %v419
  %v421 = vmul.f32 %v416, %v420
  %vm422 = vweird.f32 %v327
  %vm423 = vweird.f32 %v416
  %vm424 = vmor %vm422, %vm423
  %v425 = vsel %vm424, %v416, %v421
  %v426 = vrsqrt.pop %v328
  %v427 = vmul.f32 %v426, %v328
  %v428 = vmul.f32 %v427, %v426
  %v429 = vmul.f32 0.5, %v428
  %v430 = vsub.f32 1.5, %v429
  %v431 = vmul.f32 %v426, %v430
  %vm432 = vweird.f32 %v328
  %vm433 = vweird.f32 %v426
  %vm434 = vmor %vm432, %vm433
  %v435 = vsel %vm434, %v426, %v431
  %v436 = vrsqrt.pop %v329
  %v437 = vmul.f32 %v436, %v329
  %v438 = vmul.f32 %v437, %v436
  %v439 = vmul.f32 0.5, %v438
  %v440 = vsub.f32 1.5, %v439
  %v441 = vmul.f32 %v436, %v440
  %vm442 = vweird.f32 %v329
  %vm443 = vweird.f32 %v436
  %vm444 = vmor %vm442, %vm443
  %v445 = vsel %vm444, %v436, %v441
  %v446 = vrsqrt.pop %v330
  %v447 = vmul.f32 %v446, %v330
  %v448 = vmul.f32 %v447, %v446
  %v449 = vmul.f32 0.5, %v448
  %v450 = vsub.f32 1.5, %v449
  %v451 = vmul.f32 %v446, %v450
  %vm452 = vweird.f32 %v330
  %vm453 = vweird.f32 %v446
  %vm454 = vmor %vm452, %vm453
  %v455 = vsel %vm454, %v446, %v451
  %v456 = vrsqrt.pop %v331
  %v457 = vmul.f32 %v456, %v331
  %v458 = vmul.f32 %v457, %v456
  %v459 = vmul.f32 0.5, %v458
  %v460 = vsub.f32 1.5, %v459
  %v461 = vmul.f32 %v456, %v460
  %vm462 = vweird.f32 %v331
  %vm463 = vweird.f32 %v456
  %vm464 = vmor %vm462, %vm463
  %v465 = vsel %vm464, %v456, %v461
  %v466 = vrsqrt.pop %v332
  %v467 = vmul.f32 %v466, %v332
  %v468 = vmul.f32 %v467, %v466
  %v469 = vmul.f32 0.5, %v468
  %v470 = vsub.f32 1.5, %v469
  %v471 = vmul.f32 %v466, %v470
  %vm472 = vweird.f32 %v332
  %vm473 = vweird.f32 %v466
  %vm474 = vmor %vm472, %vm473
  %v475 = vsel %vm474, %v466, %v471
  %v476 = vrsqrt.pop %v333
  %v477 = vmul.f32 %v476, %v333
  %v478 = vmul.f32 %v477, %v476
  %v479 = vmul.f32 0.5, %v478
  %v480 = vsub.f32 1.5, %v479
  %v481 = vmul.f32 %v476, %v480
  %vm482 = vweird.f32 %v333
  %vm483 = vweird.f32 %v476
  %vm484 = vmor %vm482, %vm483
  %v485 = vsel %vm484, %v476, %v481
  %v486 = vrsqrt.pop %v334
  %v487 = vmul.f32 %v486, %v334
  %v488 = vmul.f32 %v487, %v486
  %v489 = vmul.f32 0.5, %v488
  %v490 = vsub.f32 1.5, %v489
  %v491 = vmul.f32 %v486, %v490
  %vm492 = vweird.f32 %v334
  %vm493 = vweird.f32 %v486
  %vm494 = vmor %vm492, %vm493
  %v495 = vsel %vm494, %v486, %v491
  %v496 = vrsqrt.pop %v335
  %v497 = vmul.f32 %v496, %v335
  %v498 = vmul.f32 %v497, %v496
  %v499 = vmul.f32 0.5, %v498
  %v500 = vsub.f32 1.5, %v499
  %v501 = vmul.f32 %v496, %v500
  %vm502 = vweird.f32 %v335
  %vm503 = vweird.f32 %v496
  %vm504 = vmor %vm502, %vm503
  %v505 = vsel %vm504, %v496, %v501
  %v506 = vmul.f32 %v217, %v345
  %v507 = vmul.f32 %v218, %v355
  %v508 = vmul.f32 %v219, %v365
  %v509 = vmul.f32 %v220, %v375
  %v510 = vmul.f32 %v221, %v385
  %v511 = vmul.f32 %v222, %v395
  %v512 = vmul.f32 %v223, %v405
  %v513 = vmul.f32 %v224, %v415
  %v514 = vmul.f32 %v225, %v425
  %v515 = vmul.f32 %v226, %v435
  %v516 = vmul.f32 %v227, %v445
  %v517 = vmul.f32 %v228, %v455
  %v518 = vmul.f32 %v229, %v465
  %v519 = vmul.f32 %v230, %v475
  %v520 = vmul.f32 %v231, %v485
  %v521 = vmul.f32 %v232, %v495
  %v522 = vmul.f32 %v233, %v505
  %v524 = vperm.slane %v139, 0
  %v526 = vmul.f32 %v506, %v524
  %v527 = vmul.f32 %v507, %v524
  %v528 = vmul.f32 %v508, %v524
  %v529 = vmul.f32 %v509, %v524
  %v530 = vmul.f32 %v510, %v524
  %v531 = vmul.f32 %v511, %v524
  %v532 = vmul.f32 %v512, %v524
  %v533 = vmul.f32 %v513, %v524
  %v534 = vmul.f32 %v514, %v524
  %v535 = vmul.f32 %v515, %v524
  %v536 = vmul.f32 %v516, %v524
  %v537 = vmul.f32 %v517, %v524
  %v538 = vmul.f32 %v518, %v524
  %v539 = vmul.f32 %v519, %v524
  %v540 = vmul.f32 %v520, %v524
  %v541 = vmul.f32 %v521, %v524
  %v542 = vmul.f32 %v522, %v524
  %v544 = vperm.slane %v140, 0
  %v546 = vadd.f32 %v526, %v544
  %v547 = vadd.f32 %v527, %v544
  %v548 = vadd.f32 %v528, %v544
  %v549 = vadd.f32 %v529, %v544
  %v550 = vadd.f32 %v530, %v544
  %v551 = vadd.f32 %v531, %v544
  %v552 = vadd.f32 %v532, %v544
  %v553 = vadd.f32 %v533, %v544
  %v554 = vadd.f32 %v534, %v544
  %v555 = vadd.f32 %v535, %v544
  %v556 = vadd.f32 %v536, %v544
  %v557 = vadd.f32 %v537, %v544
  %v558 = vadd.f32 %v538, %v544
  %v559 = vadd.f32 %v539, %v544
  %v560 = vadd.f32 %v540, %v544
  %v561 = vadd.f32 %v541, %v544
  %v562 = vadd.f32 %v542, %v544
  %v563 = vmul.f32 %v546, %v546
  %v564 = vmul.f32 %v547, %v547
  %v565 = vmul.f32 %v548, %v548
  %v566 = vmul.f32 %v549, %v549
  %v567 = vmul.f32 %v550, %v550
  %v568 = vmul.f32 %v551, %v551
  %v569 = vmul.f32 %v552, %v552
  %v570 = vmul.f32 %v553, %v553
  %v571 = vmul.f32 %v554, %v554
  %v572 = vmul.f32 %v555, %v555
  %v573 = vmul.f32 %v556, %v556
  %v574 = vmul.f32 %v557, %v557
  %v575 = vmul.f32 %v558, %v558
  %v576 = vmul.f32 %v559, %v559
  %v577 = vmul.f32 %v560, %v560
  %v578 = vmul.f32 %v561, %v561
  %v579 = vmul.f32 %v562, %v562
  %v580 = vmul.f32 %v546, %v563
  %v581 = vmul.f32 %v547, %v564
  %v582 = vmul.f32 %v548, %v565
  %v583 = vmul.f32 %v549, %v566
  %v584 = vmul.f32 %v550, %v567
  %v585 = vmul.f32 %v551, %v568
  %v586 = vmul.f32 %v552, %v569
  %v587 = vmul.f32 %v553, %v570
  %v588 = vmul.f32 %v554, %v571
  %v589 = vmul.f32 %v555, %v572
  %v590 = vmul.f32 %v556, %v573
  %v591 = vmul.f32 %v557, %v574
  %v592 = vmul.f32 %v558, %v575
  %v593 = vmul.f32 %v559, %v576
  %v594 = vmul.f32 %v560, %v577
  %v595 = vmul.f32 %v561, %v578
  %v596 = vmul.f32 %v562, %v579
  %v597 = vmul.f32 %v580, 0.044715
  %v598 = vmul.f32 %v581, 0.044715
  %v599 = vmul.f32 %v582, 0.044715
  %v600 = vmul.f32 %v583, 0.044715
  %v601 = vmul.f32 %v584, 0.044715
  %v602 = vmul.f32 %v585, 0.044715
  %v603 = vmul.f32 %v586, 0.044715
  %v604 = vmul.f32 %v587, 0.044715
  %v605 = vmul.f32 %v588, 0.044715
  %v606 = vmul.f32 %v589, 0.044715
  %v607 = vmul.f32 %v590, 0.044715
  %v608 = vmul.f32 %v591, 0.044715
  %v609 = vmul.f32 %v592, 0.044715
  %v610 = vmul.f32 %v593, 0.044715
  %v611 = vmul.f32 %v594, 0.044715
  %v612 = vmul.f32 %v595, 0.044715
  %v613 = vmul.f32 %v596, 0.044715
  %v614 = vadd.f32 %v546, %v597
  %v615 = vadd.f32 %v547, %v598
  %v616 = vadd.f32 %v548, %v599
  %v617 = vadd.f32 %v549, %v600
  %v618 = vadd.f32 %v550, %v601
  %v619 = vadd.f32 %v551, %v602
  %v620 = vadd.f32 %v552, %v603
  %v621 = vadd.f32 %v553, %v604
  %v622 = vadd.f32 %v554, %v605
  %v623 = vadd.f32 %v555, %v606
  %v624 = vadd.f32 %v556, %v607
  %v625 = vadd.f32 %v557, %v608
  %v626 = vadd.f32 %v558, %v609
  %v627 = vadd.f32 %v559, %v610
  %v628 = vadd.f32 %v560, %v611
  %v629 = vadd.f32 %v561, %v612
  %v630 = vadd.f32 %v562, %v613
  %v631 = vmul.f32 %v614, 0.7978846
  %v632 = vmul.f32 %v615, 0.7978846
  %v633 = vmul.f32 %v616, 0.7978846
  %v634 = vmul.f32 %v617, 0.7978846
  %v635 = vmul.f32 %v618, 0.7978846
  %v636 = vmul.f32 %v619, 0.7978846
  %v637 = vmul.f32 %v620, 0.7978846
  %v638 = vmul.f32 %v621, 0.7978846
  %v639 = vmul.f32 %v622, 0.7978846
  %v640 = vmul.f32 %v623, 0.7978846
  %v641 = vmul.f32 %v624, 0.7978846
  %v642 = vmul.f32 %v625, 0.7978846
  %v643 = vmul.f32 %v626, 0.7978846
  %v644 = vmul.f32 %v627, 0.7978846
  %v645 = vmul.f32 %v628, 0.7978846
  %v646 = vmul.f32 %v629, 0.7978846
  %v647 = vmul.f32 %v630, 0.7978846
  %v648 = vtanh.pop %v631
  %v649 = vtanh.pop %v632
  %v650 = vtanh.pop %v633
  %v651 = vtanh.pop %v634
  %v652 = vtanh.pop %v635
  %v653 = vtanh.pop %v636
  %v654 = vtanh.pop %v637
  %v655 = vtanh.pop %v638
  %v656 = vtanh.pop %v639
  %v657 = vtanh.pop %v640
  %v658 = vtanh.pop %v641
  %v659 = vtanh.pop %v642
  %v660 = vtanh.pop %v643
  %v661 = vtanh.pop %v644
  %v662 = vtanh.pop %v645
  %v663 = vtanh.pop %v646
  %v664 = vtanh.pop %v647
  %v665 = vadd.f32 %v648, 1.0
  %v666 = vadd.f32 %v649, 1.0
  %v667 = vadd.f32 %v650, 1.0
  %v668 = vadd.f32 %v651, 1.0
  %v669 = vadd.f32 %v652, 1.0
  %v670 = vadd.f32 %v653, 1.0
  %v671 = vadd.f32 %v654, 1.0
  %v672 = vadd.f32 %v655, 1.0
  %v673 = vadd.f32 %v656, 1.0
  %v674 = vadd.f32 %v657, 1.0
  %v675 = vadd.f32 %v658, 1.0
  %v676 = vadd.f32 %v659, 1.0
  %v677 = vadd.f32 %v660, 1.0
  %v678 = vadd.f32 %v661, 1.0
  %v679 = vadd.f32 %v662, 1.0
  %v680 = vadd.f32 %v663, 1.0
  %v681 = vadd.f32 %v664, 1.0
  %v682 = vmul.f32 %v665, 0.5
  %v683 = vmul.f32 %v666, 0.5
  %v684 = vmul.f32 %v667, 0.5
  %v685 = vmul.f32 %v668, 0.5
  %v686 = vmul.f32 %v669, 0.5
  %v687 = vmul.f32 %v670, 0.5
  %v688 = vmul.f32 %v671, 0.5
  %v689 = vmul.f32 %v672, 0.5
  %v690 = vmul.f32 %v673, 0.5
  %v691 = vmul.f32 %v674, 0.5
  %v692 = vmul.f32 %v675, 0.5
  %v693 = vmul.f32 %v676, 0.5
  %v694 = vmul.f32 %v677, 0.5
  %v695 = vmul.f32 %v678, 0.5
  %v696 = vmul.f32 %v679, 0.5
  %v697 = vmul.f32 %v680, 0.5
  %v698 = vmul.f32 %v681, 0.5
  %v699 = vmul.f32 %v546, %v682
  %v700 = vmul.f32 %v547, %v683
  %v701 = vmul.f32 %v548, %v684
  %v702 = vmul.f32 %v549, %v685
  %v703 = vmul.f32 %v550, %v686
  %v704 = vmul.f32 %v551, %v687
  %v705 = vmul.f32 %v552, %v688
  %v706 = vmul.f32 %v553, %v689
  %v707 = vmul.f32 %v554, %v690
  %v708 = vmul.f32 %v555, %v691
  %v709 = vmul.f32 %v556, %v692
  %v710 = vmul.f32 %v557, %v693
  %v711 = vmul.f32 %v558, %v694
  %v712 = vmul.f32 %v559, %v695
  %v713 = vmul.f32 %v560, %v696
  %v714 = vmul.f32 %v561, %v697
  %v715 = vmul.f32 %v562, %v698
  %716 = vst.msk [vmem:[%s5] sm:$0xff] %vm141, %v699
  %717 = vst.msk [vmem:[%s5 + $0x8] sm:$0xff] %vm141, %v700
  %718 = vst.msk [vmem:[%s5 + $0x10] sm:$0xff] %vm141, %v701
  %719 = vst.msk [vmem:[%s5 + $0x18] sm:$0xff] %vm141, %v702
  %720 = vst.msk [vmem:[%s5 + $0x20] sm:$0xff] %vm141, %v703
  %721 = vst.msk [vmem:[%s5 + $0x28] sm:$0xff] %vm141, %v704
  %722 = vst.msk [vmem:[%s5 + $0x30] sm:$0xff] %vm141, %v705
  %723 = vst.msk [vmem:[%s5 + $0x38] sm:$0xff] %vm141, %v706
  %724 = vst.msk [vmem:[%s5 + $0x40] sm:$0xff] %vm141, %v707
  %725 = vst.msk [vmem:[%s5 + $0x48] sm:$0xff] %vm141, %v708
  %726 = vst.msk [vmem:[%s5 + $0x50] sm:$0xff] %vm141, %v709
  %727 = vst.msk [vmem:[%s5 + $0x58] sm:$0xff] %vm141, %v710
  %728 = vst.msk [vmem:[%s5 + $0x60] sm:$0xff] %vm141, %v711
  %729 = vst.msk [vmem:[%s5 + $0x68] sm:$0xff] %vm141, %v712
  %730 = vst.msk [vmem:[%s5 + $0x70] sm:$0xff] %vm141, %v713
  %731 = vst.msk [vmem:[%s5 + $0x78] sm:$0xff] %vm141, %v714
  %732 = vst.msk [vmem:[%s5 + $0x80] sm:$0xff] %vm141, %v715
  // Predicated region
  $region22: #{hubert_forward.8} parent=0 // pred_check
    _
  $region23: #{hubert_forward.8} parent=0 // pred_check_branch
    %734 = sbr.rel (0) target = $region25
  $region24: #{hubert_forward.8} parent=0 // pred_region
    _
  $region25: #{hubert_forward.8} parent=0 // pred_fallthru
    _
  // Predicated region
  $region26: #{hubert_forward.8} parent=0 // pred_check
    _
  $region27: #{hubert_forward.8} parent=0 // pred_check_branch
    %736 = sbr.rel (0) target = $region29
  $region28: #{hubert_forward.8} parent=0 // pred_region
    _
  $region29: #{hubert_forward.8} parent=0 // pred_fallthru
    _

// kernel: hubert_forward.9
$region0: #{hubert_forward.9}
  #allocation0 [shape = 'u32[]', space=smem, size = 0x4, offset = 0x4, fixed_abs, tag = 'smem constant byte address 0x4 - core index']
  #allocation1 [shape = 'u32[72,128]{1,0:T(1,128)}', space=vmem, size = 0x9000, scoped, tag = 'internal scratch']
  %s0 = inlined_call_operand.vmem [shape: f32[64,96], index: 0, kind: input, shape index: {}]
  %s1 = inlined_call_operand.vmem [shape: f32[96,32], index: 1, kind: input, shape index: {}]
  %s2 = inlined_call_operand.vmem [shape: f32[1,32], index: 2, kind: input, shape index: {}]
  %s3 = inlined_call_operand.vmem [shape: f32[1,32], index: 3, kind: input, shape index: {}]
  %s4 = inlined_call_operand.vmem [shape: f32[1,32], index: 4, kind: input, shape index: {}]
  %s5 = inlined_call_operand.vmem [shape: f32[64,32], index: 5, kind: output, shape index: {}]
  %s6 = sld [smem:[#allocation0]]
  $region30: #{hubert_forward.9} parent=0
    _
  %s8 = ssub.s32 1, %s6
  %s9 = scalar_select 0, %s8, %s6
  // Predicated region
  $region2: #{hubert_forward.9} parent=0 // pred_check
    _
  $region3: #{hubert_forward.9} parent=0 // pred_check_branch
    %11 = sbr.rel (0) target = $region5
  $region4: #{hubert_forward.9} parent=0 // pred_region
    _
  $region5: #{hubert_forward.9} parent=0 // pred_fallthru
    _
  // Predicated region
  $region6: #{hubert_forward.9} parent=0 // pred_check
    _
  $region7: #{hubert_forward.9} parent=0 // pred_check_branch
    %13 = sbr.rel (0) target = $region9
  $region8: #{hubert_forward.9} parent=0 // pred_region
    _
  $region9: #{hubert_forward.9} parent=0 // pred_fallthru
    _
  // Predicated region
  $region10: #{hubert_forward.9} parent=0 // pred_check
    _
  $region11: #{hubert_forward.9} parent=0 // pred_check_branch
    %15 = sbr.rel (0) target = $region13
  $region12: #{hubert_forward.9} parent=0 // pred_region
    _
  $region13: #{hubert_forward.9} parent=0 // pred_fallthru
    _
  // Predicated region
  $region14: #{hubert_forward.9} parent=0 // pred_check
    _
  $region15: #{hubert_forward.9} parent=0 // pred_check_branch
    %17 = sbr.rel (0) target = $region17
  $region16: #{hubert_forward.9} parent=0 // pred_region
    _
  $region17: #{hubert_forward.9} parent=0 // pred_fallthru
    _
  // Predicated region
  $region18: #{hubert_forward.9} parent=0 // pred_check
    _
  $region19: #{hubert_forward.9} parent=0 // pred_check_branch
    %19 = sbr.rel (0) target = $region21
  $region20: #{hubert_forward.9} parent=0 // pred_region
    _
  $region21: #{hubert_forward.9} parent=0 // pred_fallthru
    _
  %v21 = vld [vmem:[%s0] sm:$0xff]
  %v22 = vld [vmem:[%s0 + $0x8] sm:$0xff]
  %v23 = vld [vmem:[%s0 + $0x10] sm:$0xff]
  %v24 = vld [vmem:[%s0 + $0x18] sm:$0xff]
  %v25 = vld [vmem:[%s0 + $0x20] sm:$0xff]
  %v26 = vld [vmem:[%s0 + $0x28] sm:$0xff]
  %v27 = vld [vmem:[%s0 + $0x30] sm:$0xff]
  %v28 = vld [vmem:[%s0 + $0x38] sm:$0xff]
  %v29 = vld [vmem:[%s1] sm:$0xff]
  %v30 = vld [vmem:[%s1 + $0x8] sm:$0xff]
  %v31 = vld [vmem:[%s1 + $0x10] sm:$0xff]
  %v32 = vld [vmem:[%s1 + $0x18] sm:$0xff]
  %v33 = vld [vmem:[%s1 + $0x20] sm:$0xff]
  %v34 = vld [vmem:[%s1 + $0x28] sm:$0xff]
  %v35 = vld [vmem:[%s1 + $0x30] sm:$0xff]
  %v36 = vld [vmem:[%s1 + $0x38] sm:$0xff]
  %v37 = vld [vmem:[%s1 + $0x40] sm:$0xff]
  %v38 = vld [vmem:[%s1 + $0x48] sm:$0xff]
  %v39 = vld [vmem:[%s1 + $0x50] sm:$0xff]
  %v40 = vld [vmem:[%s1 + $0x58] sm:$0xff]
  %v41 = vpack.c.bf16 %v22, %v21
  %v42 = vpack.c.bf16 %v24, %v23
  %v43 = vpack.c.bf16 %v26, %v25
  %v44 = vpack.c.bf16 %v28, %v27
  %v45 = vpack.c.bf16 %v30, %v29
  %v46 = vpack.c.bf16 %v32, %v31
  %v47 = vpack.c.bf16 %v34, %v33
  %v48 = vpack.c.bf16 %v36, %v35
  %v49 = vpack.c.bf16 %v38, %v37
  %v50 = vpack.c.bf16 %v40, %v39
  %v51 = vld [vmem:[%s2] sm:$0x1]
  %v53 = vperm.slane %v51, 0
  %vm55 = vcmask 785408
  %v57 = vsel %vm55, %v41, 0
  %v60 = vsel %vm55, %v42, 0
  %v63 = vsel %vm55, %v43, 0
  %v66 = vsel %vm55, %v44, 0
  %68 = vmatpush.bf16.msra.mxu0 0
  %69 = vmatpush.bf16.msra.mxu0 0
  %70 = vmatpush.bf16.msra.mxu0 %v50
  %71 = vmatpush.bf16.msra.mxu0 %v49
  %72 = vmatpush.bf16.msra.mxu0 %v48
  %73 = vmatpush.bf16.msra.mxu0 %v47
  %74 = vmatpush.bf16.msra.mxu0 %v46
  %75 = vmatpush.bf16.msra.mxu0 %v45
  %76 = vmatmul.bf16.gmra.mxu0 %v57
  %v77 = vpop.f32.mrf.mxu0
  %v78 = vadd.f32 %v53, %v77
  %v79 = vpop.f32.mrf.mxu0
  %v80 = vadd.f32 %v53, %v79
  %81 = vmatmul.bf16.gmra.mxu0 %v60
  %v82 = vpop.f32.mrf.mxu0
  %v83 = vadd.f32 %v53, %v82
  %v84 = vpop.f32.mrf.mxu0
  %v85 = vadd.f32 %v53, %v84
  %86 = vmatmul.bf16.gmra.mxu0 %v63
  %v87 = vpop.f32.mrf.mxu0
  %v88 = vadd.f32 %v53, %v87
  %v89 = vpop.f32.mrf.mxu0
  %v90 = vadd.f32 %v53, %v89
  %91 = vmatmul.bf16.gmra.mxu0 %v66
  %v92 = vpop.f32.mrf.mxu0
  %v93 = vadd.f32 %v53, %v92
  %v94 = vpop.f32.mrf.mxu0
  %v95 = vadd.f32 %v53, %v94
  %96 = vdwg.mxu0
  %v97 = vld [vmem:[%s3] sm:$0x1]
  %v98 = vld [vmem:[%s4] sm:$0x1]
  %vm99 = vcmask 261120
  %v100 = vsel %vm99, %v78, 0.0
  %101 = vadd.xlane.f32.xlu0 %v100
  %v102 = vpop.xlane.xlu0 %101
  %v103 = vsel %vm99, %v80, 0.0
  %104 = vadd.xlane.f32.xlu0 %v103
  %v105 = vpop.xlane.xlu0 %104
  %v106 = vsel %vm99, %v83, 0.0
  %107 = vadd.xlane.f32.xlu0 %v106
  %v108 = vpop.xlane.xlu0 %107
  %v109 = vsel %vm99, %v85, 0.0
  %110 = vadd.xlane.f32.xlu0 %v109
  %v111 = vpop.xlane.xlu0 %110
  %v112 = vsel %vm99, %v88, 0.0
  %113 = vadd.xlane.f32.xlu0 %v112
  %v114 = vpop.xlane.xlu0 %113
  %v115 = vsel %vm99, %v90, 0.0
  %116 = vadd.xlane.f32.xlu0 %v115
  %v117 = vpop.xlane.xlu0 %116
  %v118 = vsel %vm99, %v93, 0.0
  %119 = vadd.xlane.f32.xlu0 %v118
  %v120 = vpop.xlane.xlu0 %119
  %v121 = vsel %vm99, %v95, 0.0
  %122 = vadd.xlane.f32.xlu0 %v121
  %v123 = vpop.xlane.xlu0 %122
  %v124 = vrcp.pop 32.0
  %v125 = vmul.f32 32.0, %v124
  %v126 = vsub.f32 1.0, %v125
  %v127 = vmul.f32 %v124, %v126
  %v128 = vadd.f32 %v124, %v127
  %vm129 = vweird.f32 %v124
  %v130 = vsel %vm129, %v124, %v128
  %v131 = vmul.f32 %v102, %v130
  %v132 = vmul.f32 %v105, %v130
  %v133 = vmul.f32 %v108, %v130
  %v134 = vmul.f32 %v111, %v130
  %v135 = vmul.f32 %v114, %v130
  %v136 = vmul.f32 %v117, %v130
  %v137 = vmul.f32 %v120, %v130
  %v138 = vmul.f32 %v123, %v130
  %v139 = vsub.f32 %v78, %v131
  %v140 = vsub.f32 %v80, %v132
  %v141 = vsub.f32 %v83, %v133
  %v142 = vsub.f32 %v85, %v134
  %v143 = vsub.f32 %v88, %v135
  %v144 = vsub.f32 %v90, %v136
  %v145 = vsub.f32 %v93, %v137
  %v146 = vsub.f32 %v95, %v138
  %v147 = vmul.f32 %v139, %v139
  %v148 = vmul.f32 %v140, %v140
  %v149 = vmul.f32 %v141, %v141
  %v150 = vmul.f32 %v142, %v142
  %v151 = vmul.f32 %v143, %v143
  %v152 = vmul.f32 %v144, %v144
  %v153 = vmul.f32 %v145, %v145
  %v154 = vmul.f32 %v146, %v146
  %v155 = vsel %vm99, %v147, 0.0
  %156 = vadd.xlane.f32.xlu0 %v155
  %v157 = vpop.xlane.xlu0 %156
  %v158 = vsel %vm99, %v148, 0.0
  %159 = vadd.xlane.f32.xlu0 %v158
  %v160 = vpop.xlane.xlu0 %159
  %v161 = vsel %vm99, %v149, 0.0
  %162 = vadd.xlane.f32.xlu0 %v161
  %v163 = vpop.xlane.xlu0 %162
  %v164 = vsel %vm99, %v150, 0.0
  %165 = vadd.xlane.f32.xlu0 %v164
  %v166 = vpop.xlane.xlu0 %165
  %v167 = vsel %vm99, %v151, 0.0
  %168 = vadd.xlane.f32.xlu0 %v167
  %v169 = vpop.xlane.xlu0 %168
  %v170 = vsel %vm99, %v152, 0.0
  %171 = vadd.xlane.f32.xlu0 %v170
  %v172 = vpop.xlane.xlu0 %171
  %v173 = vsel %vm99, %v153, 0.0
  %174 = vadd.xlane.f32.xlu0 %v173
  %v175 = vpop.xlane.xlu0 %174
  %v176 = vsel %vm99, %v154, 0.0
  %177 = vadd.xlane.f32.xlu0 %v176
  %v178 = vpop.xlane.xlu0 %177
  %v179 = vmul.f32 %v157, %v130
  %v180 = vmul.f32 %v160, %v130
  %v181 = vmul.f32 %v163, %v130
  %v182 = vmul.f32 %v166, %v130
  %v183 = vmul.f32 %v169, %v130
  %v184 = vmul.f32 %v172, %v130
  %v185 = vmul.f32 %v175, %v130
  %v186 = vmul.f32 %v178, %v130
  %v187 = vadd.f32 %v179, 1e-05
  %v188 = vadd.f32 %v180, 1e-05
  %v189 = vadd.f32 %v181, 1e-05
  %v190 = vadd.f32 %v182, 1e-05
  %v191 = vadd.f32 %v183, 1e-05
  %v192 = vadd.f32 %v184, 1e-05
  %v193 = vadd.f32 %v185, 1e-05
  %v194 = vadd.f32 %v186, 1e-05
  %v195 = vrsqrt.pop %v187
  %v196 = vmul.f32 %v195, %v187
  %v197 = vmul.f32 %v196, %v195
  %v198 = vmul.f32 0.5, %v197
  %v199 = vsub.f32 1.5, %v198
  %v200 = vmul.f32 %v195, %v199
  %vm201 = vweird.f32 %v187
  %vm202 = vweird.f32 %v195
  %vm203 = vmor %vm201, %vm202
  %v204 = vsel %vm203, %v195, %v200
  %v205 = vrsqrt.pop %v188
  %v206 = vmul.f32 %v205, %v188
  %v207 = vmul.f32 %v206, %v205
  %v208 = vmul.f32 0.5, %v207
  %v209 = vsub.f32 1.5, %v208
  %v210 = vmul.f32 %v205, %v209
  %vm211 = vweird.f32 %v188
  %vm212 = vweird.f32 %v205
  %vm213 = vmor %vm211, %vm212
  %v214 = vsel %vm213, %v205, %v210
  %v215 = vrsqrt.pop %v189
  %v216 = vmul.f32 %v215, %v189
  %v217 = vmul.f32 %v216, %v215
  %v218 = vmul.f32 0.5, %v217
  %v219 = vsub.f32 1.5, %v218
  %v220 = vmul.f32 %v215, %v219
  %vm221 = vweird.f32 %v189
  %vm222 = vweird.f32 %v215
  %vm223 = vmor %vm221, %vm222
  %v224 = vsel %vm223, %v215, %v220
  %v225 = vrsqrt.pop %v190
  %v226 = vmul.f32 %v225, %v190
  %v227 = vmul.f32 %v226, %v225
  %v228 = vmul.f32 0.5, %v227
  %v229 = vsub.f32 1.5, %v228
  %v230 = vmul.f32 %v225, %v229
  %vm231 = vweird.f32 %v190
  %vm232 = vweird.f32 %v225
  %vm233 = vmor %vm231, %vm232
  %v234 = vsel %vm233, %v225, %v230
  %v235 = vrsqrt.pop %v191
  %v236 = vmul.f32 %v235, %v191
  %v237 = vmul.f32 %v236, %v235
  %v238 = vmul.f32 0.5, %v237
  %v239 = vsub.f32 1.5, %v238
  %v240 = vmul.f32 %v235, %v239
  %vm241 = vweird.f32 %v191
  %vm242 = vweird.f32 %v235
  %vm243 = vmor %vm241, %vm242
  %v244 = vsel %vm243, %v235, %v240
  %v245 = vrsqrt.pop %v192
  %v246 = vmul.f32 %v245, %v192
  %v247 = vmul.f32 %v246, %v245
  %v248 = vmul.f32 0.5, %v247
  %v249 = vsub.f32 1.5, %v248
  %v250 = vmul.f32 %v245, %v249
  %vm251 = vweird.f32 %v192
  %vm252 = vweird.f32 %v245
  %vm253 = vmor %vm251, %vm252
  %v254 = vsel %vm253, %v245, %v250
  %v255 = vrsqrt.pop %v193
  %v256 = vmul.f32 %v255, %v193
  %v257 = vmul.f32 %v256, %v255
  %v258 = vmul.f32 0.5, %v257
  %v259 = vsub.f32 1.5, %v258
  %v260 = vmul.f32 %v255, %v259
  %vm261 = vweird.f32 %v193
  %vm262 = vweird.f32 %v255
  %vm263 = vmor %vm261, %vm262
  %v264 = vsel %vm263, %v255, %v260
  %v265 = vrsqrt.pop %v194
  %v266 = vmul.f32 %v265, %v194
  %v267 = vmul.f32 %v266, %v265
  %v268 = vmul.f32 0.5, %v267
  %v269 = vsub.f32 1.5, %v268
  %v270 = vmul.f32 %v265, %v269
  %vm271 = vweird.f32 %v194
  %vm272 = vweird.f32 %v265
  %vm273 = vmor %vm271, %vm272
  %v274 = vsel %vm273, %v265, %v270
  %v275 = vmul.f32 %v139, %v204
  %v276 = vmul.f32 %v140, %v214
  %v277 = vmul.f32 %v141, %v224
  %v278 = vmul.f32 %v142, %v234
  %v279 = vmul.f32 %v143, %v244
  %v280 = vmul.f32 %v144, %v254
  %v281 = vmul.f32 %v145, %v264
  %v282 = vmul.f32 %v146, %v274
  %v284 = vperm.slane %v97, 0
  %v286 = vmul.f32 %v275, %v284
  %v287 = vmul.f32 %v276, %v284
  %v288 = vmul.f32 %v277, %v284
  %v289 = vmul.f32 %v278, %v284
  %v290 = vmul.f32 %v279, %v284
  %v291 = vmul.f32 %v280, %v284
  %v292 = vmul.f32 %v281, %v284
  %v293 = vmul.f32 %v282, %v284
  %v295 = vperm.slane %v98, 0
  %v297 = vadd.f32 %v286, %v295
  %v298 = vadd.f32 %v287, %v295
  %v299 = vadd.f32 %v288, %v295
  %v300 = vadd.f32 %v289, %v295
  %v301 = vadd.f32 %v290, %v295
  %v302 = vadd.f32 %v291, %v295
  %v303 = vadd.f32 %v292, %v295
  %v304 = vadd.f32 %v293, %v295
  %v305 = vmul.f32 %v297, %v297
  %v306 = vmul.f32 %v298, %v298
  %v307 = vmul.f32 %v299, %v299
  %v308 = vmul.f32 %v300, %v300
  %v309 = vmul.f32 %v301, %v301
  %v310 = vmul.f32 %v302, %v302
  %v311 = vmul.f32 %v303, %v303
  %v312 = vmul.f32 %v304, %v304
  %v313 = vmul.f32 %v297, %v305
  %v314 = vmul.f32 %v298, %v306
  %v315 = vmul.f32 %v299, %v307
  %v316 = vmul.f32 %v300, %v308
  %v317 = vmul.f32 %v301, %v309
  %v318 = vmul.f32 %v302, %v310
  %v319 = vmul.f32 %v303, %v311
  %v320 = vmul.f32 %v304, %v312
  %v321 = vmul.f32 %v313, 0.044715
  %v322 = vmul.f32 %v314, 0.044715
  %v323 = vmul.f32 %v315, 0.044715
  %v324 = vmul.f32 %v316, 0.044715
  %v325 = vmul.f32 %v317, 0.044715
  %v326 = vmul.f32 %v318, 0.044715
  %v327 = vmul.f32 %v319, 0.044715
  %v328 = vmul.f32 %v320, 0.044715
  %v329 = vadd.f32 %v297, %v321
  %v330 = vadd.f32 %v298, %v322
  %v331 = vadd.f32 %v299, %v323
  %v332 = vadd.f32 %v300, %v324
  %v333 = vadd.f32 %v301, %v325
  %v334 = vadd.f32 %v302, %v326
  %v335 = vadd.f32 %v303, %v327
  %v336 = vadd.f32 %v304, %v328
  %v337 = vmul.f32 %v329, 0.7978846
  %v338 = vmul.f32 %v330, 0.7978846
  %v339 = vmul.f32 %v331, 0.7978846
  %v340 = vmul.f32 %v332, 0.7978846
  %v341 = vmul.f32 %v333, 0.7978846
  %v342 = vmul.f32 %v334, 0.7978846
  %v343 = vmul.f32 %v335, 0.7978846
  %v344 = vmul.f32 %v336, 0.7978846
  %v345 = vtanh.pop %v337
  %v346 = vtanh.pop %v338
  %v347 = vtanh.pop %v339
  %v348 = vtanh.pop %v340
  %v349 = vtanh.pop %v341
  %v350 = vtanh.pop %v342
  %v351 = vtanh.pop %v343
  %v352 = vtanh.pop %v344
  %v353 = vadd.f32 %v345, 1.0
  %v354 = vadd.f32 %v346, 1.0
  %v355 = vadd.f32 %v347, 1.0
  %v356 = vadd.f32 %v348, 1.0
  %v357 = vadd.f32 %v349, 1.0
  %v358 = vadd.f32 %v350, 1.0
  %v359 = vadd.f32 %v351, 1.0
  %v360 = vadd.f32 %v352, 1.0
  %v361 = vmul.f32 %v353, 0.5
  %v362 = vmul.f32 %v354, 0.5
  %v363 = vmul.f32 %v355, 0.5
  %v364 = vmul.f32 %v356, 0.5
  %v365 = vmul.f32 %v357, 0.5
  %v366 = vmul.f32 %v358, 0.5
  %v367 = vmul.f32 %v359, 0.5
  %v368 = vmul.f32 %v360, 0.5
  %v369 = vmul.f32 %v297, %v361
  %v370 = vmul.f32 %v298, %v362
  %v371 = vmul.f32 %v299, %v363
  %v372 = vmul.f32 %v300, %v364
  %v373 = vmul.f32 %v301, %v365
  %v374 = vmul.f32 %v302, %v366
  %v375 = vmul.f32 %v303, %v367
  %v376 = vmul.f32 %v304, %v368
  %377 = vst.msk [vmem:[%s5] sm:$0xff] %vm99, %v369
  %378 = vst.msk [vmem:[%s5 + $0x8] sm:$0xff] %vm99, %v370
  %379 = vst.msk [vmem:[%s5 + $0x10] sm:$0xff] %vm99, %v371
  %380 = vst.msk [vmem:[%s5 + $0x18] sm:$0xff] %vm99, %v372
  %381 = vst.msk [vmem:[%s5 + $0x20] sm:$0xff] %vm99, %v373
  %382 = vst.msk [vmem:[%s5 + $0x28] sm:$0xff] %vm99, %v374
  %383 = vst.msk [vmem:[%s5 + $0x30] sm:$0xff] %vm99, %v375
  %384 = vst.msk [vmem:[%s5 + $0x38] sm:$0xff] %vm99, %v376
  // Predicated region
  $region22: #{hubert_forward.9} parent=0 // pred_check
    _
  $region23: #{hubert_forward.9} parent=0 // pred_check_branch
    %386 = sbr.rel (0) target = $region25
  $region24: #{hubert_forward.9} parent=0 // pred_region
    _
  $region25: #{hubert_forward.9} parent=0 // pred_fallthru
    _
  // Predicated region
  $region26: #{hubert_forward.9} parent=0 // pred_check
    _
  $region27: #{hubert_forward.9} parent=0 // pred_check_branch
    %388 = sbr.rel (0) target = $region29
  $region28: #{hubert_forward.9} parent=0 // pred_region
    _
  $region29: #{hubert_forward.9} parent=0 // pred_fallthru
    _

// kernel: hubert_forward.10
$region0: #{hubert_forward.10}
  #allocation0 [shape = 'u32[]', space=smem, size = 0x4, offset = 0x4, fixed_abs, tag = 'smem constant byte address 0x4 - core index']
  #allocation1 [shape = 'u32[72,128]{1,0:T(1,128)}', space=vmem, size = 0x9000, scoped, tag = 'internal scratch']
  %s0 = inlined_call_operand.vmem [shape: f32[32,64], index: 0, kind: input, shape index: {}]
  %s1 = inlined_call_operand.vmem [shape: f32[64,32], index: 1, kind: input, shape index: {}]
  %s2 = inlined_call_operand.vmem [shape: f32[1,32], index: 2, kind: input, shape index: {}]
  %s3 = inlined_call_operand.vmem [shape: f32[1,32], index: 3, kind: input, shape index: {}]
  %s4 = inlined_call_operand.vmem [shape: f32[1,32], index: 4, kind: input, shape index: {}]
  %s5 = inlined_call_operand.vmem [shape: f32[32,32], index: 5, kind: output, shape index: {}]
  %s6 = sld [smem:[#allocation0]]
  $region30: #{hubert_forward.10} parent=0
    _
  %s8 = ssub.s32 1, %s6
  %s9 = scalar_select 0, %s8, %s6
  // Predicated region
  $region2: #{hubert_forward.10} parent=0 // pred_check
    _
  $region3: #{hubert_forward.10} parent=0 // pred_check_branch
    %11 = sbr.rel (0) target = $region5
  $region4: #{hubert_forward.10} parent=0 // pred_region
    _
  $region5: #{hubert_forward.10} parent=0 // pred_fallthru
    _
  // Predicated region
  $region6: #{hubert_forward.10} parent=0 // pred_check
    _
  $region7: #{hubert_forward.10} parent=0 // pred_check_branch
    %13 = sbr.rel (0) target = $region9
  $region8: #{hubert_forward.10} parent=0 // pred_region
    _
  $region9: #{hubert_forward.10} parent=0 // pred_fallthru
    _
  // Predicated region
  $region10: #{hubert_forward.10} parent=0 // pred_check
    _
  $region11: #{hubert_forward.10} parent=0 // pred_check_branch
    %15 = sbr.rel (0) target = $region13
  $region12: #{hubert_forward.10} parent=0 // pred_region
    _
  $region13: #{hubert_forward.10} parent=0 // pred_fallthru
    _
  // Predicated region
  $region14: #{hubert_forward.10} parent=0 // pred_check
    _
  $region15: #{hubert_forward.10} parent=0 // pred_check_branch
    %17 = sbr.rel (0) target = $region17
  $region16: #{hubert_forward.10} parent=0 // pred_region
    _
  $region17: #{hubert_forward.10} parent=0 // pred_fallthru
    _
  // Predicated region
  $region18: #{hubert_forward.10} parent=0 // pred_check
    _
  $region19: #{hubert_forward.10} parent=0 // pred_check_branch
    %19 = sbr.rel (0) target = $region21
  $region20: #{hubert_forward.10} parent=0 // pred_region
    _
  $region21: #{hubert_forward.10} parent=0 // pred_fallthru
    _
  %v21 = vld [vmem:[%s0] sm:$0xff]
  %v22 = vld [vmem:[%s0 + $0x8] sm:$0xff]
  %v23 = vld [vmem:[%s0 + $0x10] sm:$0xff]
  %v24 = vld [vmem:[%s0 + $0x18] sm:$0xff]
  %v25 = vld [vmem:[%s1] sm:$0xff]
  %v26 = vld [vmem:[%s1 + $0x8] sm:$0xff]
  %v27 = vld [vmem:[%s1 + $0x10] sm:$0xff]
  %v28 = vld [vmem:[%s1 + $0x18] sm:$0xff]
  %v29 = vld [vmem:[%s1 + $0x20] sm:$0xff]
  %v30 = vld [vmem:[%s1 + $0x28] sm:$0xff]
  %v31 = vld [vmem:[%s1 + $0x30] sm:$0xff]
  %v32 = vld [vmem:[%s1 + $0x38] sm:$0xff]
  %v33 = vpack.c.bf16 %v22, %v21
  %v34 = vpack.c.bf16 %v24, %v23
  %v35 = vpack.c.bf16 %v26, %v25
  %v36 = vpack.c.bf16 %v28, %v27
  %v37 = vpack.c.bf16 %v30, %v29
  %v38 = vpack.c.bf16 %v32, %v31
  %v39 = vld [vmem:[%s2] sm:$0x1]
  %v41 = vperm.slane %v39, 0
  %vm43 = vcmask 523264
  %v45 = vsel %vm43, %v33, 0
  %v48 = vsel %vm43, %v34, 0
  %50 = vmatpush.bf16.msra.mxu0 0
  %51 = vmatpush.bf16.msra.mxu0 0
  %52 = vmatpush.bf16.msra.mxu0 0
  %53 = vmatpush.bf16.msra.mxu0 0
  %54 = vmatpush.bf16.msra.mxu0 %v38
  %55 = vmatpush.bf16.msra.mxu0 %v37
  %56 = vmatpush.bf16.msra.mxu0 %v36
  %57 = vmatpush.bf16.msra.mxu0 %v35
  %58 = vmatmul.bf16.gmra.mxu0 %v45
  %v59 = vpop.f32.mrf.mxu0
  %v60 = vadd.f32 %v41, %v59
  %v61 = vpop.f32.mrf.mxu0
  %v62 = vadd.f32 %v41, %v61
  %63 = vmatmul.bf16.gmra.mxu0 %v48
  %v64 = vpop.f32.mrf.mxu0
  %v65 = vadd.f32 %v41, %v64
  %v66 = vpop.f32.mrf.mxu0
  %v67 = vadd.f32 %v41, %v66
  %68 = vdwg.mxu0
  %v69 = vld [vmem:[%s3] sm:$0x1]
  %v70 = vld [vmem:[%s4] sm:$0x1]
  %vm71 = vcmask 261120
  %v72 = vsel %vm71, %v60, 0.0
  %73 = vadd.xlane.f32.xlu0 %v72
  %v74 = vpop.xlane.xlu0 %73
  %v75 = vsel %vm71, %v62, 0.0
  %76 = vadd.xlane.f32.xlu0 %v75
  %v77 = vpop.xlane.xlu0 %76
  %v78 = vsel %vm71, %v65, 0.0
  %79 = vadd.xlane.f32.xlu0 %v78
  %v80 = vpop.xlane.xlu0 %79
  %v81 = vsel %vm71, %v67, 0.0
  %82 = vadd.xlane.f32.xlu0 %v81
  %v83 = vpop.xlane.xlu0 %82
  %v84 = vrcp.pop 32.0
  %v85 = vmul.f32 32.0, %v84
  %v86 = vsub.f32 1.0, %v85
  %v87 = vmul.f32 %v84, %v86
  %v88 = vadd.f32 %v84, %v87
  %vm89 = vweird.f32 %v84
  %v90 = vsel %vm89, %v84, %v88
  %v91 = vmul.f32 %v74, %v90
  %v92 = vmul.f32 %v77, %v90
  %v93 = vmul.f32 %v80, %v90
  %v94 = vmul.f32 %v83, %v90
  %v95 = vsub.f32 %v60, %v91
  %v96 = vsub.f32 %v62, %v92
  %v97 = vsub.f32 %v65, %v93
  %v98 = vsub.f32 %v67, %v94
  %v99 = vmul.f32 %v95, %v95
  %v100 = vmul.f32 %v96, %v96
  %v101 = vmul.f32 %v97, %v97
  %v102 = vmul.f32 %v98, %v98
  %v103 = vsel %vm71, %v99, 0.0
  %104 = vadd.xlane.f32.xlu0 %v103
  %v105 = vpop.xlane.xlu0 %104
  %v106 = vsel %vm71, %v100, 0.0
  %107 = vadd.xlane.f32.xlu0 %v106
  %v108 = vpop.xlane.xlu0 %107
  %v109 = vsel %vm71, %v101, 0.0
  %110 = vadd.xlane.f32.xlu0 %v109
  %v111 = vpop.xlane.xlu0 %110
  %v112 = vsel %vm71, %v102, 0.0
  %113 = vadd.xlane.f32.xlu0 %v112
  %v114 = vpop.xlane.xlu0 %113
  %v115 = vmul.f32 %v105, %v90
  %v116 = vmul.f32 %v108, %v90
  %v117 = vmul.f32 %v111, %v90
  %v118 = vmul.f32 %v114, %v90
  %v119 = vadd.f32 %v115, 1e-05
  %v120 = vadd.f32 %v116, 1e-05
  %v121 = vadd.f32 %v117, 1e-05
  %v122 = vadd.f32 %v118, 1e-05
  %v123 = vrsqrt.pop %v119
  %v124 = vmul.f32 %v123, %v119
  %v125 = vmul.f32 %v124, %v123
  %v126 = vmul.f32 0.5, %v125
  %v127 = vsub.f32 1.5, %v126
  %v128 = vmul.f32 %v123, %v127
  %vm129 = vweird.f32 %v119
  %vm130 = vweird.f32 %v123
  %vm131 = vmor %vm129, %vm130
  %v132 = vsel %vm131, %v123, %v128
  %v133 = vrsqrt.pop %v120
  %v134 = vmul.f32 %v133, %v120
  %v135 = vmul.f32 %v134, %v133
  %v136 = vmul.f32 0.5, %v135
  %v137 = vsub.f32 1.5, %v136
  %v138 = vmul.f32 %v133, %v137
  %vm139 = vweird.f32 %v120
  %vm140 = vweird.f32 %v133
  %vm141 = vmor %vm139, %vm140
  %v142 = vsel %vm141, %v133, %v138
  %v143 = vrsqrt.pop %v121
  %v144 = vmul.f32 %v143, %v121
  %v145 = vmul.f32 %v144, %v143
  %v146 = vmul.f32 0.5, %v145
  %v147 = vsub.f32 1.5, %v146
  %v148 = vmul.f32 %v143, %v147
  %vm149 = vweird.f32 %v121
  %vm150 = vweird.f32 %v143
  %vm151 = vmor %vm149, %vm150
  %v152 = vsel %vm151, %v143, %v148
  %v153 = vrsqrt.pop %v122
  %v154 = vmul.f32 %v153, %v122
  %v155 = vmul.f32 %v154, %v153
  %v156 = vmul.f32 0.5, %v155
  %v157 = vsub.f32 1.5, %v156
  %v158 = vmul.f32 %v153, %v157
  %vm159 = vweird.f32 %v122
  %vm160 = vweird.f32 %v153
  %vm161 = vmor %vm159, %vm160
  %v162 = vsel %vm161, %v153, %v158
  %v163 = vmul.f32 %v95, %v132
  %v164 = vmul.f32 %v96, %v142
  %v165 = vmul.f32 %v97, %v152
  %v166 = vmul.f32 %v98, %v162
  %v168 = vperm.slane %v69, 0
  %v170 = vmul.f32 %v163, %v168
  %v171 = vmul.f32 %v164, %v168
  %v172 = vmul.f32 %v165, %v168
  %v173 = vmul.f32 %v166, %v168
  %v175 = vperm.slane %v70, 0
  %v177 = vadd.f32 %v170, %v175
  %v178 = vadd.f32 %v171, %v175
  %v179 = vadd.f32 %v172, %v175
  %v180 = vadd.f32 %v173, %v175
  %v181 = vmul.f32 %v177, %v177
  %v182 = vmul.f32 %v178, %v178
  %v183 = vmul.f32 %v179, %v179
  %v184 = vmul.f32 %v180, %v180
  %v185 = vmul.f32 %v177, %v181
  %v186 = vmul.f32 %v178, %v182
  %v187 = vmul.f32 %v179, %v183
  %v188 = vmul.f32 %v180, %v184
  %v189 = vmul.f32 %v185, 0.044715
  %v190 = vmul.f32 %v186, 0.044715
  %v191 = vmul.f32 %v187, 0.044715
  %v192 = vmul.f32 %v188, 0.044715
  %v193 = vadd.f32 %v177, %v189
  %v194 = vadd.f32 %v178, %v190
  %v195 = vadd.f32 %v179, %v191
  %v196 = vadd.f32 %v180, %v192
  %v197 = vmul.f32 %v193, 0.7978846
  %v198 = vmul.f32 %v194, 0.7978846
  %v199 = vmul.f32 %v195, 0.7978846
  %v200 = vmul.f32 %v196, 0.7978846
  %v201 = vtanh.pop %v197
  %v202 = vtanh.pop %v198
  %v203 = vtanh.pop %v199
  %v204 = vtanh.pop %v200
  %v205 = vadd.f32 %v201, 1.0
  %v206 = vadd.f32 %v202, 1.0
  %v207 = vadd.f32 %v203, 1.0
  %v208 = vadd.f32 %v204, 1.0
  %v209 = vmul.f32 %v205, 0.5
  %v210 = vmul.f32 %v206, 0.5
  %v211 = vmul.f32 %v207, 0.5
  %v212 = vmul.f32 %v208, 0.5
  %v213 = vmul.f32 %v177, %v209
  %v214 = vmul.f32 %v178, %v210
  %v215 = vmul.f32 %v179, %v211
  %v216 = vmul.f32 %v180, %v212
  %217 = vst.msk [vmem:[%s5] sm:$0xff] %vm71, %v213
  %218 = vst.msk [vmem:[%s5 + $0x8] sm:$0xff] %vm71, %v214
  %219 = vst.msk [vmem:[%s5 + $0x10] sm:$0xff] %vm71, %v215
  %220 = vst.msk [vmem:[%s5 + $0x18] sm:$0xff] %vm71, %v216
  // Predicated region
  $region22: #{hubert_forward.10} parent=0 // pred_check
    _
  $region23: #{hubert_forward.10} parent=0 // pred_check_branch
    %222 = sbr.rel (0) target = $region25
  $region24: #{hubert_forward.10} parent=0 // pred_region
    _
  $region25: #{hubert_forward.10} parent=0 // pred_fallthru
    _
  // Predicated region
  $region26: #{hubert_forward.10} parent=0 // pred_check
    _
  $region27: #{hubert_forward.10} parent=0 // pred_check_branch
    %224 = sbr.rel (0) target = $region29
  $region28: #{hubert_forward.10} parent=0 // pred_region
    _
  $region29: #{hubert_forward.10} parent=0 // pred_fallthru
    _

// kernel: hubert_forward.11
$region0: #{hubert_forward.11}
  #allocation0 [shape = 'u32[]', space=smem, size = 0x4, offset = 0x4, fixed_abs, tag = 'smem constant byte address 0x4 - core index']
  #allocation1 [shape = 'u32[72,128]{1,0:T(1,128)}', space=vmem, size = 0x9000, scoped, tag = 'internal scratch']
  %s0 = inlined_call_operand.vmem [shape: f32[32,32], index: 0, kind: input, shape index: {}]
  %s1 = inlined_call_operand.vmem [shape: f32[1,32], index: 1, kind: input, shape index: {}]
  %s2 = inlined_call_operand.vmem [shape: f32[1,32], index: 2, kind: input, shape index: {}]
  %s3 = inlined_call_operand.vmem [shape: f32[32,64], index: 3, kind: input, shape index: {}]
  %s4 = inlined_call_operand.vmem [shape: f32[1,64], index: 4, kind: input, shape index: {}]
  %s5 = inlined_call_operand.vmem [shape: f32[32,64], index: 5, kind: output, shape index: {}]
  %s6 = sld [smem:[#allocation0]]
  $region30: #{hubert_forward.11} parent=0
    _
  %s8 = ssub.s32 1, %s6
  %s9 = scalar_select 0, %s8, %s6
  // Predicated region
  $region2: #{hubert_forward.11} parent=0 // pred_check
    _
  $region3: #{hubert_forward.11} parent=0 // pred_check_branch
    %11 = sbr.rel (0) target = $region5
  $region4: #{hubert_forward.11} parent=0 // pred_region
    _
  $region5: #{hubert_forward.11} parent=0 // pred_fallthru
    _
  // Predicated region
  $region6: #{hubert_forward.11} parent=0 // pred_check
    _
  $region7: #{hubert_forward.11} parent=0 // pred_check_branch
    %13 = sbr.rel (0) target = $region9
  $region8: #{hubert_forward.11} parent=0 // pred_region
    _
  $region9: #{hubert_forward.11} parent=0 // pred_fallthru
    _
  // Predicated region
  $region10: #{hubert_forward.11} parent=0 // pred_check
    _
  $region11: #{hubert_forward.11} parent=0 // pred_check_branch
    %15 = sbr.rel (0) target = $region13
  $region12: #{hubert_forward.11} parent=0 // pred_region
    _
  $region13: #{hubert_forward.11} parent=0 // pred_fallthru
    _
  // Predicated region
  $region14: #{hubert_forward.11} parent=0 // pred_check
    _
  $region15: #{hubert_forward.11} parent=0 // pred_check_branch
    %17 = sbr.rel (0) target = $region17
  $region16: #{hubert_forward.11} parent=0 // pred_region
    _
  $region17: #{hubert_forward.11} parent=0 // pred_fallthru
    _
  // Predicated region
  $region18: #{hubert_forward.11} parent=0 // pred_check
    _
  $region19: #{hubert_forward.11} parent=0 // pred_check_branch
    %19 = sbr.rel (0) target = $region21
  $region20: #{hubert_forward.11} parent=0 // pred_region
    _
  $region21: #{hubert_forward.11} parent=0 // pred_fallthru
    _
  %v21 = vld [vmem:[%s0] sm:$0xff]
  %v22 = vld [vmem:[%s0 + $0x8] sm:$0xff]
  %v23 = vld [vmem:[%s0 + $0x10] sm:$0xff]
  %v24 = vld [vmem:[%s0 + $0x18] sm:$0xff]
  %v25 = vld [vmem:[%s1] sm:$0x1]
  %v26 = vld [vmem:[%s2] sm:$0x1]
  %vm27 = vcmask 261120
  %v28 = vsel %vm27, %v21, 0.0
  %29 = vadd.xlane.f32.xlu0 %v28
  %v30 = vpop.xlane.xlu0 %29
  %v31 = vsel %vm27, %v22, 0.0
  %32 = vadd.xlane.f32.xlu0 %v31
  %v33 = vpop.xlane.xlu0 %32
  %v34 = vsel %vm27, %v23, 0.0
  %35 = vadd.xlane.f32.xlu0 %v34
  %v36 = vpop.xlane.xlu0 %35
  %v37 = vsel %vm27, %v24, 0.0
  %38 = vadd.xlane.f32.xlu0 %v37
  %v39 = vpop.xlane.xlu0 %38
  %v40 = vrcp.pop 32.0
  %v41 = vmul.f32 32.0, %v40
  %v42 = vsub.f32 1.0, %v41
  %v43 = vmul.f32 %v40, %v42
  %v44 = vadd.f32 %v40, %v43
  %vm45 = vweird.f32 %v40
  %v46 = vsel %vm45, %v40, %v44
  %v47 = vmul.f32 %v30, %v46
  %v48 = vmul.f32 %v33, %v46
  %v49 = vmul.f32 %v36, %v46
  %v50 = vmul.f32 %v39, %v46
  %v51 = vsub.f32 %v21, %v47
  %v52 = vsub.f32 %v22, %v48
  %v53 = vsub.f32 %v23, %v49
  %v54 = vsub.f32 %v24, %v50
  %v55 = vmul.f32 %v51, %v51
  %v56 = vmul.f32 %v52, %v52
  %v57 = vmul.f32 %v53, %v53
  %v58 = vmul.f32 %v54, %v54
  %v59 = vsel %vm27, %v55, 0.0
  %60 = vadd.xlane.f32.xlu0 %v59
  %v61 = vpop.xlane.xlu0 %60
  %v62 = vsel %vm27, %v56, 0.0
  %63 = vadd.xlane.f32.xlu0 %v62
  %v64 = vpop.xlane.xlu0 %63
  %v65 = vsel %vm27, %v57, 0.0
  %66 = vadd.xlane.f32.xlu0 %v65
  %v67 = vpop.xlane.xlu0 %66
  %v68 = vsel %vm27, %v58, 0.0
  %69 = vadd.xlane.f32.xlu0 %v68
  %v70 = vpop.xlane.xlu0 %69
  %v71 = vmul.f32 %v61, %v46
  %v72 = vmul.f32 %v64, %v46
  %v73 = vmul.f32 %v67, %v46
  %v74 = vmul.f32 %v70, %v46
  %v75 = vadd.f32 %v71, 1e-05
  %v76 = vadd.f32 %v72, 1e-05
  %v77 = vadd.f32 %v73, 1e-05
  %v78 = vadd.f32 %v74, 1e-05
  %v79 = vrsqrt.pop %v75
  %v80 = vmul.f32 %v79, %v75
  %v81 = vmul.f32 %v80, %v79
  %v82 = vmul.f32 0.5, %v81
  %v83 = vsub.f32 1.5, %v82
  %v84 = vmul.f32 %v79, %v83
  %vm85 = vweird.f32 %v75
  %vm86 = vweird.f32 %v79
  %vm87 = vmor %vm85, %vm86
  %v88 = vsel %vm87, %v79, %v84
  %v89 = vrsqrt.pop %v76
  %v90 = vmul.f32 %v89, %v76
  %v91 = vmul.f32 %v90, %v89
  %v92 = vmul.f32 0.5, %v91
  %v93 = vsub.f32 1.5, %v92
  %v94 = vmul.f32 %v89, %v93
  %vm95 = vweird.f32 %v76
  %vm96 = vweird.f32 %v89
  %vm97 = vmor %vm95, %vm96
  %v98 = vsel %vm97, %v89, %v94
  %v99 = vrsqrt.pop %v77
  %v100 = vmul.f32 %v99, %v77
  %v101 = vmul.f32 %v100, %v99
  %v102 = vmul.f32 0.5, %v101
  %v103 = vsub.f32 1.5, %v102
  %v104 = vmul.f32 %v99, %v103
  %vm105 = vweird.f32 %v77
  %vm106 = vweird.f32 %v99
  %vm107 = vmor %vm105, %vm106
  %v108 = vsel %vm107, %v99, %v104
  %v109 = vrsqrt.pop %v78
  %v110 = vmul.f32 %v109, %v78
  %v111 = vmul.f32 %v110, %v109
  %v112 = vmul.f32 0.5, %v111
  %v113 = vsub.f32 1.5, %v112
  %v114 = vmul.f32 %v109, %v113
  %vm115 = vweird.f32 %v78
  %vm116 = vweird.f32 %v109
  %vm117 = vmor %vm115, %vm116
  %v118 = vsel %vm117, %v109, %v114
  %v119 = vmul.f32 %v51, %v88
  %v120 = vmul.f32 %v52, %v98
  %v121 = vmul.f32 %v53, %v108
  %v122 = vmul.f32 %v54, %v118
  %v124 = vperm.slane %v25, 0
  %v126 = vmul.f32 %v119, %v124
  %v127 = vmul.f32 %v120, %v124
  %v128 = vmul.f32 %v121, %v124
  %v129 = vmul.f32 %v122, %v124
  %v131 = vperm.slane %v26, 0
  %v133 = vadd.f32 %v126, %v131
  %v134 = vadd.f32 %v127, %v131
  %v135 = vadd.f32 %v128, %v131
  %v136 = vadd.f32 %v129, %v131
  %v137 = vld [vmem:[%s3] sm:$0xff]
  %v138 = vld [vmem:[%s3 + $0x8] sm:$0xff]
  %v139 = vld [vmem:[%s3 + $0x10] sm:$0xff]
  %v140 = vld [vmem:[%s3 + $0x18] sm:$0xff]
  %v141 = vpack.c.bf16 %v134, %v133
  %v142 = vpack.c.bf16 %v136, %v135
  %v143 = vpack.c.bf16 %v138, %v137
  %v144 = vpack.c.bf16 %v140, %v139
  %v145 = vld [vmem:[%s4] sm:$0x1]
  %v147 = vperm.slane %v145, 0
  %v150 = vsel %vm27, %v141, 0
  %v153 = vsel %vm27, %v142, 0
  %155 = vmatpush.bf16.msra.mxu0 0
  %156 = vmatpush.bf16.msra.mxu0 0
  %157 = vmatpush.bf16.msra.mxu0 0
  %158 = vmatpush.bf16.msra.mxu0 0
  %159 = vmatpush.bf16.msra.mxu0 0
  %160 = vmatpush.bf16.msra.mxu0 0
  %161 = vmatpush.bf16.msra.mxu0 %v144
  %162 = vmatpush.bf16.msra.mxu0 %v143
  %163 = vmatmul.bf16.gmra.mxu0 %v150
  %v164 = vpop.f32.mrf.mxu0
  %v165 = vadd.f32 %v147, %v164
  %v166 = vpop.f32.mrf.mxu0
  %v167 = vadd.f32 %v147, %v166
  %168 = vmatmul.bf16.gmra.mxu0 %v153
  %v169 = vpop.f32.mrf.mxu0
  %v170 = vadd.f32 %v147, %v169
  %v171 = vpop.f32.mrf.mxu0
  %v172 = vadd.f32 %v147, %v171
  %173 = vdwg.mxu0
  %vm174 = vcmask 523264
  %175 = vst.msk [vmem:[%s5] sm:$0xff] %vm174, %v165
  %176 = vst.msk [vmem:[%s5 + $0x8] sm:$0xff] %vm174, %v167
  %177 = vst.msk [vmem:[%s5 + $0x10] sm:$0xff] %vm174, %v170
  %178 = vst.msk [vmem:[%s5 + $0x18] sm:$0xff] %vm174, %v172
  // Predicated region
  $region22: #{hubert_forward.11} parent=0 // pred_check
    _
  $region23: #{hubert_forward.11} parent=0 // pred_check_branch
    %180 = sbr.rel (0) target = $region25
  $region24: #{hubert_forward.11} parent=0 // pred_region
    _
  $region25: #{hubert_forward.11} parent=0 // pred_fallthru
    _
  // Predicated region
  $region26: #{hubert_forward.11} parent=0 // pred_check
    _
  $region27: #{hubert_forward.11} parent=0 // pred_check_branch
    %182 = sbr.rel (0) target = $region29
  $region28: #{hubert_forward.11} parent=0 // pred_region
    _
  $region29: #{hubert_forward.11} parent=0 // pred_fallthru
    _

// kernel: hubert_forward.12
$region0: #{hubert_forward.12}
  #allocation0 [shape = 'u32[]', space=smem, size = 0x4, offset = 0x4, fixed_abs, tag = 'smem constant byte address 0x4 - core index']
  #allocation1 [shape = 'u32[72,128]{1,0:T(1,128)}', space=vmem, size = 0x9000, scoped, tag = 'internal scratch']
  %s0 = inlined_call_operand.vmem [shape: f32[40,512], index: 0, kind: input, shape index: {}]
  %s1 = inlined_call_operand.vmem [shape: f32[512,64], index: 1, kind: input, shape index: {}]
  %s2 = inlined_call_operand.vmem [shape: f32[1,64], index: 2, kind: input, shape index: {}]
  %s3 = inlined_call_operand.vmem [shape: f32[40,64], index: 3, kind: output, shape index: {}]
  %s4 = sld [smem:[#allocation0]]
  $region22: #{hubert_forward.12} parent=0
    _
  %s6 = ssub.s32 1, %s4
  %s7 = scalar_select 0, %s6, %s4
  // Predicated region
  $region2: #{hubert_forward.12} parent=0 // pred_check
    _
  $region3: #{hubert_forward.12} parent=0 // pred_check_branch
    %9 = sbr.rel (0) target = $region5
  $region4: #{hubert_forward.12} parent=0 // pred_region
    _
  $region5: #{hubert_forward.12} parent=0 // pred_fallthru
    _
  // Predicated region
  $region6: #{hubert_forward.12} parent=0 // pred_check
    _
  $region7: #{hubert_forward.12} parent=0 // pred_check_branch
    %11 = sbr.rel (0) target = $region9
  $region8: #{hubert_forward.12} parent=0 // pred_region
    _
  $region9: #{hubert_forward.12} parent=0 // pred_fallthru
    _
  // Predicated region
  $region10: #{hubert_forward.12} parent=0 // pred_check
    _
  $region11: #{hubert_forward.12} parent=0 // pred_check_branch
    %13 = sbr.rel (0) target = $region13
  $region12: #{hubert_forward.12} parent=0 // pred_region
    _
  $region13: #{hubert_forward.12} parent=0 // pred_fallthru
    _
  %v14 = vld [vmem:[%s0] sm:$0xff]
  %v15 = vld [vmem:[%s0 + $0x8] sm:$0xff]
  %v16 = vld [vmem:[%s0 + $0x10] sm:$0xff]
  %v17 = vld [vmem:[%s0 + $0x18] sm:$0xff]
  %v18 = vld [vmem:[%s0 + $0x20] sm:$0xff]
  %v19 = vld [vmem:[%s0 + $0x28] sm:$0xff]
  %v20 = vld [vmem:[%s0 + $0x30] sm:$0xff]
  %v21 = vld [vmem:[%s0 + $0x38] sm:$0xff]
  %v22 = vld [vmem:[%s0 + $0x40] sm:$0xff]
  %v23 = vld [vmem:[%s0 + $0x48] sm:$0xff]
  %v24 = vld [vmem:[%s0 + $0x50] sm:$0xff]
  %v25 = vld [vmem:[%s0 + $0x58] sm:$0xff]
  %v26 = vld [vmem:[%s0 + $0x60] sm:$0xff]
  %v27 = vld [vmem:[%s0 + $0x68] sm:$0xff]
  %v28 = vld [vmem:[%s0 + $0x70] sm:$0xff]
  %v29 = vld [vmem:[%s0 + $0x78] sm:$0xff]
  %v30 = vld [vmem:[%s0 + $0x80] sm:$0xff]
  %v31 = vld [vmem:[%s0 + $0x88] sm:$0xff]
  %v32 = vld [vmem:[%s0 + $0x90] sm:$0xff]
  %v33 = vld [vmem:[%s0 + $0x98] sm:$0xff]
  %v34 = vld [vmem:[%s1] sm:$0xff]
  %v35 = vld [vmem:[%s1 + $0x8] sm:$0xff]
  %v36 = vld [vmem:[%s1 + $0x10] sm:$0xff]
  %v37 = vld [vmem:[%s1 + $0x18] sm:$0xff]
  %v38 = vld [vmem:[%s1 + $0x20] sm:$0xff]
  %v39 = vld [vmem:[%s1 + $0x28] sm:$0xff]
  %v40 = vld [vmem:[%s1 + $0x30] sm:$0xff]
  %v41 = vld [vmem:[%s1 + $0x38] sm:$0xff]
  %v42 = vld [vmem:[%s1 + $0x40] sm:$0xff]
  %v43 = vld [vmem:[%s1 + $0x48] sm:$0xff]
  %v44 = vld [vmem:[%s1 + $0x50] sm:$0xff]
  %v45 = vld [vmem:[%s1 + $0x58] sm:$0xff]
  %v46 = vld [vmem:[%s1 + $0x60] sm:$0xff]
  %v47 = vld [vmem:[%s1 + $0x68] sm:$0xff]
  %v48 = vld [vmem:[%s1 + $0x70] sm:$0xff]
  %v49 = vld [vmem:[%s1 + $0x78] sm:$0xff]
  %v50 = vld [vmem:[%s1 + $0x80] sm:$0xff]
  %v51 = vld [vmem:[%s1 + $0x88] sm:$0xff]
  %v52 = vld [vmem:[%s1 + $0x90] sm:$0xff]
  %v53 = vld [vmem:[%s1 + $0x98] sm:$0xff]
  %v54 = vld [vmem:[%s1 + $0xa0] sm:$0xff]
  %v55 = vld [vmem:[%s1 + $0xa8] sm:$0xff]
  %v56 = vld [vmem:[%s1 + $0xb0] sm:$0xff]
  %v57 = vld [vmem:[%s1 + $0xb8] sm:$0xff]
  %v58 = vld [vmem:[%s1 + $0xc0] sm:$0xff]
  %v59 = vld [vmem:[%s1 + $0xc8] sm:$0xff]
  %v60 = vld [vmem:[%s1 + $0xd0] sm:$0xff]
  %v61 = vld [vmem:[%s1 + $0xd8] sm:$0xff]
  %v62 = vld [vmem:[%s1 + $0xe0] sm:$0xff]
  %v63 = vld [vmem:[%s1 + $0xe8] sm:$0xff]
  %v64 = vld [vmem:[%s1 + $0xf0] sm:$0xff]
  %v65 = vld [vmem:[%s1 + $0xf8] sm:$0xff]
  %v66 = vld [vmem:[%s1 + $0x100] sm:$0xff]
  %v67 = vld [vmem:[%s1 + $0x108] sm:$0xff]
  %v68 = vld [vmem:[%s1 + $0x110] sm:$0xff]
  %v69 = vld [vmem:[%s1 + $0x118] sm:$0xff]
  %v70 = vld [vmem:[%s1 + $0x120] sm:$0xff]
  %v71 = vld [vmem:[%s1 + $0x128] sm:$0xff]
  %v72 = vld [vmem:[%s1 + $0x130] sm:$0xff]
  %v73 = vld [vmem:[%s1 + $0x138] sm:$0xff]
  %v74 = vld [vmem:[%s1 + $0x140] sm:$0xff]
  %v75 = vld [vmem:[%s1 + $0x148] sm:$0xff]
  %v76 = vld [vmem:[%s1 + $0x150] sm:$0xff]
  %v77 = vld [vmem:[%s1 + $0x158] sm:$0xff]
  %v78 = vld [vmem:[%s1 + $0x160] sm:$0xff]
  %v79 = vld [vmem:[%s1 + $0x168] sm:$0xff]
  %v80 = vld [vmem:[%s1 + $0x170] sm:$0xff]
  %v81 = vld [vmem:[%s1 + $0x178] sm:$0xff]
  %v82 = vld [vmem:[%s1 + $0x180] sm:$0xff]
  %v83 = vld [vmem:[%s1 + $0x188] sm:$0xff]
  %v84 = vld [vmem:[%s1 + $0x190] sm:$0xff]
  %v85 = vld [vmem:[%s1 + $0x198] sm:$0xff]
  %v86 = vld [vmem:[%s1 + $0x1a0] sm:$0xff]
  %v87 = vld [vmem:[%s1 + $0x1a8] sm:$0xff]
  %v88 = vld [vmem:[%s1 + $0x1b0] sm:$0xff]
  %v89 = vld [vmem:[%s1 + $0x1b8] sm:$0xff]
  %v90 = vld [vmem:[%s1 + $0x1c0] sm:$0xff]
  %v91 = vld [vmem:[%s1 + $0x1c8] sm:$0xff]
  %v92 = vld [vmem:[%s1 + $0x1d0] sm:$0xff]
  %v93 = vld [vmem:[%s1 + $0x1d8] sm:$0xff]
  %v94 = vld [vmem:[%s1 + $0x1e0] sm:$0xff]
  %v95 = vld [vmem:[%s1 + $0x1e8] sm:$0xff]
  %v96 = vld [vmem:[%s1 + $0x1f0] sm:$0xff]
  %v97 = vld [vmem:[%s1 + $0x1f8] sm:$0xff]
  %v98 = vpack.c.bf16 %v18, %v14
  %v99 = vpack.c.bf16 %v19, %v15
  %v100 = vpack.c.bf16 %v20, %v16
  %v101 = vpack.c.bf16 %v21, %v17
  %v102 = vpack.c.bf16 %v26, %v22
  %v103 = vpack.c.bf16 %v27, %v23
  %v104 = vpack.c.bf16 %v28, %v24
  %v105 = vpack.c.bf16 %v29, %v25
  %v106 = vpack.c.bf16 %v30, %v30
  %v107 = vpack.c.bf16 %v31, %v31
  %v108 = vpack.c.bf16 %v32, %v32
  %v109 = vpack.c.bf16 %v33, %v33
  %v110 = vpack.c.bf16 %v35, %v34
  %v111 = vpack.c.bf16 %v37, %v36
  %v112 = vpack.c.bf16 %v39, %v38
  %v113 = vpack.c.bf16 %v41, %v40
  %v114 = vpack.c.bf16 %v43, %v42
  %v115 = vpack.c.bf16 %v45, %v44
  %v116 = vpack.c.bf16 %v47, %v46
  %v117 = vpack.c.bf16 %v49, %v48
  %v118 = vpack.c.bf16 %v51, %v50
  %v119 = vpack.c.bf16 %v53, %v52
  %v120 = vpack.c.bf16 %v55, %v54
  %v121 = vpack.c.bf16 %v57, %v56
  %v122 = vpack.c.bf16 %v59, %v58
  %v123 = vpack.c.bf16 %v61, %v60
  %v124 = vpack.c.bf16 %v63, %v62
  %v125 = vpack.c.bf16 %v65, %v64
  %v126 = vpack.c.bf16 %v67, %v66
  %v127 = vpack.c.bf16 %v69, %v68
  %v128 = vpack.c.bf16 %v71, %v70
  %v129 = vpack.c.bf16 %v73, %v72
  %v130 = vpack.c.bf16 %v75, %v74
  %v131 = vpack.c.bf16 %v77, %v76
  %v132 = vpack.c.bf16 %v79, %v78
  %v133 = vpack.c.bf16 %v81, %v80
  %v134 = vpack.c.bf16 %v83, %v82
  %v135 = vpack.c.bf16 %v85, %v84
  %v136 = vpack.c.bf16 %v87, %v86
  %v137 = vpack.c.bf16 %v89, %v88
  %v138 = vpack.c.bf16 %v91, %v90
  %v139 = vpack.c.bf16 %v93, %v92
  %v140 = vpack.c.bf16 %v95, %v94
  %v141 = vpack.c.bf16 %v97, %v96
  %v142 = vld [vmem:[%s2] sm:$0x1]
  %v144 = vperm.slane %v142, 0
  %146 = vmatpush.bf16.msra.mxu0 %v117
  %147 = vmatpush.bf16.msra.mxu0 %v116
  %148 = vmatpush.bf16.msra.mxu0 %v115
  %149 = vmatpush.bf16.msra.mxu0 %v114
  %150 = vmatpush.bf16.msra.mxu0 %v113
  %151 = vmatpush.bf16.msra.mxu0 %v112
  %152 = vmatpush.bf16.msra.mxu0 %v111
  %153 = vmatpush.bf16.msra.mxu0 %v110
  %154 = vmatmul.bf16.gmra.mxu0 %v98
  %v155 = vpop.f32.mrf.mxu0
  %v156 = vadd.f32 %v144, %v155
  %v157 = vpop.f32.mrf.mxu0
  %v158 = vadd.f32 %v144, %v157
  %159 = vmatmul.bf16.gmra.mxu0 %v102
  %v160 = vpop.f32.mrf.mxu0
  %v161 = vadd.f32 %v144, %v160
  %v162 = vpop.f32.mrf.mxu0
  %v163 = vadd.f32 %v144, %v162
  %164 = vmatmul.bf16.gmra.mxu0 %v106
  %v165 = vpop.f32.mrf.mxu0
  %v166 = vadd.f32 %v144, %v165
  %v167 = vpop.f32.mrf.mxu0
  %168 = vdwg.mxu0
  %169 = vmatpush.bf16.msra.mxu0 %v125
  %170 = vmatpush.bf16.msra.mxu0 %v124
  %171 = vmatpush.bf16.msra.mxu0 %v123
  %172 = vmatpush.bf16.msra.mxu0 %v122
  %173 = vmatpush.bf16.msra.mxu0 %v121
  %174 = vmatpush.bf16.msra.mxu0 %v120
  %175 = vmatpush.bf16.msra.mxu0 %v119
  %176 = vmatpush.bf16.msra.mxu0 %v118
  %177 = vmatmul.bf16.gmra.mxu0 %v99
  %v178 = vpop.f32.mrf.mxu0
  %v179 = vadd.f32 %v156, %v178
  %v180 = vpop.f32.mrf.mxu0
  %v181 = vadd.f32 %v158, %v180
  %182 = vmatmul.bf16.gmra.mxu0 %v103
  %v183 = vpop.f32.mrf.mxu0
  %v184 = vadd.f32 %v161, %v183
  %v185 = vpop.f32.mrf.mxu0
  %v186 = vadd.f32 %v163, %v185
  %187 = vmatmul.bf16.gmra.mxu0 %v107
  %v188 = vpop.f32.mrf.mxu0
  %v189 = vadd.f32 %v166, %v188
  %v190 = vpop.f32.mrf.mxu0
  %191 = vdwg.mxu0
  %192 = vmatpush.bf16.msra.mxu0 %v133
  %193 = vmatpush.bf16.msra.mxu0 %v132
  %194 = vmatpush.bf16.msra.mxu0 %v131
  %195 = vmatpush.bf16.msra.mxu0 %v130
  %196 = vmatpush.bf16.msra.mxu0 %v129
  %197 = vmatpush.bf16.msra.mxu0 %v128
  %198 = vmatpush.bf16.msra.mxu0 %v127
  %199 = vmatpush.bf16.msra.mxu0 %v126
  %200 = vmatmul.bf16.gmra.mxu0 %v100
  %v201 = vpop.f32.mrf.mxu0
  %v202 = vadd.f32 %v179, %v201
  %v203 = vpop.f32.mrf.mxu0
  %v204 = vadd.f32 %v181, %v203
  %205 = vmatmul.bf16.gmra.mxu0 %v104
  %v206 = vpop.f32.mrf.mxu0
  %v207 = vadd.f32 %v184, %v206
  %v208 = vpop.f32.mrf.mxu0
  %v209 = vadd.f32 %v186, %v208
  %210 = vmatmul.bf16.gmra.mxu0 %v108
  %v211 = vpop.f32.mrf.mxu0
  %v212 = vadd.f32 %v189, %v211
  %v213 = vpop.f32.mrf.mxu0
  %214 = vdwg.mxu0
  %215 = vmatpush.bf16.msra.mxu0 %v141
  %216 = vmatpush.bf16.msra.mxu0 %v140
  %217 = vmatpush.bf16.msra.mxu0 %v139
  %218 = vmatpush.bf16.msra.mxu0 %v138
  %219 = vmatpush.bf16.msra.mxu0 %v137
  %220 = vmatpush.bf16.msra.mxu0 %v136
  %221 = vmatpush.bf16.msra.mxu0 %v135
  %222 = vmatpush.bf16.msra.mxu0 %v134
  %223 = vmatmul.bf16.gmra.mxu0 %v101
  %v224 = vpop.f32.mrf.mxu0
  %v225 = vadd.f32 %v202, %v224
  %v226 = vpop.f32.mrf.mxu0
  %v227 = vadd.f32 %v204, %v226
  %228 = vmatmul.bf16.gmra.mxu0 %v105
  %v229 = vpop.f32.mrf.mxu0
  %v230 = vadd.f32 %v207, %v229
  %v231 = vpop.f32.mrf.mxu0
  %v232 = vadd.f32 %v209, %v231
  %233 = vmatmul.bf16.gmra.mxu0 %v109
  %v234 = vpop.f32.mrf.mxu0
  %v235 = vadd.f32 %v212, %v234
  %v236 = vpop.f32.mrf.mxu0
  %237 = vdwg.mxu0
  %v238 = vmul.f32 %v225, %v225
  %v239 = vmul.f32 %v227, %v227
  %v240 = vmul.f32 %v230, %v230
  %v241 = vmul.f32 %v232, %v232
  %v242 = vmul.f32 %v235, %v235
  %v243 = vmul.f32 %v225, %v238
  %v244 = vmul.f32 %v227, %v239
  %v245 = vmul.f32 %v230, %v240
  %v246 = vmul.f32 %v232, %v241
  %v247 = vmul.f32 %v235, %v242
  %v248 = vmul.f32 %v243, 0.044715
  %v249 = vmul.f32 %v244, 0.044715
  %v250 = vmul.f32 %v245, 0.044715
  %v251 = vmul.f32 %v246, 0.044715
  %v252 = vmul.f32 %v247, 0.044715
  %v253 = vadd.f32 %v225, %v248
  %v254 = vadd.f32 %v227, %v249
  %v255 = vadd.f32 %v230, %v250
  %v256 = vadd.f32 %v232, %v251
  %v257 = vadd.f32 %v235, %v252
  %v258 = vmul.f32 %v253, 0.7978846
  %v259 = vmul.f32 %v254, 0.7978846
  %v260 = vmul.f32 %v255, 0.7978846
  %v261 = vmul.f32 %v256, 0.7978846
  %v262 = vmul.f32 %v257, 0.7978846
  %v263 = vtanh.pop %v258
  %v264 = vtanh.pop %v259
  %v265 = vtanh.pop %v260
  %v266 = vtanh.pop %v261
  %v267 = vtanh.pop %v262
  %v268 = vadd.f32 %v263, 1.0
  %v269 = vadd.f32 %v264, 1.0
  %v270 = vadd.f32 %v265, 1.0
  %v271 = vadd.f32 %v266, 1.0
  %v272 = vadd.f32 %v267, 1.0
  %v273 = vmul.f32 %v268, 0.5
  %v274 = vmul.f32 %v269, 0.5
  %v275 = vmul.f32 %v270, 0.5
  %v276 = vmul.f32 %v271, 0.5
  %v277 = vmul.f32 %v272, 0.5
  %v278 = vmul.f32 %v225, %v273
  %v279 = vmul.f32 %v227, %v274
  %v280 = vmul.f32 %v230, %v275
  %v281 = vmul.f32 %v232, %v276
  %v282 = vmul.f32 %v235, %v277
  %vm283 = vcmask 523264
  %284 = vst.msk [vmem:[%s3] sm:$0xff] %vm283, %v278
  %285 = vst.msk [vmem:[%s3 + $0x8] sm:$0xff] %vm283, %v279
  %286 = vst.msk [vmem:[%s3 + $0x10] sm:$0xff] %vm283, %v280
  %287 = vst.msk [vmem:[%s3 + $0x18] sm:$0xff] %vm283, %v281
  %288 = vst.msk [vmem:[%s3 + $0x20] sm:$0xff] %vm283, %v282
  // Predicated region
  $region14: #{hubert_forward.12} parent=0 // pred_check
    _
  $region15: #{hubert_forward.12} parent=0 // pred_check_branch
    %290 = sbr.rel (0) target = $region17
  $region16: #{hubert_forward.12} parent=0 // pred_region
    _
  $region17: #{hubert_forward.12} parent=0 // pred_fallthru
    _
  // Predicated region
  $region18: #{hubert_forward.12} parent=0 // pred_check
    _
  $region19: #{hubert_forward.12} parent=0 // pred_check_branch
    %292 = sbr.rel (0) target = $region21
  $region20: #{hubert_forward.12} parent=0 // pred_region
    _
  $region21: #{hubert_forward.12} parent=0 // pred_fallthru
    _

// kernel: hubert_forward.15
$region0: #{hubert_forward.15}
  #allocation0 [shape = 'u32[]', space=smem, size = 0x4, offset = 0x4, fixed_abs, tag = 'smem constant byte address 0x4 - core index']
  #allocation1 [shape = 'u32[72,128]{1,0:T(1,128)}', space=vmem, size = 0x9000, scoped, tag = 'internal scratch']
  %s0 = inlined_call_operand.vmem [shape: f32[32,64], index: 0, kind: input, shape index: {}]
  %s1 = inlined_call_operand.vmem [shape: f32[1,64], index: 1, kind: input, shape index: {}]
  %s2 = inlined_call_operand.vmem [shape: f32[1,64], index: 2, kind: input, shape index: {}]
  %s3 = inlined_call_operand.hbm [shape: f32[32,64], index: 3, kind: output, shape index: {}]
  %s4 = sld [smem:[#allocation0]]
  $region22: #{hubert_forward.15} parent=0
    _
  %s6 = ssub.s32 1, %s4
  %s7 = scalar_select 0, %s6, %s4
  $region1: #{hubert_forward.15} parent=0
    #allocation2 [shape = 'u8[16384]{0}', space=vmem, size = 0x4000, scoped, tag = 'output window, operand 0, single buffered']
    #allocation3 [shape = 's32[1]{0}', space=sflag, size = 0x4, scoped, tag = 'scoped memory for hubert_forward.15']
    %8 = vsyncpa [#allocation3], 0
    // Predicated region
    $region2: #{hubert_forward.15} parent=1 // pred_check
      _
    $region3: #{hubert_forward.15} parent=1 // pred_check_branch
      %10 = sbr.rel (0) target = $region5
    $region4: #{hubert_forward.15} parent=1 // pred_region
      _
    $region5: #{hubert_forward.15} parent=1 // pred_fallthru
      _
    // Predicated region
    $region6: #{hubert_forward.15} parent=1 // pred_check
      _
    $region7: #{hubert_forward.15} parent=1 // pred_check_branch
      %12 = sbr.rel (0) target = $region9
    $region8: #{hubert_forward.15} parent=1 // pred_region
      _
    $region9: #{hubert_forward.15} parent=1 // pred_fallthru
      _
    // Predicated region
    $region10: #{hubert_forward.15} parent=1 // pred_check
      _
    $region11: #{hubert_forward.15} parent=1 // pred_check_branch
      %14 = sbr.rel (0) target = $region13
    $region12: #{hubert_forward.15} parent=1 // pred_region
      _
    $region13: #{hubert_forward.15} parent=1 // pred_fallthru
      _
    %v15 = vld [vmem:[%s0] sm:$0xff]
    %v16 = vld [vmem:[%s0 + $0x8] sm:$0xff]
    %v17 = vld [vmem:[%s0 + $0x10] sm:$0xff]
    %v18 = vld [vmem:[%s0 + $0x18] sm:$0xff]
    %v19 = vld [vmem:[%s1] sm:$0x1]
    %v20 = vld [vmem:[%s2] sm:$0x1]
    %vm21 = vcmask 523264
    %v22 = vsel %vm21, %v15, 0.0
    %23 = vadd.xlane.f32.xlu0 %v22
    %v24 = vpop.xlane.xlu0 %23
    %v25 = vsel %vm21, %v16, 0.0
    %26 = vadd.xlane.f32.xlu0 %v25
    %v27 = vpop.xlane.xlu0 %26
    %v28 = vsel %vm21, %v17, 0.0
    %29 = vadd.xlane.f32.xlu0 %v28
    %v30 = vpop.xlane.xlu0 %29
    %v31 = vsel %vm21, %v18, 0.0
    %32 = vadd.xlane.f32.xlu0 %v31
    %v33 = vpop.xlane.xlu0 %32
    %v34 = vrcp.pop 64.0
    %v35 = vmul.f32 64.0, %v34
    %v36 = vsub.f32 1.0, %v35
    %v37 = vmul.f32 %v34, %v36
    %v38 = vadd.f32 %v34, %v37
    %vm39 = vweird.f32 %v34
    %v40 = vsel %vm39, %v34, %v38
    %v41 = vmul.f32 %v24, %v40
    %v42 = vmul.f32 %v27, %v40
    %v43 = vmul.f32 %v30, %v40
    %v44 = vmul.f32 %v33, %v40
    %v45 = vsub.f32 %v15, %v41
    %v46 = vsub.f32 %v16, %v42
    %v47 = vsub.f32 %v17, %v43
    %v48 = vsub.f32 %v18, %v44
    %v49 = vmul.f32 %v45, %v45
    %v50 = vmul.f32 %v46, %v46
    %v51 = vmul.f32 %v47, %v47
    %v52 = vmul.f32 %v48, %v48
    %v53 = vsel %vm21, %v49, 0.0
    %54 = vadd.xlane.f32.xlu0 %v53
    %v55 = vpop.xlane.xlu0 %54
    %v56 = vsel %vm21, %v50, 0.0
    %57 = vadd.xlane.f32.xlu0 %v56
    %v58 = vpop.xlane.xlu0 %57
    %v59 = vsel %vm21, %v51, 0.0
    %60 = vadd.xlane.f32.xlu0 %v59
    %v61 = vpop.xlane.xlu0 %60
    %v62 = vsel %vm21, %v52, 0.0
    %63 = vadd.xlane.f32.xlu0 %v62
    %v64 = vpop.xlane.xlu0 %63
    %v65 = vmul.f32 %v55, %v40
    %v66 = vmul.f32 %v58, %v40
    %v67 = vmul.f32 %v61, %v40
    %v68 = vmul.f32 %v64, %v40
    %v69 = vadd.f32 %v65, 1e-05
    %v70 = vadd.f32 %v66, 1e-05
    %v71 = vadd.f32 %v67, 1e-05
    %v72 = vadd.f32 %v68, 1e-05
    %v73 = vrsqrt.pop %v69
    %v74 = vmul.f32 %v73, %v69
    %v75 = vmul.f32 %v74, %v73
    %v76 = vmul.f32 0.5, %v75
    %v77 = vsub.f32 1.5, %v76
    %v78 = vmul.f32 %v73, %v77
    %vm79 = vweird.f32 %v69
    %vm80 = vweird.f32 %v73
    %vm81 = vmor %vm79, %vm80
    %v82 = vsel %vm81, %v73, %v78
    %v83 = vrsqrt.pop %v70
    %v84 = vmul.f32 %v83, %v70
    %v85 = vmul.f32 %v84, %v83
    %v86 = vmul.f32 0.5, %v85
    %v87 = vsub.f32 1.5, %v86
    %v88 = vmul.f32 %v83, %v87
    %vm89 = vweird.f32 %v70
    %vm90 = vweird.f32 %v83
    %vm91 = vmor %vm89, %vm90
    %v92 = vsel %vm91, %v83, %v88
    %v93 = vrsqrt.pop %v71
    %v94 = vmul.f32 %v93, %v71
    %v95 = vmul.f32 %v94, %v93
    %v96 = vmul.f32 0.5, %v95
    %v97 = vsub.f32 1.5, %v96
    %v98 = vmul.f32 %v93, %v97
    %vm99 = vweird.f32 %v71
    %vm100 = vweird.f32 %v93
    %vm101 = vmor %vm99, %vm100
    %v102 = vsel %vm101, %v93, %v98
    %v103 = vrsqrt.pop %v72
    %v104 = vmul.f32 %v103, %v72
    %v105 = vmul.f32 %v104, %v103
    %v106 = vmul.f32 0.5, %v105
    %v107 = vsub.f32 1.5, %v106
    %v108 = vmul.f32 %v103, %v107
    %vm109 = vweird.f32 %v72
    %vm110 = vweird.f32 %v103
    %vm111 = vmor %vm109, %vm110
    %v112 = vsel %vm111, %v103, %v108
    %v113 = vmul.f32 %v45, %v82
    %v114 = vmul.f32 %v46, %v92
    %v115 = vmul.f32 %v47, %v102
    %v116 = vmul.f32 %v48, %v112
    %v118 = vperm.slane %v19, 0
    %v120 = vmul.f32 %v113, %v118
    %v121 = vmul.f32 %v114, %v118
    %v122 = vmul.f32 %v115, %v118
    %v123 = vmul.f32 %v116, %v118
    %v125 = vperm.slane %v20, 0
    %v127 = vadd.f32 %v120, %v125
    %v128 = vadd.f32 %v121, %v125
    %v129 = vadd.f32 %v122, %v125
    %v130 = vadd.f32 %v123, %v125
    %131 = vst.msk [vmem:[#allocation2] sm:$0xff] %vm21, %v127
    %132 = vst.msk [vmem:[#allocation2 + $0x8] sm:$0xff] %vm21, %v128
    %133 = vst.msk [vmem:[#allocation2 + $0x10] sm:$0xff] %vm21, %v129
    %134 = vst.msk [vmem:[#allocation2 + $0x18] sm:$0xff] %vm21, %v130
    // Predicated region
    $region14: #{hubert_forward.15} parent=1 // pred_check
      _
    $region15: #{hubert_forward.15} parent=1 // pred_check_branch
      %136 = sbr.rel (0) target = $region17
    $region16: #{hubert_forward.15} parent=1 // pred_region
      %138 = vsyncadd [#allocation3], 0
      %s139 = sshll.u32 [#allocation2], 4
      %s140 = int_to_ptr.vmem [resolvable:$true] %s139
      %s141 = sshll.u32 %s3, 4
      %s142 = int_to_ptr.hbm [resolvable:$true] %s141
      %147 = dma.vmem_to_hbm [thread:$0]  %s140, 512, %s142, [#allocation3], 128, 128, 8
    $region17: #{hubert_forward.15} parent=1 // pred_fallthru
      _
    // Predicated region
    $region18: #{hubert_forward.15} parent=1 // pred_check
      _
    $region19: #{hubert_forward.15} parent=1 // pred_check_branch
      %149 = sbr.rel (0) target = $region21
    $region20: #{hubert_forward.15} parent=1 // pred_region
      %151 = dma.done [#allocation3], 512
    $region21: #{hubert_forward.15} parent=1 // pred_fallthru
      _
    %152 = vsyncpa [#allocation3], 1

// kernel: hubert_forward.13
$region0: #{hubert_forward.13}
  #allocation0 [shape = 'u32[]', space=smem, size = 0x4, offset = 0x4, fixed_abs, tag = 'smem constant byte address 0x4 - core index']
  #allocation1 [shape = 'u32[72,128]{1,0:T(1,128)}', space=vmem, size = 0x9000, scoped, tag = 'internal scratch']
  %s0 = inlined_call_operand.vmem [shape: f32[2,16,64], index: 0, kind: input, shape index: {}]
  %s1 = inlined_call_operand.vmem [shape: f32[1,64], index: 1, kind: input, shape index: {}]
  %s2 = inlined_call_operand.vmem [shape: f32[1,64], index: 2, kind: input, shape index: {}]
  %s3 = inlined_call_operand.vmem [shape: f32[64,192], index: 3, kind: input, shape index: {}]
  %s4 = inlined_call_operand.vmem [shape: f32[1,192], index: 4, kind: input, shape index: {}]
  %s5 = inlined_call_operand.vmem [shape: f32[64,64], index: 5, kind: input, shape index: {}]
  %s6 = inlined_call_operand.vmem [shape: f32[1,64], index: 6, kind: input, shape index: {}]
  %s7 = inlined_call_operand.vmem [shape: f32[1,64], index: 7, kind: input, shape index: {}]
  %s8 = inlined_call_operand.vmem [shape: f32[1,64], index: 8, kind: input, shape index: {}]
  %s9 = inlined_call_operand.vmem [shape: f32[64,128], index: 9, kind: input, shape index: {}]
  %s10 = inlined_call_operand.vmem [shape: f32[1,128], index: 10, kind: input, shape index: {}]
  %s11 = inlined_call_operand.vmem [shape: f32[128,64], index: 11, kind: input, shape index: {}]
  %s12 = inlined_call_operand.vmem [shape: f32[1,64], index: 12, kind: input, shape index: {}]
  %s13 = inlined_call_operand.vmem [shape: f32[2,16,64], index: 13, kind: output, shape index: {}]
  %s14 = sld [smem:[#allocation0]]
  $region85: #{hubert_forward.13} parent=0
    _
  %s16 = ssub.s32 1, %s14
  %s17 = scalar_select 0, %s16, %s14
  loop: start=0, step=1, limit=4
  $region2: #{hubert_forward.13} parent=0 // loop_pre_header
    _
  $region3: #{hubert_forward.13} parent=0 // loop_header
    %s19 = sphi 0, %s23
    %p20 = scmp.ge.s32.totalorder %s19, 4
    %s29 = sphi 0, %s31
    %s32 = sphi 0, %s29
    %s33 = sphi 0, %s32
    %s49 = sphi 0, %s33
    %s53 = sphi 0, %s53
    %s55 = sphi 0, %s53
    %s56 = sphi 0, %s55
    %s70 = sphi 0, %s56
    %s74 = sphi 0, %s74
    %s76 = sphi 0, %s74
    %s77 = sphi 0, %s76
    %s91 = sphi 0, %s77
    %s95 = sphi 0, %s95
    %s97 = sphi 0, %s95
    %s98 = sphi 0, %s97
    %s112 = sphi 0, %s98
    %s116 = sphi 0, %s116
    %s118 = sphi 0, %s116
    %s119 = sphi 0, %s118
    %s133 = sphi 0, %s119
    %s137 = sphi 0, %s137
    %s139 = sphi 0, %s137
    %s140 = sphi 0, %s139
    %s154 = sphi 0, %s140
    %s158 = sphi 0, %s158
    %s160 = sphi 0, %s158
    %s161 = sphi 0, %s160
    %s175 = sphi 0, %s161
    %s179 = sphi 0, %s179
    %s181 = sphi 0, %s179
    %s182 = sphi 0, %s181
    %s196 = sphi 0, %s182
    %s200 = sphi 0, %s200
    %s202 = sphi 0, %s200
    %s203 = sphi 0, %s202
    %s217 = sphi 0, %s203
    %s221 = sphi 0, %s221
    %s223 = sphi 0, %s221
    %s224 = sphi 0, %s223
    %s238 = sphi 0, %s224
    %s242 = sphi 0, %s242
    %s244 = sphi 0, %s242
    %s245 = sphi 0, %s244
    %s259 = sphi 0, %s245
    %s263 = sphi 0, %s263
    %s265 = sphi 0, %s263
    %s266 = sphi 0, %s265
    %s280 = sphi 0, %s266
    %s284 = sphi 0, %s284
    %s286 = sphi 0, %s284
    %s287 = sphi 0, %s286
    %s301 = sphi 0, %s287
    %s307 = sphi 0, %s309
    %s310 = sphi 0, %s307
    %s311 = sphi 0, %s310
    %s327 = sphi 0, %s311
  $region4: #{hubert_forward.13} parent=0 // loop_header_branch
    %22 = sbr.rel (%p20) target = $region8
  $region5: #{hubert_forward.13} parent=0 // loop_body
    %s24 = ssub.s32 %s19, 1
    %s25 = ssub.s32 %s19, 2
    %s26 = sadd.s32 %s19, 1
    %s27 = ssub.s32 %s19, %s26
    %p28 = scmp.eq.s32.totalorder %s27, 0
    %s30 = sadd.s32 %s29, 1
    %s31 = scalar_select %p28, %s29, %s30
    %p34 = pneg %p28
    %p35 = scmp.eq.s32.totalorder %s19, 1
    %p36 = por %p34, %p35
    %p37 = scmp.ne.s32.totalorder %s29, %s32
    %p38 = scmp.eq.s32.totalorder %s19, 0
    %p39 = por %p37, %p38
    %p40 = scmp.ne.s32.totalorder %s29, %s32
    %p41 = scmp.eq.s32.totalorder %s24, 1
    %p42 = por %p40, %p41
    %p43 = scmp.ne.s32.totalorder %s32, %s33
    %p44 = scmp.eq.s32.totalorder %s24, 0
    %p45 = por %p43, %p44
    %p46 = scmp.ne.s32.totalorder %s32, %s33
    %p47 = scmp.eq.s32.totalorder %s25, 1
    %p48 = por %p46, %p47
    %p50 = scmp.ne.s32.totalorder %s33, %s49
    %p51 = scmp.eq.s32.totalorder %s25, 0
    %p52 = por %p50, %p51
    %s54 = sadd.s32 %s53, 1
    %p57 = scmp.eq.s32.totalorder %s19, 1
    %p58 = scmp.ne.s32.totalorder %s53, %s55
    %p59 = scmp.eq.s32.totalorder %s19, 0
    %p60 = por %p58, %p59
    %p61 = scmp.ne.s32.totalorder %s53, %s55
    %p62 = scmp.eq.s32.totalorder %s24, 1
    %p63 = por %p61, %p62
    %p64 = scmp.ne.s32.totalorder %s55, %s56
    %p65 = scmp.eq.s32.totalorder %s24, 0
    %p66 = por %p64, %p65
    %p67 = scmp.ne.s32.totalorder %s55, %s56
    %p68 = scmp.eq.s32.totalorder %s25, 1
    %p69 = por %p67, %p68
    %p71 = scmp.ne.s32.totalorder %s56, %s70
    %p72 = scmp.eq.s32.totalorder %s25, 0
    %p73 = por %p71, %p72
    %s75 = sadd.s32 %s74, 1
    %p78 = scmp.eq.s32.totalorder %s19, 1
    %p79 = scmp.ne.s32.totalorder %s74, %s76
    %p80 = scmp.eq.s32.totalorder %s19, 0
    %p81 = por %p79, %p80
    %p82 = scmp.ne.s32.totalorder %s74, %s76
    %p83 = scmp.eq.s32.totalorder %s24, 1
    %p84 = por %p82, %p83
    %p85 = scmp.ne.s32.totalorder %s76, %s77
    %p86 = scmp.eq.s32.totalorder %s24, 0
    %p87 = por %p85, %p86
    %p88 = scmp.ne.s32.totalorder %s76, %s77
    %p89 = scmp.eq.s32.totalorder %s25, 1
    %p90 = por %p88, %p89
    %p92 = scmp.ne.s32.totalorder %s77, %s91
    %p93 = scmp.eq.s32.totalorder %s25, 0
    %p94 = por %p92, %p93
    %s96 = sadd.s32 %s95, 1
    %p99 = scmp.eq.s32.totalorder %s19, 1
    %p100 = scmp.ne.s32.totalorder %s95, %s97
    %p101 = scmp.eq.s32.totalorder %s19, 0
    %p102 = por %p100, %p101
    %p103 = scmp.ne.s32.totalorder %s95, %s97
    %p104 = scmp.eq.s32.totalorder %s24, 1
    %p105 = por %p103, %p104
    %p106 = scmp.ne.s32.totalorder %s97, %s98
    %p107 = scmp.eq.s32.totalorder %s24, 0
    %p108 = por %p106, %p107
    %p109 = scmp.ne.s32.totalorder %s97, %s98
    %p110 = scmp.eq.s32.totalorder %s25, 1
    %p111 = por %p109, %p110
    %p113 = scmp.ne.s32.totalorder %s98, %s112
    %p114 = scmp.eq.s32.totalorder %s25, 0
    %p115 = por %p113, %p114
    %s117 = sadd.s32 %s116, 1
    %p120 = scmp.eq.s32.totalorder %s19, 1
    %p121 = scmp.ne.s32.totalorder %s116, %s118
    %p122 = scmp.eq.s32.totalorder %s19, 0
    %p123 = por %p121, %p122
    %p124 = scmp.ne.s32.totalorder %s116, %s118
    %p125 = scmp.eq.s32.totalorder %s24, 1
    %p126 = por %p124, %p125
    %p127 = scmp.ne.s32.totalorder %s118, %s119
    %p128 = scmp.eq.s32.totalorder %s24, 0
    %p129 = por %p127, %p128
    %p130 = scmp.ne.s32.totalorder %s118, %s119
    %p131 = scmp.eq.s32.totalorder %s25, 1
    %p132 = por %p130, %p131
    %p134 = scmp.ne.s32.totalorder %s119, %s133
    %p135 = scmp.eq.s32.totalorder %s25, 0
    %p136 = por %p134, %p135
    %s138 = sadd.s32 %s137, 1
    %p141 = scmp.eq.s32.totalorder %s19, 1
    %p142 = scmp.ne.s32.totalorder %s137, %s139
    %p143 = scmp.eq.s32.totalorder %s19, 0
    %p144 = por %p142, %p143
    %p145 = scmp.ne.s32.totalorder %s137, %s139
    %p146 = scmp.eq.s32.totalorder %s24, 1
    %p147 = por %p145, %p146
    %p148 = scmp.ne.s32.totalorder %s139, %s140
    %p149 = scmp.eq.s32.totalorder %s24, 0
    %p150 = por %p148, %p149
    %p151 = scmp.ne.s32.totalorder %s139, %s140
    %p152 = scmp.eq.s32.totalorder %s25, 1
    %p153 = por %p151, %p152
    %p155 = scmp.ne.s32.totalorder %s140, %s154
    %p156 = scmp.eq.s32.totalorder %s25, 0
    %p157 = por %p155, %p156
    %s159 = sadd.s32 %s158, 1
    %p162 = scmp.eq.s32.totalorder %s19, 1
    %p163 = scmp.ne.s32.totalorder %s158, %s160
    %p164 = scmp.eq.s32.totalorder %s19, 0
    %p165 = por %p163, %p164
    %p166 = scmp.ne.s32.totalorder %s158, %s160
    %p167 = scmp.eq.s32.totalorder %s24, 1
    %p168 = por %p166, %p167
    %p169 = scmp.ne.s32.totalorder %s160, %s161
    %p170 = scmp.eq.s32.totalorder %s24, 0
    %p171 = por %p169, %p170
    %p172 = scmp.ne.s32.totalorder %s160, %s161
    %p173 = scmp.eq.s32.totalorder %s25, 1
    %p174 = por %p172, %p173
    %p176 = scmp.ne.s32.totalorder %s161, %s175
    %p177 = scmp.eq.s32.totalorder %s25, 0
    %p178 = por %p176, %p177
    %s180 = sadd.s32 %s179, 1
    %p183 = scmp.eq.s32.totalorder %s19, 1
    %p184 = scmp.ne.s32.totalorder %s179, %s181
    %p185 = scmp.eq.s32.totalorder %s19, 0
    %p186 = por %p184, %p185
    %p187 = scmp.ne.s32.totalorder %s179, %s181
    %p188 = scmp.eq.s32.totalorder %s24, 1
    %p189 = por %p187, %p188
    %p190 = scmp.ne.s32.totalorder %s181, %s182
    %p191 = scmp.eq.s32.totalorder %s24, 0
    %p192 = por %p190, %p191
    %p193 = scmp.ne.s32.totalorder %s181, %s182
    %p194 = scmp.eq.s32.totalorder %s25, 1
    %p195 = por %p193, %p194
    %p197 = scmp.ne.s32.totalorder %s182, %s196
    %p198 = scmp.eq.s32.totalorder %s25, 0
    %p199 = por %p197, %p198
    %s201 = sadd.s32 %s200, 1
    %p204 = scmp.eq.s32.totalorder %s19, 1
    %p205 = scmp.ne.s32.totalorder %s200, %s202
    %p206 = scmp.eq.s32.totalorder %s19, 0
    %p207 = por %p205, %p206
    %p208 = scmp.ne.s32.totalorder %s200, %s202
    %p209 = scmp.eq.s32.totalorder %s24, 1
    %p210 = por %p208, %p209
    %p211 = scmp.ne.s32.totalorder %s202, %s203
    %p212 = scmp.eq.s32.totalorder %s24, 0
    %p213 = por %p211, %p212
    %p214 = scmp.ne.s32.totalorder %s202, %s203
    %p215 = scmp.eq.s32.totalorder %s25, 1
    %p216 = por %p214, %p215
    %p218 = scmp.ne.s32.totalorder %s203, %s217
    %p219 = scmp.eq.s32.totalorder %s25, 0
    %p220 = por %p218, %p219
    %s222 = sadd.s32 %s221, 1
    %p225 = scmp.eq.s32.totalorder %s19, 1
    %p226 = scmp.ne.s32.totalorder %s221, %s223
    %p227 = scmp.eq.s32.totalorder %s19, 0
    %p228 = por %p226, %p227
    %p229 = scmp.ne.s32.totalorder %s221, %s223
    %p230 = scmp.eq.s32.totalorder %s24, 1
    %p231 = por %p229, %p230
    %p232 = scmp.ne.s32.totalorder %s223, %s224
    %p233 = scmp.eq.s32.totalorder %s24, 0
    %p234 = por %p232, %p233
    %p235 = scmp.ne.s32.totalorder %s223, %s224
    %p236 = scmp.eq.s32.totalorder %s25, 1
    %p237 = por %p235, %p236
    %p239 = scmp.ne.s32.totalorder %s224, %s238
    %p240 = scmp.eq.s32.totalorder %s25, 0
    %p241 = por %p239, %p240
    %s243 = sadd.s32 %s242, 1
    %p246 = scmp.eq.s32.totalorder %s19, 1
    %p247 = scmp.ne.s32.totalorder %s242, %s244
    %p248 = scmp.eq.s32.totalorder %s19, 0
    %p249 = por %p247, %p248
    %p250 = scmp.ne.s32.totalorder %s242, %s244
    %p251 = scmp.eq.s32.totalorder %s24, 1
    %p252 = por %p250, %p251
    %p253 = scmp.ne.s32.totalorder %s244, %s245
    %p254 = scmp.eq.s32.totalorder %s24, 0
    %p255 = por %p253, %p254
    %p256 = scmp.ne.s32.totalorder %s244, %s245
    %p257 = scmp.eq.s32.totalorder %s25, 1
    %p258 = por %p256, %p257
    %p260 = scmp.ne.s32.totalorder %s245, %s259
    %p261 = scmp.eq.s32.totalorder %s25, 0
    %p262 = por %p260, %p261
    %s264 = sadd.s32 %s263, 1
    %p267 = scmp.eq.s32.totalorder %s19, 1
    %p268 = scmp.ne.s32.totalorder %s263, %s265
    %p269 = scmp.eq.s32.totalorder %s19, 0
    %p270 = por %p268, %p269
    %p271 = scmp.ne.s32.totalorder %s263, %s265
    %p272 = scmp.eq.s32.totalorder %s24, 1
    %p273 = por %p271, %p272
    %p274 = scmp.ne.s32.totalorder %s265, %s266
    %p275 = scmp.eq.s32.totalorder %s24, 0
    %p276 = por %p274, %p275
    %p277 = scmp.ne.s32.totalorder %s265, %s266
    %p278 = scmp.eq.s32.totalorder %s25, 1
    %p279 = por %p277, %p278
    %p281 = scmp.ne.s32.totalorder %s266, %s280
    %p282 = scmp.eq.s32.totalorder %s25, 0
    %p283 = por %p281, %p282
    %s285 = sadd.s32 %s284, 1
    %p288 = scmp.eq.s32.totalorder %s19, 1
    %p289 = scmp.ne.s32.totalorder %s284, %s286
    %p290 = scmp.eq.s32.totalorder %s19, 0
    %p291 = por %p289, %p290
    %p292 = scmp.ne.s32.totalorder %s284, %s286
    %p293 = scmp.eq.s32.totalorder %s24, 1
    %p294 = por %p292, %p293
    %p295 = scmp.ne.s32.totalorder %s286, %s287
    %p296 = scmp.eq.s32.totalorder %s24, 0
    %p297 = por %p295, %p296
    %p298 = scmp.ne.s32.totalorder %s286, %s287
    %p299 = scmp.eq.s32.totalorder %s25, 1
    %p300 = por %p298, %p299
    %p302 = scmp.ne.s32.totalorder %s287, %s301
    %p303 = scmp.eq.s32.totalorder %s25, 0
    %p304 = por %p302, %p303
    %s305 = ssub.s32 %s19, %s26
    %p306 = scmp.eq.s32.totalorder %s305, 0
    %s308 = sadd.s32 %s307, 1
    %s309 = scalar_select %p306, %s307, %s308
    %p312 = pneg %p306
    %p313 = scmp.eq.s32.totalorder %s19, 1
    %p314 = por %p312, %p313
    %p315 = scmp.ne.s32.totalorder %s307, %s310
    %p316 = scmp.eq.s32.totalorder %s19, 0
    %p317 = por %p315, %p316
    %p318 = scmp.ne.s32.totalorder %s307, %s310
    %p319 = scmp.eq.s32.totalorder %s24, 1
    %p320 = por %p318, %p319
    %p321 = scmp.ne.s32.totalorder %s310, %s311
    %p322 = scmp.eq.s32.totalorder %s24, 0
    %p323 = por %p321, %p322
    %p324 = scmp.ne.s32.totalorder %s310, %s311
    %p325 = scmp.eq.s32.totalorder %s25, 1
    %p326 = por %p324, %p325
    %p328 = scmp.ne.s32.totalorder %s311, %s327
    %p329 = scmp.eq.s32.totalorder %s25, 0
    %p330 = por %p328, %p329
    %p331 = scmp.le.s32.totalorder 1, %s19
    %p332 = scmp.lt.s32.totalorder %s19, 3
    %p333 = pnand %p331, %p332
    %p334 = pneg %p333
    // Predicated region
    $region9: #{hubert_forward.13} parent=5 // pred_check
      _
    $region10: #{hubert_forward.13} parent=5 // pred_check_branch
      %336 = sbr.rel (%p333) target = $region12
    $region11: #{hubert_forward.13} parent=5 // pred_region
      %s337 = ssub.s32 %s19, 1
      // Predicated region
      $region13: #{hubert_forward.13} parent=11 // pred_check
        %p338 = pneg %p66
      $region14: #{hubert_forward.13} parent=11 // pred_check_branch
        %340 = sbr.rel (%p338) target = $region16
      $region15: #{hubert_forward.13} parent=11 // pred_region
        _
      $region16: #{hubert_forward.13} parent=11 // pred_fallthru
        _
      // Predicated region
      $region17: #{hubert_forward.13} parent=11 // pred_check
        %p341 = pneg %p87
      $region18: #{hubert_forward.13} parent=11 // pred_check_branch
        %343 = sbr.rel (%p341) target = $region20
      $region19: #{hubert_forward.13} parent=11 // pred_region
        _
      $region20: #{hubert_forward.13} parent=11 // pred_fallthru
        _
      // Predicated region
      $region21: #{hubert_forward.13} parent=11 // pred_check
        %p344 = pneg %p108
      $region22: #{hubert_forward.13} parent=11 // pred_check_branch
        %346 = sbr.rel (%p344) target = $region24
      $region23: #{hubert_forward.13} parent=11 // pred_region
        _
      $region24: #{hubert_forward.13} parent=11 // pred_fallthru
        _
      // Predicated region
      $region25: #{hubert_forward.13} parent=11 // pred_check
        %p347 = pneg %p129
      $region26: #{hubert_forward.13} parent=11 // pred_check_branch
        %349 = sbr.rel (%p347) target = $region28
      $region27: #{hubert_forward.13} parent=11 // pred_region
        _
      $region28: #{hubert_forward.13} parent=11 // pred_fallthru
        _
      // Predicated region
      $region29: #{hubert_forward.13} parent=11 // pred_check
        %p350 = pneg %p150
      $region30: #{hubert_forward.13} parent=11 // pred_check_branch
        %352 = sbr.rel (%p350) target = $region32
      $region31: #{hubert_forward.13} parent=11 // pred_region
        _
      $region32: #{hubert_forward.13} parent=11 // pred_fallthru
        _
      // Predicated region
      $region33: #{hubert_forward.13} parent=11 // pred_check
        %p353 = pneg %p171
      $region34: #{hubert_forward.13} parent=11 // pred_check_branch
        %355 = sbr.rel (%p353) target = $region36
      $region35: #{hubert_forward.13} parent=11 // pred_region
        _
      $region36: #{hubert_forward.13} parent=11 // pred_fallthru
        _
      // Predicated region
      $region37: #{hubert_forward.13} parent=11 // pred_check
        %p356 = pneg %p192
      $region38: #{hubert_forward.13} parent=11 // pred_check_branch
        %358 = sbr.rel (%p356) target = $region40
      $region39: #{hubert_forward.13} parent=11 // pred_region
        _
      $region40: #{hubert_forward.13} parent=11 // pred_fallthru
        _
      // Predicated region
      $region41: #{hubert_forward.13} parent=11 // pred_check
        %p359 = pneg %p213
      $region42: #{hubert_forward.13} parent=11 // pred_check_branch
        %361 = sbr.rel (%p359) target = $region44
      $region43: #{hubert_forward.13} parent=11 // pred_region
        _
      $region44: #{hubert_forward.13} parent=11 // pred_fallthru
        _
      // Predicated region
      $region45: #{hubert_forward.13} parent=11 // pred_check
        %p362 = pneg %p234
      $region46: #{hubert_forward.13} parent=11 // pred_check_branch
        %364 = sbr.rel (%p362) target = $region48
      $region47: #{hubert_forward.13} parent=11 // pred_region
        _
      $region48: #{hubert_forward.13} parent=11 // pred_fallthru
        _
      // Predicated region
      $region49: #{hubert_forward.13} parent=11 // pred_check
        %p365 = pneg %p255
      $region50: #{hubert_forward.13} parent=11 // pred_check_branch
        %367 = sbr.rel (%p365) target = $region52
      $region51: #{hubert_forward.13} parent=11 // pred_region
        _
      $region52: #{hubert_forward.13} parent=11 // pred_fallthru
        _
      // Predicated region
      $region53: #{hubert_forward.13} parent=11 // pred_check
        %p368 = pneg %p276
      $region54: #{hubert_forward.13} parent=11 // pred_check_branch
        %370 = sbr.rel (%p368) target = $region56
      $region55: #{hubert_forward.13} parent=11 // pred_region
        _
      $region56: #{hubert_forward.13} parent=11 // pred_fallthru
        _
      // Predicated region
      $region57: #{hubert_forward.13} parent=11 // pred_check
        %p371 = pneg %p297
      $region58: #{hubert_forward.13} parent=11 // pred_check_branch
        %373 = sbr.rel (%p371) target = $region60
      $region59: #{hubert_forward.13} parent=11 // pred_region
        _
      $region60: #{hubert_forward.13} parent=11 // pred_fallthru
        _
    $region12: #{hubert_forward.13} parent=5 // pred_fallthru
      _
    %p374 = scmp.lt.s32.totalorder %s19, 2
    // Predicated region
    $region61: #{hubert_forward.13} parent=5 // pred_check
      %p375 = pneg %p374
    $region62: #{hubert_forward.13} parent=5 // pred_check_branch
      %377 = sbr.rel (%p375) target = $region64
    $region63: #{hubert_forward.13} parent=5 // pred_region
      // Predicated region
      $region65: #{hubert_forward.13} parent=63 // pred_check
        %p378 = pneg %p39
      $region66: #{hubert_forward.13} parent=63 // pred_check_branch
        %380 = sbr.rel (%p378) target = $region68
      $region67: #{hubert_forward.13} parent=63 // pred_region
        %p381 = scmp.lt.s32.totalorder %s19, 1
        %s382 = scalar_select %p381, %s19, 1
        %s383 = smul.addr %s382, 2
        %s384 = smul.addr %s383, 8
        %s385 = scalar_lea.vmem %s0, %s384
      $region68: #{hubert_forward.13} parent=63 // pred_fallthru
        _
    $region64: #{hubert_forward.13} parent=5 // pred_fallthru
      _
    %p386 = scmp.le.s32.totalorder 1, %s19
    %p387 = scmp.lt.s32.totalorder %s19, 3
    %p388 = pnand %p386, %p387
    %p389 = pneg %p388
    // Predicated region
    $region69: #{hubert_forward.13} parent=5 // pred_check
      _
    $region70: #{hubert_forward.13} parent=5 // pred_check_branch
      %391 = sbr.rel (%p388) target = $region72
    $region71: #{hubert_forward.13} parent=5 // pred_region
      %s392 = ssub.s32 %s19, 1
      %p393 = scmp.lt.s32.totalorder %s24, 1
      %s394 = scalar_select %p393, %s24, 1
      %s395 = smul.addr %s394, 2
      %s396 = smul.addr %s395, 8
      %s397 = scalar_lea.vmem %s0, %s396
      %p398 = pneg %p45
      %p399 = pneg %p42
      %p400 = pneg %p66
      %p401 = pneg %p63
      %p402 = pneg %p87
      %p403 = pneg %p84
      %p404 = pneg %p108
      %p405 = pneg %p105
      %p406 = pneg %p129
      %p407 = pneg %p126
      %p408 = pneg %p150
      %p409 = pneg %p147
      %p410 = pneg %p171
      %p411 = pneg %p168
      %p412 = pneg %p192
      %p413 = pneg %p189
      %p414 = pneg %p213
      %p415 = pneg %p210
      %p416 = pneg %p234
      %p417 = pneg %p231
      %p418 = pneg %p255
      %p419 = pneg %p252
      %p420 = pneg %p276
      %p421 = pneg %p273
      %p422 = pneg %p297
      %p423 = pneg %p294
      %p424 = pneg %p323
      %p425 = pneg %p320
      %p426 = scmp.lt.s32.totalorder %s24, 1
      %s427 = scalar_select %p426, %s24, 1
      %s428 = smul.addr %s427, 2
      %s429 = smul.addr %s428, 8
      %s430 = scalar_lea.vmem %s13, %s429
      %p431 = scmp.lt.s32.totalorder %s24, 1
      %s432 = scalar_select %p431, %s24, 1
      %s433 = smul.addr %s432, 2
      %s434 = smul.addr %s433, 8
      %s435 = scalar_lea.vmem %s0, %s434
      %p436 = scmp.lt.s32.totalorder %s24, 1
      %s437 = scalar_select %p436, %s24, 1
      %s438 = smul.addr %s437, 2
      %s439 = smul.addr %s438, 8
      %s440 = scalar_lea.vmem %s13, %s439
      %v442 = vld [vmem:[%s435] sm:$0xff]
      %v443 = vld [vmem:[%s435 + $0x8] sm:$0xff]
      %v444 = vld [vmem:[%s1] sm:$0x1]
      %v445 = vld [vmem:[%s2] sm:$0x1]
      %vm446 = vcmask 523264
      %v447 = vsel %vm446, %v442, 0.0
      %448 = vadd.xlane.f32.xlu0 %v447
      %v449 = vpop.xlane.xlu0 %448
      %v450 = vsel %vm446, %v443, 0.0
      %451 = vadd.xlane.f32.xlu0 %v450
      %v452 = vpop.xlane.xlu0 %451
      %v453 = vrcp.pop 64.0
      %v454 = vmul.f32 64.0, %v453
      %v455 = vsub.f32 1.0, %v454
      %v456 = vmul.f32 %v453, %v455
      %v457 = vadd.f32 %v453, %v456
      %vm458 = vweird.f32 %v453
      %v459 = vsel %vm458, %v453, %v457
      %v460 = vmul.f32 %v449, %v459
      %v461 = vmul.f32 %v452, %v459
      %v462 = vsub.f32 %v442, %v460
      %v463 = vsub.f32 %v443, %v461
      %v464 = vmul.f32 %v462, %v462
      %v465 = vmul.f32 %v463, %v463
      %v466 = vsel %vm446, %v464, 0.0
      %467 = vadd.xlane.f32.xlu0 %v466
      %v468 = vpop.xlane.xlu0 %467
      %v469 = vsel %vm446, %v465, 0.0
      %470 = vadd.xlane.f32.xlu0 %v469
      %v471 = vpop.xlane.xlu0 %470
      %v472 = vmul.f32 %v468, %v459
      %v473 = vmul.f32 %v471, %v459
      %v474 = vadd.f32 %v472, 1e-05
      %v475 = vadd.f32 %v473, 1e-05
      %v476 = vrsqrt.pop %v474
      %v477 = vmul.f32 %v476, %v474
      %v478 = vmul.f32 %v477, %v476
      %v479 = vmul.f32 0.5, %v478
      %v480 = vsub.f32 1.5, %v479
      %v481 = vmul.f32 %v476, %v480
      %vm482 = vweird.f32 %v474
      %vm483 = vweird.f32 %v476
      %vm484 = vmor %vm482, %vm483
      %v485 = vsel %vm484, %v476, %v481
      %v486 = vrsqrt.pop %v475
      %v487 = vmul.f32 %v486, %v475
      %v488 = vmul.f32 %v487, %v486
      %v489 = vmul.f32 0.5, %v488
      %v490 = vsub.f32 1.5, %v489
      %v491 = vmul.f32 %v486, %v490
      %vm492 = vweird.f32 %v475
      %vm493 = vweird.f32 %v486
      %vm494 = vmor %vm492, %vm493
      %v495 = vsel %vm494, %v486, %v491
      %v496 = vmul.f32 %v462, %v485
      %v497 = vmul.f32 %v463, %v495
      %v499 = vperm.slane %v444, 0
      %v501 = vmul.f32 %v496, %v499
      %v502 = vmul.f32 %v497, %v499
      %v504 = vperm.slane %v445, 0
      %v506 = vadd.f32 %v501, %v504
      %v507 = vadd.f32 %v502, %v504
      %v508 = vld [vmem:[%s3] sm:$0xff]
      %v509 = vld [vmem:[%s3 + $0x8] sm:$0xff]
      %v510 = vld [vmem:[%s3 + $0x10] sm:$0xff]
      %v511 = vld [vmem:[%s3 + $0x18] sm:$0xff]
      %v512 = vld [vmem:[%s3 + $0x20] sm:$0xff]
      %v513 = vld [vmem:[%s3 + $0x28] sm:$0xff]
      %v514 = vld [vmem:[%s3 + $0x30] sm:$0xff]
      %v515 = vld [vmem:[%s3 + $0x38] sm:$0xff]
      %v516 = vld [vmem:[%s3 + $0x40] sm:$0xff]
      %v517 = vld [vmem:[%s3 + $0x48] sm:$0xff]
      %v518 = vld [vmem:[%s3 + $0x50] sm:$0xff]
      %v519 = vld [vmem:[%s3 + $0x58] sm:$0xff]
      %v520 = vld [vmem:[%s3 + $0x60] sm:$0xff]
      %v521 = vld [vmem:[%s3 + $0x68] sm:$0xff]
      %v522 = vld [vmem:[%s3 + $0x70] sm:$0xff]
      %v523 = vld [vmem:[%s3 + $0x78] sm:$0xff]
      %v524 = vpack.c.bf16 %v507, %v506
      %v525 = vpack.c.bf16 %v510, %v508
      %v526 = vpack.c.bf16 %v511, %v509
      %v527 = vpack.c.bf16 %v514, %v512
      %v528 = vpack.c.bf16 %v515, %v513
      %v529 = vpack.c.bf16 %v518, %v516
      %v530 = vpack.c.bf16 %v519, %v517
      %v531 = vpack.c.bf16 %v522, %v520
      %v532 = vpack.c.bf16 %v523, %v521
      %v533 = vld [vmem:[%s4] sm:$0x3]
      %v535 = vperm.slane %v533, 0
      %v536 = vperm.slane %v533, 1
      %v540 = vsel %vm446, %v524, 0
      %542 = vmatpush.bf16.msra.mxu0 0
      %543 = vmatpush.bf16.msra.mxu0 0
      %544 = vmatpush.bf16.msra.mxu0 0
      %545 = vmatpush.bf16.msra.mxu0 0
      %546 = vmatpush.bf16.msra.mxu0 %v531
      %547 = vmatpush.bf16.msra.mxu0 %v529
      %548 = vmatpush.bf16.msra.mxu0 %v527
      %549 = vmatpush.bf16.msra.mxu0 %v525
      %550 = vmatmul.bf16.gmra.mxu0 %v540
      %v551 = vpop.f32.mrf.mxu0
      %v552 = vadd.f32 %v535, %v551
      %v553 = vpop.f32.mrf.mxu0
      %v554 = vadd.f32 %v535, %v553
      %555 = vdwg.mxu0
      %556 = vmatpush.bf16.msra.mxu0 0
      %557 = vmatpush.bf16.msra.mxu0 0
      %558 = vmatpush.bf16.msra.mxu0 0
      %559 = vmatpush.bf16.msra.mxu0 0
      %560 = vmatpush.bf16.msra.mxu0 %v532
      %561 = vmatpush.bf16.msra.mxu0 %v530
      %562 = vmatpush.bf16.msra.mxu0 %v528
      %563 = vmatpush.bf16.msra.mxu0 %v526
      %564 = vmatmul.bf16.gmra.mxu0 %v540
      %v565 = vpop.f32.mrf.mxu0
      %v566 = vadd.f32 %v536, %v565
      %v567 = vpop.f32.mrf.mxu0
      %v568 = vadd.f32 %v536, %v567
      %569 = vdwg.mxu0
      %v570 = vmul.f32 %v552, 0.25
      %v571 = vmul.f32 %v554, 0.25
      %v572 = vpack.c.bf16 %v570, %v570
      %v573 = vpack.c.bf16 %v571, %v571
      %v574 = vpack.c.bf16 %v552, %v552
      %v575 = vpack.c.bf16 %v554, %v554
      %v576 = vpack.c.bf16 %v566, %v566
      %v577 = vpack.c.bf16 %v568, %v568
      %v580 = vunpack.c.l.b16 %v572
      %v581 = vunpack.c.l.b16 %v573
      %v582 = vpack.c.b16 %v581, %v580
      %v585 = vunpack.c.l.b16 %v574
      %v586 = vunpack.c.l.b16 %v575
      %v587 = vpack.c.b16 %v586, %v585
      %588 = vrot.lane.b32.xlu0 %v587, 64
      %v589 = vpop.permute.xlu0 %588
      %vm590 = vcmask 130048
      %v592 = vsel %vm590, %v582, 0
      %v595 = vsel %vm590, %v589, 0
      %597 = vmatpush.bf16.xpose.msra.mxu0 0
      %598 = vmatpush.bf16.xpose.msra.mxu0 0
      %599 = vmatpush.bf16.xpose.msra.mxu0 0
      %600 = vmatpush.bf16.xpose.msra.mxu0 0
      %601 = vmatpush.bf16.xpose.msra.mxu0 0
      %602 = vmatpush.bf16.xpose.msra.mxu0 0
      %603 = vmatpush.bf16.xpose.msra.mxu0 0
      %604 = vmatpush.bf16.xpose.msra.mxu0 %v595
      %605 = vmatmul.bf16.gmra.mxu0 %v592
      %v606 = vpop.f32.mrf.mxu0
      %v607 = vadd.f32 0.0, %v606
      %v608 = vpop.f32.mrf.mxu0
      %v609 = vadd.f32 0.0, %v608
      %610 = vdwg.mxu0
      %v611 = vsel %vm590, %v607, -inf
      %612 = vmax.xlane.f32.xlu0 %v611
      %v613 = vpop.xlane.xlu0 %612
      %v614 = vsel %vm590, %v609, -inf
      %615 = vmax.xlane.f32.xlu0 %v614
      %v616 = vpop.xlane.xlu0 %615
      %v617 = vsub.f32 %v607, %v613
      %v618 = vsub.f32 %v609, %v616
      %v619 = vmul.f32 %v617, 1.442695
      %v620 = vpow.pop %v619
      %v621 = vmul.f32 %v618, 1.442695
      %v622 = vpow.pop %v621
      %v623 = vsel %vm590, %v620, 0.0
      %624 = vadd.xlane.f32.xlu0 %v623
      %v625 = vpop.xlane.xlu0 %624
      %v626 = vsel %vm590, %v622, 0.0
      %627 = vadd.xlane.f32.xlu0 %v626
      %v628 = vpop.xlane.xlu0 %627
      %v629 = vrcp.pop %v625
      %v630 = vrcp.pop %v628
      %v631 = vmul.f32 %v620, %v629
      %v632 = vmul.f32 %v622, %v630
      %v633 = vpack.c.bf16 %v632, %v631
      %v636 = vunpack.c.l.b16 %v576
      %v637 = vunpack.c.l.b16 %v577
      %v638 = vpack.c.b16 %v637, %v636
      %v641 = vsel %vm590, %v633, 0
      %643 = vmatpush.bf16.msra.mxu0 0
      %644 = vmatpush.bf16.msra.mxu0 0
      %645 = vmatpush.bf16.msra.mxu0 0
      %646 = vmatpush.bf16.msra.mxu0 0
      %647 = vmatpush.bf16.msra.mxu0 0
      %648 = vmatpush.bf16.msra.mxu0 0
      %649 = vmatpush.bf16.msra.mxu0 0
      %650 = vmatpush.bf16.msra.mxu0 %v638
      %651 = vmatmul.bf16.gmra.mxu0 %v641
      %v652 = vpop.f32.mrf.mxu0
      %v653 = vadd.f32 0.0, %v652
      %v654 = vpop.f32.mrf.mxu0
      %v655 = vadd.f32 0.0, %v654
      %656 = vdwg.mxu0
      %657 = vrot.lane.b32.xlu0 %v582, 112
      %v658 = vpop.permute.xlu0 %657
      %659 = vrot.lane.b32.xlu0 %v587, 48
      %v660 = vpop.permute.xlu0 %659
      %v662 = vsel %vm590, %v658, 0
      %v665 = vsel %vm590, %v660, 0
      %667 = vmatpush.bf16.xpose.msra.mxu0 0
      %668 = vmatpush.bf16.xpose.msra.mxu0 0
      %669 = vmatpush.bf16.xpose.msra.mxu0 0
      %670 = vmatpush.bf16.xpose.msra.mxu0 0
      %671 = vmatpush.bf16.xpose.msra.mxu0 0
      %672 = vmatpush.bf16.xpose.msra.mxu0 0
      %673 = vmatpush.bf16.xpose.msra.mxu0 0
      %674 = vmatpush.bf16.xpose.msra.mxu0 %v665
      %675 = vmatmul.bf16.gmra.mxu0 %v662
      %v676 = vpop.f32.mrf.mxu0
      %v677 = vadd.f32 0.0, %v676
      %v678 = vpop.f32.mrf.mxu0
      %v679 = vadd.f32 0.0, %v678
      %680 = vdwg.mxu0
      %v681 = vsel %vm590, %v677, -inf
      %682 = vmax.xlane.f32.xlu0 %v681
      %v683 = vpop.xlane.xlu0 %682
      %v684 = vsel %vm590, %v679, -inf
      %685 = vmax.xlane.f32.xlu0 %v684
      %v686 = vpop.xlane.xlu0 %685
      %v687 = vsub.f32 %v677, %v683
      %v688 = vsub.f32 %v679, %v686
      %v689 = vmul.f32 %v687, 1.442695
      %v690 = vpow.pop %v689
      %v691 = vmul.f32 %v688, 1.442695
      %v692 = vpow.pop %v691
      %v693 = vsel %vm590, %v690, 0.0
      %694 = vadd.xlane.f32.xlu0 %v693
      %v695 = vpop.xlane.xlu0 %694
      %v696 = vsel %vm590, %v692, 0.0
      %697 = vadd.xlane.f32.xlu0 %v696
      %v698 = vpop.xlane.xlu0 %697
      %v699 = vrcp.pop %v695
      %v700 = vrcp.pop %v698
      %v701 = vmul.f32 %v690, %v699
      %v702 = vmul.f32 %v692, %v700
      %v703 = vpack.c.bf16 %v702, %v701
      %704 = vrot.lane.b32.xlu0 %v638, 112
      %v705 = vpop.permute.xlu0 %704
      %v708 = vsel %vm590, %v703, 0
      %710 = vmatpush.bf16.msra.mxu0 0
      %711 = vmatpush.bf16.msra.mxu0 0
      %712 = vmatpush.bf16.msra.mxu0 0
      %713 = vmatpush.bf16.msra.mxu0 0
      %714 = vmatpush.bf16.msra.mxu0 0
      %715 = vmatpush.bf16.msra.mxu0 0
      %716 = vmatpush.bf16.msra.mxu0 0
      %717 = vmatpush.bf16.msra.mxu0 %v705
      %718 = vmatmul.bf16.gmra.mxu0 %v708
      %v719 = vpop.f32.mrf.mxu0
      %v720 = vadd.f32 0.0, %v719
      %v721 = vpop.f32.mrf.mxu0
      %v722 = vadd.f32 0.0, %v721
      %723 = vdwg.mxu0
      %724 = vrot.lane.b32.xlu0 %v582, 96
      %v725 = vpop.permute.xlu0 %724
      %726 = vrot.lane.b32.xlu0 %v587, 32
      %v727 = vpop.permute.xlu0 %726
      %v729 = vsel %vm590, %v725, 0
      %v732 = vsel %vm590, %v727, 0
      %734 = vmatpush.bf16.xpose.msra.mxu0 0
      %735 = vmatpush.bf16.xpose.msra.mxu0 0
      %736 = vmatpush.bf16.xpose.msra.mxu0 0
      %737 = vmatpush.bf16.xpose.msra.mxu0 0
      %738 = vmatpush.bf16.xpose.msra.mxu0 0
      %739 = vmatpush.bf16.xpose.msra.mxu0 0
      %740 = vmatpush.bf16.xpose.msra.mxu0 0
      %741 = vmatpush.bf16.xpose.msra.mxu0 %v732
      %742 = vmatmul.bf16.gmra.mxu0 %v729
      %v743 = vpop.f32.mrf.mxu0
      %v744 = vadd.f32 0.0, %v743
      %v745 = vpop.f32.mrf.mxu0
      %v746 = vadd.f32 0.0, %v745
      %747 = vdwg.mxu0
      %v748 = vsel %vm590, %v744, -inf
      %749 = vmax.xlane.f32.xlu0 %v748
      %v750 = vpop.xlane.xlu0 %749
      %v751 = vsel %vm590, %v746, -inf
      %752 = vmax.xlane.f32.xlu0 %v751
      %v753 = vpop.xlane.xlu0 %752
      %v754 = vsub.f32 %v744, %v750
      %v755 = vsub.f32 %v746, %v753
      %v756 = vmul.f32 %v754, 1.442695
      %v757 = vpow.pop %v756
      %v758 = vmul.f32 %v755, 1.442695
      %v759 = vpow.pop %v758
      %v760 = vsel %vm590, %v757, 0.0
      %761 = vadd.xlane.f32.xlu0 %v760
      %v762 = vpop.xlane.xlu0 %761
      %v763 = vsel %vm590, %v759, 0.0
      %764 = vadd.xlane.f32.xlu0 %v763
      %v765 = vpop.xlane.xlu0 %764
      %v766 = vrcp.pop %v762
      %v767 = vrcp.pop %v765
      %v768 = vmul.f32 %v757, %v766
      %v769 = vmul.f32 %v759, %v767
      %v770 = vpack.c.bf16 %v769, %v768
      %771 = vrot.lane.b32.xlu0 %v638, 96
      %v772 = vpop.permute.xlu0 %771
      %v775 = vsel %vm590, %v770, 0
      %777 = vmatpush.bf16.msra.mxu0 0
      %778 = vmatpush.bf16.msra.mxu0 0
      %779 = vmatpush.bf16.msra.mxu0 0
      %780 = vmatpush.bf16.msra.mxu0 0
      %781 = vmatpush.bf16.msra.mxu0 0
      %782 = vmatpush.bf16.msra.mxu0 0
      %783 = vmatpush.bf16.msra.mxu0 0
      %784 = vmatpush.bf16.msra.mxu0 %v772
      %785 = vmatmul.bf16.gmra.mxu0 %v775
      %v786 = vpop.f32.mrf.mxu0
      %v787 = vadd.f32 0.0, %v786
      %v788 = vpop.f32.mrf.mxu0
      %v789 = vadd.f32 0.0, %v788
      %790 = vdwg.mxu0
      %791 = vrot.lane.b32.xlu0 %v582, 80
      %v792 = vpop.permute.xlu0 %791
      %793 = vrot.lane.b32.xlu0 %v587, 16
      %v794 = vpop.permute.xlu0 %793
      %v796 = vsel %vm590, %v792, 0
      %v799 = vsel %vm590, %v794, 0
      %801 = vmatpush.bf16.xpose.msra.mxu0 0
      %802 = vmatpush.bf16.xpose.msra.mxu0 0
      %803 = vmatpush.bf16.xpose.msra.mxu0 0
      %804 = vmatpush.bf16.xpose.msra.mxu0 0
      %805 = vmatpush.bf16.xpose.msra.mxu0 0
      %806 = vmatpush.bf16.xpose.msra.mxu0 0
      %807 = vmatpush.bf16.xpose.msra.mxu0 0
      %808 = vmatpush.bf16.xpose.msra.mxu0 %v799
      %809 = vmatmul.bf16.gmra.mxu0 %v796
      %v810 = vpop.f32.mrf.mxu0
      %v811 = vadd.f32 0.0, %v810
      %v812 = vpop.f32.mrf.mxu0
      %v813 = vadd.f32 0.0, %v812
      %814 = vdwg.mxu0
      %v815 = vsel %vm590, %v811, -inf
      %816 = vmax.xlane.f32.xlu0 %v815
      %v817 = vpop.xlane.xlu0 %816
      %v818 = vsel %vm590, %v813, -inf
      %819 = vmax.xlane.f32.xlu0 %v818
      %v820 = vpop.xlane.xlu0 %819
      %v821 = vsub.f32 %v811, %v817
      %v822 = vsub.f32 %v813, %v820
      %v823 = vmul.f32 %v821, 1.442695
      %v824 = vpow.pop %v823
      %v825 = vmul.f32 %v822, 1.442695
      %v826 = vpow.pop %v825
      %v827 = vsel %vm590, %v824, 0.0
      %828 = vadd.xlane.f32.xlu0 %v827
      %v829 = vpop.xlane.xlu0 %828
      %v830 = vsel %vm590, %v826, 0.0
      %831 = vadd.xlane.f32.xlu0 %v830
      %v832 = vpop.xlane.xlu0 %831
      %v833 = vrcp.pop %v829
      %v834 = vrcp.pop %v832
      %v835 = vmul.f32 %v824, %v833
      %v836 = vmul.f32 %v826, %v834
      %v837 = vpack.c.bf16 %v836, %v835
      %838 = vrot.lane.b32.xlu0 %v638, 80
      %v839 = vpop.permute.xlu0 %838
      %v842 = vsel %vm590, %v837, 0
      %844 = vmatpush.bf16.msra.mxu0 0
      %845 = vmatpush.bf16.msra.mxu0 0
      %846 = vmatpush.bf16.msra.mxu0 0
      %847 = vmatpush.bf16.msra.mxu0 0
      %848 = vmatpush.bf16.msra.mxu0 0
      %849 = vmatpush.bf16.msra.mxu0 0
      %850 = vmatpush.bf16.msra.mxu0 0
      %851 = vmatpush.bf16.msra.mxu0 %v839
      %852 = vmatmul.bf16.gmra.mxu0 %v842
      %v853 = vpop.f32.mrf.mxu0
      %v854 = vadd.f32 0.0, %v853
      %v855 = vpop.f32.mrf.mxu0
      %v856 = vadd.f32 0.0, %v855
      %857 = vdwg.mxu0
      %860 = vrot.lane.b32.xlu0 %v720, 16
      %v861 = vpop.permute.xlu0 %860
      %862 = vrot.lane.b32.xlu0 %v722, 16
      %v863 = vpop.permute.xlu0 %862
      %868 = vrot.lane.b32.xlu0 %v787, 32
      %v869 = vpop.permute.xlu0 %868
      %870 = vrot.lane.b32.xlu0 %v789, 32
      %v871 = vpop.permute.xlu0 %870
      %876 = vrot.lane.b32.xlu0 %v854, 48
      %v877 = vpop.permute.xlu0 %876
      %878 = vrot.lane.b32.xlu0 %v856, 48
      %v879 = vpop.permute.xlu0 %878
      %v882 = vsel %vm590, %v653, %v861
      %v883 = vsel %vm590, %v655, %v863
      %vm884 = vcmask 261120
      %v885 = vsel %vm884, %v882, %v869
      %v886 = vsel %vm884, %v883, %v871
      %vm887 = vcmask 392192
      %v888 = vsel %vm887, %v885, %v877
      %v889 = vsel %vm887, %v886, %v879
      %v890 = vld [vmem:[%s5] sm:$0xff]
      %v891 = vld [vmem:[%s5 + $0x8] sm:$0xff]
      %v892 = vld [vmem:[%s5 + $0x10] sm:$0xff]
      %v893 = vld [vmem:[%s5 + $0x18] sm:$0xff]
      %v894 = vld [vmem:[%s5 + $0x20] sm:$0xff]
      %v895 = vld [vmem:[%s5 + $0x28] sm:$0xff]
      %v896 = vld [vmem:[%s5 + $0x30] sm:$0xff]
      %v897 = vld [vmem:[%s5 + $0x38] sm:$0xff]
      %v898 = vpack.c.bf16 %v889, %v888
      %v899 = vpack.c.bf16 %v891, %v890
      %v900 = vpack.c.bf16 %v893, %v892
      %v901 = vpack.c.bf16 %v895, %v894
      %v902 = vpack.c.bf16 %v897, %v896
      %v904 = vsel %vm446, %v898, 0
      %906 = vmatpush.bf16.msra.mxu0 0
      %907 = vmatpush.bf16.msra.mxu0 0
      %908 = vmatpush.bf16.msra.mxu0 0
      %909 = vmatpush.bf16.msra.mxu0 0
      %910 = vmatpush.bf16.msra.mxu0 %v902
      %911 = vmatpush.bf16.msra.mxu0 %v901
      %912 = vmatpush.bf16.msra.mxu0 %v900
      %913 = vmatpush.bf16.msra.mxu0 %v899
      %914 = vmatmul.bf16.gmra.mxu0 %v904
      %v915 = vpop.f32.mrf.mxu0
      %v916 = vadd.f32 0.0, %v915
      %v917 = vpop.f32.mrf.mxu0
      %v918 = vadd.f32 0.0, %v917
      %919 = vdwg.mxu0
      %v920 = vadd.f32 %v442, %v916
      %v921 = vadd.f32 %v443, %v918
      %v922 = vld [vmem:[%s6] sm:$0x1]
      %v924 = vperm.slane %v922, 0
      %v926 = vadd.f32 %v920, %v924
      %v927 = vadd.f32 %v921, %v924
      %v928 = vld [vmem:[%s7] sm:$0x1]
      %v929 = vld [vmem:[%s8] sm:$0x1]
      %v930 = vsel %vm446, %v926, 0.0
      %931 = vadd.xlane.f32.xlu0 %v930
      %v932 = vpop.xlane.xlu0 %931
      %v933 = vsel %vm446, %v927, 0.0
      %934 = vadd.xlane.f32.xlu0 %v933
      %v935 = vpop.xlane.xlu0 %934
      %v936 = vmul.f32 %v932, %v459
      %v937 = vmul.f32 %v935, %v459
      %v938 = vsub.f32 %v926, %v936
      %v939 = vsub.f32 %v927, %v937
      %v940 = vmul.f32 %v938, %v938
      %v941 = vmul.f32 %v939, %v939
      %v942 = vsel %vm446, %v940, 0.0
      %943 = vadd.xlane.f32.xlu0 %v942
      %v944 = vpop.xlane.xlu0 %943
      %v945 = vsel %vm446, %v941, 0.0
      %946 = vadd.xlane.f32.xlu0 %v945
      %v947 = vpop.xlane.xlu0 %946
      %v948 = vmul.f32 %v944, %v459
      %v949 = vmul.f32 %v947, %v459
      %v950 = vadd.f32 %v948, 1e-05
      %v951 = vadd.f32 %v949, 1e-05
      %v952 = vrsqrt.pop %v950
      %v953 = vmul.f32 %v952, %v950
      %v954 = vmul.f32 %v953, %v952
      %v955 = vmul.f32 0.5, %v954
      %v956 = vsub.f32 1.5, %v955
      %v957 = vmul.f32 %v952, %v956
      %vm958 = vweird.f32 %v950
      %vm959 = vweird.f32 %v952
      %vm960 = vmor %vm958, %vm959
      %v961 = vsel %vm960, %v952, %v957
      %v962 = vrsqrt.pop %v951
      %v963 = vmul.f32 %v962, %v951
      %v964 = vmul.f32 %v963, %v962
      %v965 = vmul.f32 0.5, %v964
      %v966 = vsub.f32 1.5, %v965
      %v967 = vmul.f32 %v962, %v966
      %vm968 = vweird.f32 %v951
      %vm969 = vweird.f32 %v962
      %vm970 = vmor %vm968, %vm969
      %v971 = vsel %vm970, %v962, %v967
      %v972 = vmul.f32 %v938, %v961
      %v973 = vmul.f32 %v939, %v971
      %v975 = vperm.slane %v928, 0
      %v977 = vmul.f32 %v972, %v975
      %v978 = vmul.f32 %v973, %v975
      %v980 = vperm.slane %v929, 0
      %v982 = vadd.f32 %v977, %v980
      %v983 = vadd.f32 %v978, %v980
      %v984 = vld [vmem:[%s9] sm:$0xff]
      %v985 = vld [vmem:[%s9 + $0x8] sm:$0xff]
      %v986 = vld [vmem:[%s9 + $0x10] sm:$0xff]
      %v987 = vld [vmem:[%s9 + $0x18] sm:$0xff]
      %v988 = vld [vmem:[%s9 + $0x20] sm:$0xff]
      %v989 = vld [vmem:[%s9 + $0x28] sm:$0xff]
      %v990 = vld [vmem:[%s9 + $0x30] sm:$0xff]
      %v991 = vld [vmem:[%s9 + $0x38] sm:$0xff]
      %v992 = vpack.c.bf16 %v983, %v982
      %v993 = vpack.c.bf16 %v985, %v984
      %v994 = vpack.c.bf16 %v987, %v986
      %v995 = vpack.c.bf16 %v989, %v988
      %v996 = vpack.c.bf16 %v991, %v990
      %v997 = vld [vmem:[%s10] sm:$0x1]
      %v999 = vperm.slane %v997, 0
      %v1002 = vsel %vm446, %v992, 0
      %1004 = vmatpush.bf16.msra.mxu0 0
      %1005 = vmatpush.bf16.msra.mxu0 0
      %1006 = vmatpush.bf16.msra.mxu0 0
      %1007 = vmatpush.bf16.msra.mxu0 0
      %1008 = vmatpush.bf16.msra.mxu0 %v996
      %1009 = vmatpush.bf16.msra.mxu0 %v995
      %1010 = vmatpush.bf16.msra.mxu0 %v994
      %1011 = vmatpush.bf16.msra.mxu0 %v993
      %1012 = vmatmul.bf16.gmra.mxu0 %v1002
      %v1013 = vpop.f32.mrf.mxu0
      %v1014 = vadd.f32 %v999, %v1013
      %v1015 = vpop.f32.mrf.mxu0
      %v1016 = vadd.f32 %v999, %v1015
      %1017 = vdwg.mxu0
      %v1018 = vmul.f32 %v1014, %v1014
      %v1019 = vmul.f32 %v1016, %v1016
      %v1020 = vmul.f32 %v1014, %v1018
      %v1021 = vmul.f32 %v1016, %v1019
      %v1022 = vmul.f32 %v1020, 0.044715
      %v1023 = vmul.f32 %v1021, 0.044715
      %v1024 = vadd.f32 %v1014, %v1022
      %v1025 = vadd.f32 %v1016, %v1023
      %v1026 = vmul.f32 %v1024, 0.7978846
      %v1027 = vmul.f32 %v1025, 0.7978846
      %v1028 = vtanh.pop %v1026
      %v1029 = vtanh.pop %v1027
      %v1030 = vadd.f32 %v1028, 1.0
      %v1031 = vadd.f32 %v1029, 1.0
      %v1032 = vmul.f32 %v1030, 0.5
      %v1033 = vmul.f32 %v1031, 0.5
      %v1034 = vmul.f32 %v1014, %v1032
      %v1035 = vmul.f32 %v1016, %v1033
      %v1036 = vld [vmem:[%s11] sm:$0xff]
      %v1037 = vld [vmem:[%s11 + $0x8] sm:$0xff]
      %v1038 = vld [vmem:[%s11 + $0x10] sm:$0xff]
      %v1039 = vld [vmem:[%s11 + $0x18] sm:$0xff]
      %v1040 = vld [vmem:[%s11 + $0x20] sm:$0xff]
      %v1041 = vld [vmem:[%s11 + $0x28] sm:$0xff]
      %v1042 = vld [vmem:[%s11 + $0x30] sm:$0xff]
      %v1043 = vld [vmem:[%s11 + $0x38] sm:$0xff]
      %v1044 = vld [vmem:[%s11 + $0x40] sm:$0xff]
      %v1045 = vld [vmem:[%s11 + $0x48] sm:$0xff]
      %v1046 = vld [vmem:[%s11 + $0x50] sm:$0xff]
      %v1047 = vld [vmem:[%s11 + $0x58] sm:$0xff]
      %v1048 = vld [vmem:[%s11 + $0x60] sm:$0xff]
      %v1049 = vld [vmem:[%s11 + $0x68] sm:$0xff]
      %v1050 = vld [vmem:[%s11 + $0x70] sm:$0xff]
      %v1051 = vld [vmem:[%s11 + $0x78] sm:$0xff]
      %v1052 = vpack.c.bf16 %v1035, %v1034
      %v1053 = vpack.c.bf16 %v1037, %v1036
      %v1054 = vpack.c.bf16 %v1039, %v1038
      %v1055 = vpack.c.bf16 %v1041, %v1040
      %v1056 = vpack.c.bf16 %v1043, %v1042
      %v1057 = vpack.c.bf16 %v1045, %v1044
      %v1058 = vpack.c.bf16 %v1047, %v1046
      %v1059 = vpack.c.bf16 %v1049, %v1048
      %v1060 = vpack.c.bf16 %v1051, %v1050
      %1061 = vmatpush.bf16.msra.mxu0 %v1060
      %1062 = vmatpush.bf16.msra.mxu0 %v1059
      %1063 = vmatpush.bf16.msra.mxu0 %v1058
      %1064 = vmatpush.bf16.msra.mxu0 %v1057
      %1065 = vmatpush.bf16.msra.mxu0 %v1056
      %1066 = vmatpush.bf16.msra.mxu0 %v1055
      %1067 = vmatpush.bf16.msra.mxu0 %v1054
      %1068 = vmatpush.bf16.msra.mxu0 %v1053
      %1069 = vmatmul.bf16.gmra.mxu0 %v1052
      %v1070 = vpop.f32.mrf.mxu0
      %v1071 = vadd.f32 0.0, %v1070
      %v1072 = vpop.f32.mrf.mxu0
      %v1073 = vadd.f32 0.0, %v1072
      %1074 = vdwg.mxu0
      %v1075 = vadd.f32 %v926, %v1071
      %v1076 = vadd.f32 %v927, %v1073
      %v1077 = vld [vmem:[%s12] sm:$0x1]
      %v1079 = vperm.slane %v1077, 0
      %v1081 = vadd.f32 %v1075, %v1079
      %v1082 = vadd.f32 %v1076, %v1079
      %1083 = vst.msk [vmem:[%s440] sm:$0xff] %vm446, %v1081
      %1084 = vst.msk [vmem:[%s440 + $0x8] sm:$0xff] %vm446, %v1082
      %p1085 = scmp.lt.s32.totalorder %s24, 1
      %s1086 = scalar_select %p1085, %s24, 1
      %s1087 = smul.addr %s1086, 2
      %s1088 = smul.addr %s1087, 8
      %s1089 = scalar_lea.vmem %s13, %s1088
      // Predicated region
      $region73: #{hubert_forward.13} parent=71 // pred_check
        %p1090 = pneg %p320
      $region74: #{hubert_forward.13} parent=71 // pred_check_branch
        %1092 = sbr.rel (%p1090) target = $region76
      $region75: #{hubert_forward.13} parent=71 // pred_region
        _
      $region76: #{hubert_forward.13} parent=71 // pred_fallthru
        _
    $region72: #{hubert_forward.13} parent=5 // pred_fallthru
      _
    %p1093 = scmp.le.s32.totalorder 2, %s19
    // Predicated region
    $region77: #{hubert_forward.13} parent=5 // pred_check
      %p1094 = pneg %p1093
    $region78: #{hubert_forward.13} parent=5 // pred_check_branch
      %1096 = sbr.rel (%p1094) target = $region80
    $region79: #{hubert_forward.13} parent=5 // pred_region
      %s1097 = ssub.s32 %s19, 2
      // Predicated region
      $region81: #{hubert_forward.13} parent=79 // pred_check
        %p1098 = pneg %p326
      $region82: #{hubert_forward.13} parent=79 // pred_check_branch
        %1100 = sbr.rel (%p1098) target = $region84
      $region83: #{hubert_forward.13} parent=79 // pred_region
        %p1101 = scmp.lt.s32.totalorder %s25, 1
        %s1102 = scalar_select %p1101, %s25, 1
        %s1103 = smul.addr %s1102, 2
        %s1104 = smul.addr %s1103, 8
        %s1105 = scalar_lea.vmem %s13, %s1104
      $region84: #{hubert_forward.13} parent=79 // pred_fallthru
        _
    $region80: #{hubert_forward.13} parent=5 // pred_fallthru
      _
  $region6: #{hubert_forward.13} parent=0 // loop_footer
    %s23 = sadd.s32 1, %s19
  $region7: #{hubert_forward.13} parent=0 // loop_footer_branch
    %18 = sbr.rel target = $region3
  $region8: #{hubert_forward.13} parent=0 // loop_exit
    _

</llo_original>
